<compile_context>
chip_gen: v7x
topology: tpu7x:2x2x1
jax: 0.10.0
libtpu: 0.0.40
codegen_flags: <defaults>
</compile_context>

<pallas_src>
import functools
import math

import jax
import jax.numpy as jnp
import numpy as np
from jax.experimental import pallas as pl
from jax.experimental.pallas import tpu as pltpu


def _gelu_exact(v):
    # F.gelu default (erf formulation) - kept exact for semantic fidelity.
    return 0.5 * v * (1.0 + jax.lax.erf(v * 0.7071067811865476))


def prenorm_ff_kernel(x_ref, amean_ref, g_ref, b_ref, w1_ref, wd_ref, scat_ref,
                      w2_ref, o_ref, *, cm, eps):
    # One batch element per grid step.  Lane axis packs (w, c) / (w, m), fastest last.
    #   x_ref    : [1, D*H, W*C]
    #   amean_ref: [W*C, W*C]    kron(I_W, ones(C,C)/C)  (per-voxel channel mean)
    #   g_ref    : [1, W*C]      LayerNorm gamma tiled over W
    #   b_ref    : [1, W*C]      LayerNorm beta  tiled over W
    #   w1_ref   : [W*C, W*CM]   kron(I_W, conv1 weight), bf16
    #   wd_ref   : [27, W*CM]    depthwise weights tiled over W, row = (kd*3+kh)*3+kw
    #   scat_ref : [9, D*H, D*H] 0/1 row-shift matrices for the (kd, kh) taps
    #   w2_ref   : [W*CM, W*C]   kron(I_W, conv2 weight), bf16
    #   o_ref    : [1, D*H, W*C]
    f32 = jnp.float32
    x2 = x_ref[0].astype(f32)                                   # (DH, WC)

    # ---- PreNorm: LayerNorm over the channel axis (per voxel) ------------------
    amean = amean_ref[...]
    mu = jnp.dot(x2, amean, preferred_element_type=f32)         # mean, broadcast to C lanes
    xc = x2 - mu
    var = jnp.dot(xc * xc, amean, preferred_element_type=f32)   # biased variance
    y = xc * jax.lax.rsqrt(var + eps) * g_ref[0:1, :] + b_ref[0:1, :]

    # ---- fn: pointwise conv #1 (1x1x1) + exact GELU -----------------------------
    h1 = jnp.dot(y.astype(jnp.bfloat16), w1_ref[...],
                 preferred_element_type=f32)                    # (DH, WCM)
    h1 = _gelu_exact(h1)

    # ---- depthwise 3x3x3, stride 1, pad 1 (register-resident) ------------------
    dh, wcm = h1.shape
    z = jnp.zeros((dh, cm), f32)
    s0 = jnp.concatenate([z, h1[:, :wcm - cm]], axis=1)         # neighbour at w-1 (0 at w=0)
    s2 = jnp.concatenate([h1[:, cm:], z], axis=1)               # neighbour at w+1 (0 at w=W-1)
    acc = jnp.zeros((dh, wcm), f32)
    for kd in range(3):
        for kh in range(3):
            t = kd * 3 + kh
            inner = (wd_ref[3 * t + 0:3 * t + 1, :] * s0
                     + wd_ref[3 * t + 1:3 * t + 2, :] * h1
                     + wd_ref[3 * t + 2:3 * t + 3, :] * s2)
            # (kd, kh) shift with zero padding == multiply by a 0/1 matrix (idle MXU,
            # exact in f32); replaces the old padded-scratch round trip.
            acc = acc + jnp.dot(scat_ref[t], inner, preferred_element_type=f32)
    h2 = _gelu_exact(acc)

    # ---- pointwise conv #2 (1x1x1) back to C channels ---------------------------
    out = jnp.dot(h2.astype(jnp.bfloat16), w2_ref[...], preferred_element_type=f32)
    o_ref[0] = out.astype(o_ref.dtype)                          # lane-dense (64-lane) store


def _row_shift_matrices(d, h):
    """S_t (t = kd*3 + kh): S_t[r, r'] = 1 iff row r' = (d+kd-1)*H + (h+kh-1) is the
    in-bounds source plane/row of output row r = d*H + h (zero padding otherwise)."""
    r = np.arange(d * h)
    di, hi = r // h, r % h
    mats = np.zeros((9, d * h, d * h), np.float32)
    for kd in range(3):
        for kh in range(3):
            dd, hh = di + kd - 1, hi + kh - 1
            ok = (dd >= 0) & (dd < d) & (hh >= 0) & (hh < h)
            mats[kd * 3 + kh, r[ok], (dd * h + hh)[ok]] = 1.0
    return jnp.asarray(mats)


@jax.jit
def prenorm_feedforward_pallas(x, gamma, beta, w1, wdw, w2):
    B, D, H, W, C = x.shape
    CM = int(w1.shape[1])
    DH, WC, WCM = D * H, W * C, W * CM

    # Wrapper-side layout plumbing (tiny, one-time).
    x2 = x.reshape(B, DH, WC)
    eye_w = jnp.eye(W, dtype=jnp.float32)
    a_mean = jnp.kron(eye_w, jnp.full((C, C), 1.0 / C, jnp.float32))        # (WC, WC)
    g_t = jnp.tile(gamma.astype(jnp.float32), W).reshape(1, WC)
    b_t = jnp.tile(beta.astype(jnp.float32), W).reshape(1, WC)
    w1_big = jnp.kron(eye_w, w1.astype(jnp.float32)).astype(jnp.bfloat16)   # (WC, WCM)
    w2_big = jnp.kron(eye_w, w2.astype(jnp.float32)).astype(jnp.bfloat16)   # (WCM, WC)
    wd_t = jnp.tile(wdw.astype(jnp.float32).reshape(27, CM), (1, W))        # (27, WCM)
    s_cat = _row_shift_matrices(D, H)                                       # (9, DH, DH)

    kernel = functools.partial(prenorm_ff_kernel, cm=CM, eps=1e-5)
    out2 = pl.pallas_call(
        kernel,
        out_shape=jax.ShapeDtypeStruct((B, DH, WC), x.dtype),
        grid_spec=pltpu.PrefetchScalarGridSpec(
            num_scalar_prefetch=0,
            grid=(B,),
            in_specs=[
                pl.BlockSpec((1, DH, WC), lambda b: (b, 0, 0)),       # x (lane-packed)
                pl.BlockSpec((WC, WC), lambda b: (0, 0)),             # LN mean matrix
                pl.BlockSpec((1, WC), lambda b: (0, 0)),              # gamma
                pl.BlockSpec((1, WC), lambda b: (0, 0)),              # beta
                pl.BlockSpec((WC, WCM), lambda b: (0, 0)),            # conv1 (bf16)
                pl.BlockSpec((27, WCM), lambda b: (0, 0)),            # depthwise weights
                pl.BlockSpec((9, DH, DH), lambda b: (0, 0, 0)),       # row-shift mats
                pl.BlockSpec((WCM, WC), lambda b: (0, 0)),            # conv2 (bf16)
            ],
            out_specs=pl.BlockSpec((1, DH, WC), lambda b: (b, 0, 0)),
        ),
        compiler_params=pltpu.CompilerParams(
            dimension_semantics=("parallel",),
            vmem_limit_bytes=32 * 1024 * 1024,
        ),
    )(x2, a_mean, g_t, b_t, w1_big, wd_t, s_cat, w2_big)
    # For production shapes (large D/H/W, CM >= 128) tile the grid over (B, D-slabs)
    # with a 1-plane halo so the working set stays inside VMEM and both v7x
    # TensorCores pipeline; at this toy size one block per batch element fits easily.
    return out2.reshape(B, D, H, W, C)


def prenorm_feedforward_reference(x, gamma, beta, w1, wdw, w2, eps=1e-5):
    """Pure-JAX reference: LayerNorm(dim) then the SCubA_RP FeedForward (f32)."""
    B, D, H, W, C = x.shape
    mu = jnp.mean(x, axis=-1, keepdims=True)
    var = jnp.mean((x - mu) ** 2, axis=-1, keepdims=True)
    y = (x - mu) * jax.lax.rsqrt(var + eps) * gamma + beta
    h1 = jax.nn.gelu(jnp.einsum("bdhwc,cm->bdhwm", y, w1), approximate=False)
    p = jnp.pad(h1, ((0, 0), (1, 1), (1, 1), (1, 1), (0, 0)))
    acc = jnp.zeros_like(h1)
    for kd in range(3):
        for kh in range(3):
            for kw in range(3):
                acc = acc + p[:, kd:kd + D, kh:kh + H, kw:kw + W, :] * wdw[kd, kh, kw]
    h2 = jax.nn.gelu(acc, approximate=False)
    return jnp.einsum("bdhwm,mc->bdhwc", h2, w2)


if __name__ == "__main__":
    B, D, H, W = 2, 4, 8, 8
    dim, mult = 8, 4
    cm = dim * mult

    key = jax.random.PRNGKey(0)
    kx, kg, kb, k1, k2, k3 = jax.random.split(key, 6)

    # PreNorm params:  nn.LayerNorm(dim) -> gamma/beta [dim]
    # fn (FeedForward) params (Conv3d weights, squeezed of their 1x1x1 / groups dims):
    #   conv1.weight [cm, dim, 1,1,1] -> w1  [dim, cm]
    #   dwconv.weight[cm, 1, 3,3,3]   -> wdw [3, 3, 3, cm]
    #   conv2.weight [dim, cm, 1,1,1] -> w2  [cm, dim]
    x = jax.random.normal(kx, (B, D, H, W, dim), jnp.float32)
    gamma = 1.0 + 0.1 * jax.random.normal(kg, (dim,), jnp.float32)
    beta = 0.1 * jax.random.normal(kb, (dim,), jnp.float32)
    w1 = jax.random.normal(k1, (dim, cm), jnp.float32) * (1.0 / math.sqrt(dim))
    wdw = jax.random.normal(k2, (3, 3, 3, cm), jnp.float32) * (1.0 / math.sqrt(27.0))
    w2 = jax.random.normal(k3, (cm, dim), jnp.float32) * (1.0 / math.sqrt(cm))

    out = jax.block_until_ready(prenorm_feedforward_pallas(x, gamma, beta, w1, wdw, w2))
    assert out.shape == (B, D, H, W, dim), out.shape

    ref = prenorm_feedforward_reference(x, gamma, beta, w1, wdw, w2)
    max_err = float(jnp.max(jnp.abs(out - ref)))
    # bf16 MXU operands on the two pointwise convs -> slightly looser tolerance.
    assert jnp.allclose(out, ref, rtol=2e-2, atol=2e-2), max_err

    print("KERNEL_OK")
</pallas_src>

<mosaic_0001>
module attributes {stable_mosaic.version = 11 : i64} {
  func.func @prenorm_ff_kernel(%arg0: i32, %arg1: memref<1x32x64xf32, #tpu.memory_space<vmem>>, %arg2: memref<64x64xf32, #tpu.memory_space<vmem>>, %arg3: memref<1x64xf32, #tpu.memory_space<vmem>>, %arg4: memref<1x64xf32, #tpu.memory_space<vmem>>, %arg5: memref<64x256xbf16, #tpu.memory_space<vmem>>, %arg6: memref<27x256xf32, #tpu.memory_space<vmem>>, %arg7: memref<9x32x32xf32, #tpu.memory_space<vmem>>, %arg8: memref<256x64xbf16, #tpu.memory_space<vmem>>, %arg9: memref<1x32x64xf32, #tpu.memory_space<vmem>>) attributes {dimension_semantics = [#tpu.dimension_semantics<parallel>], iteration_bounds = array<i64: 2>, scalar_prefetch = 0 : i64, scratch_operands = 0 : i64, tpu.core_type = #tpu.core_type<tc>, window_params = [{transform_indices = @transform_0, window_bounds = array<i64: 1, 32, 64>}, {pipeline_mode = #tpu.pipeline_mode<synchronous>, transform_indices = @transform_1, window_bounds = array<i64: 64, 64>}, {pipeline_mode = #tpu.pipeline_mode<synchronous>, transform_indices = @transform_2, window_bounds = array<i64: 1, 64>}, {pipeline_mode = #tpu.pipeline_mode<synchronous>, transform_indices = @transform_3, window_bounds = array<i64: 1, 64>}, {pipeline_mode = #tpu.pipeline_mode<synchronous>, transform_indices = @transform_4, window_bounds = array<i64: 64, 256>}, {pipeline_mode = #tpu.pipeline_mode<synchronous>, transform_indices = @transform_5, window_bounds = array<i64: 27, 256>}, {pipeline_mode = #tpu.pipeline_mode<synchronous>, transform_indices = @transform_6, window_bounds = array<i64: 9, 32, 32>}, {pipeline_mode = #tpu.pipeline_mode<synchronous>, transform_indices = @transform_7, window_bounds = array<i64: 256, 64>}, {transform_indices = @transform_8, window_bounds = array<i64: 1, 32, 64>}]} {
    %c0 = arith.constant 0 : index
    %c0_0 = arith.constant 0 : index
    %c0_1 = arith.constant 0 : index
    %0 = vector.load %arg1[%c0, %c0_0, %c0_1] : memref<1x32x64xf32, #tpu.memory_space<vmem>>, vector<1x32x64xf32>
    %1 = vector.shape_cast %0 : vector<1x32x64xf32> to vector<32x64xf32>
    %c0_2 = arith.constant 0 : index
    %c0_3 = arith.constant 0 : index
    %2 = vector.load %arg2[%c0_2, %c0_3] : memref<64x64xf32, #tpu.memory_space<vmem>>, vector<64x64xf32>
    %cst = arith.constant dense<0.000000e+00> : vector<32x64xf32>
    %3 = tpu.matmul %1, %2, %cst {dimension_numbers = #tpu.dot_dimension_numbers<[1], [0], [0], [1], [0, 0, 1, 1], [], []>} : vector<32x64xf32>, vector<64x64xf32>, vector<32x64xf32> -> vector<32x64xf32>
    %4 = arith.subf %1, %3 : vector<32x64xf32>
    %5 = arith.mulf %4, %4 : vector<32x64xf32>
    %cst_4 = arith.constant dense<0.000000e+00> : vector<32x64xf32>
    %6 = tpu.matmul %5, %2, %cst_4 {dimension_numbers = #tpu.dot_dimension_numbers<[1], [0], [0], [1], [0, 0, 1, 1], [], []>} : vector<32x64xf32>, vector<64x64xf32>, vector<32x64xf32> -> vector<32x64xf32>
    %cst_5 = arith.constant 9.99999974E-6 : f32
    %7 = vector.broadcast %cst_5 : f32 to vector<32x64xf32>
    %8 = arith.addf %6, %7 : vector<32x64xf32>
    %9 = math.rsqrt %8 : vector<32x64xf32>
    %10 = arith.mulf %4, %9 : vector<32x64xf32>
    %c0_6 = arith.constant 0 : index
    %c0_7 = arith.constant 0 : index
    %11 = vector.load %arg3[%c0_6, %c0_7] : memref<1x64xf32, #tpu.memory_space<vmem>>, vector<1x64xf32>
    %12 = vector.broadcast %11 : vector<1x64xf32> to vector<32x64xf32>
    %13 = arith.mulf %10, %12 : vector<32x64xf32>
    %c0_8 = arith.constant 0 : index
    %c0_9 = arith.constant 0 : index
    %14 = vector.load %arg4[%c0_8, %c0_9] : memref<1x64xf32, #tpu.memory_space<vmem>>, vector<1x64xf32>
    %15 = vector.broadcast %14 : vector<1x64xf32> to vector<32x64xf32>
    %16 = arith.addf %13, %15 : vector<32x64xf32>
    %17 = arith.truncf %16 : vector<32x64xf32> to vector<32x64xbf16>
    %c0_10 = arith.constant 0 : index
    %c0_11 = arith.constant 0 : index
    %18 = vector.load %arg5[%c0_10, %c0_11] : memref<64x256xbf16, #tpu.memory_space<vmem>>, vector<64x256xbf16>
    %cst_12 = arith.constant dense<0.000000e+00> : vector<32x256xf32>
    %19 = tpu.matmul %17, %18, %cst_12 {dimension_numbers = #tpu.dot_dimension_numbers<[1], [0], [0], [1], [0, 0, 1, 1], [], []>} : vector<32x64xbf16>, vector<64x256xbf16>, vector<32x256xf32> -> vector<32x256xf32>
    %cst_13 = arith.constant 5.000000e-01 : f32
    %20 = vector.broadcast %cst_13 : f32 to vector<32x256xf32>
    %21 = arith.mulf %20, %19 : vector<32x256xf32>
    %cst_14 = arith.constant 0.707106769 : f32
    %22 = vector.broadcast %cst_14 : f32 to vector<32x256xf32>
    %23 = arith.mulf %19, %22 : vector<32x256xf32>
    %24 = math.erf %23 : vector<32x256xf32>
    %cst_15 = arith.constant 1.000000e+00 : f32
    %25 = vector.broadcast %cst_15 : f32 to vector<32x256xf32>
    %26 = arith.addf %25, %24 : vector<32x256xf32>
    %27 = arith.mulf %21, %26 : vector<32x256xf32>
    %cst_16 = arith.constant 0.000000e+00 : f32
    %28 = vector.broadcast %cst_16 : f32 to vector<32x32xf32>
    %29 = vector.extract_strided_slice %27 {offsets = [0, 0], sizes = [32, 224], strides = [1, 1]} : vector<32x256xf32> to vector<32x224xf32>
    %30 = tpu.concatenate %28, %29 in 1 : vector<32x32xf32>, vector<32x224xf32> -> vector<32x256xf32>
    %31 = vector.extract_strided_slice %27 {offsets = [0, 32], sizes = [32, 224], strides = [1, 1]} : vector<32x256xf32> to vector<32x224xf32>
    %32 = tpu.concatenate %31, %28 in 1 : vector<32x224xf32>, vector<32x32xf32> -> vector<32x256xf32>
    %cst_17 = arith.constant 0.000000e+00 : f32
    %33 = vector.broadcast %cst_17 : f32 to vector<32x256xf32>
    %c0_18 = arith.constant 0 : index
    %c0_19 = arith.constant 0 : index
    %34 = vector.load %arg6[%c0_18, %c0_19] : memref<27x256xf32, #tpu.memory_space<vmem>>, vector<1x256xf32>
    %35 = vector.broadcast %34 : vector<1x256xf32> to vector<32x256xf32>
    %36 = arith.mulf %35, %30 : vector<32x256xf32>
    %c1 = arith.constant 1 : index
    %c0_20 = arith.constant 0 : index
    %37 = vector.load %arg6[%c1, %c0_20] : memref<27x256xf32, #tpu.memory_space<vmem>>, vector<1x256xf32>
    %38 = vector.broadcast %37 : vector<1x256xf32> to vector<32x256xf32>
    %39 = arith.mulf %38, %27 : vector<32x256xf32>
    %40 = arith.addf %36, %39 : vector<32x256xf32>
    %c2 = arith.constant 2 : index
    %c0_21 = arith.constant 0 : index
    %41 = vector.load %arg6[%c2, %c0_21] : memref<27x256xf32, #tpu.memory_space<vmem>>, vector<1x256xf32>
    %42 = vector.broadcast %41 : vector<1x256xf32> to vector<32x256xf32>
    %43 = arith.mulf %42, %32 : vector<32x256xf32>
    %44 = arith.addf %40, %43 : vector<32x256xf32>
    %c0_22 = arith.constant 0 : index
    %c0_23 = arith.constant 0 : index
    %c0_24 = arith.constant 0 : index
    %45 = vector.load %arg7[%c0_22, %c0_23, %c0_24] : memref<9x32x32xf32, #tpu.memory_space<vmem>>, vector<1x32x32xf32>
    %46 = vector.shape_cast %45 : vector<1x32x32xf32> to vector<32x32xf32>
    %cst_25 = arith.constant dense<0.000000e+00> : vector<32x256xf32>
    %47 = tpu.matmul %46, %44, %cst_25 {dimension_numbers = #tpu.dot_dimension_numbers<[1], [0], [0], [1], [0, 0, 1, 1], [], []>} : vector<32x32xf32>, vector<32x256xf32>, vector<32x256xf32> -> vector<32x256xf32>
    %48 = arith.addf %33, %47 : vector<32x256xf32>
    %c3 = arith.constant 3 : index
    %c0_26 = arith.constant 0 : index
    %49 = vector.load %arg6[%c3, %c0_26] : memref<27x256xf32, #tpu.memory_space<vmem>>, vector<1x256xf32>
    %50 = vector.broadcast %49 : vector<1x256xf32> to vector<32x256xf32>
    %51 = arith.mulf %50, %30 : vector<32x256xf32>
    %c4 = arith.constant 4 : index
    %c0_27 = arith.constant 0 : index
    %52 = vector.load %arg6[%c4, %c0_27] : memref<27x256xf32, #tpu.memory_space<vmem>>, vector<1x256xf32>
    %53 = vector.broadcast %52 : vector<1x256xf32> to vector<32x256xf32>
    %54 = arith.mulf %53, %27 : vector<32x256xf32>
    %55 = arith.addf %51, %54 : vector<32x256xf32>
    %c5 = arith.constant 5 : index
    %c0_28 = arith.constant 0 : index
    %56 = vector.load %arg6[%c5, %c0_28] : memref<27x256xf32, #tpu.memory_space<vmem>>, vector<1x256xf32>
    %57 = vector.broadcast %56 : vector<1x256xf32> to vector<32x256xf32>
    %58 = arith.mulf %57, %32 : vector<32x256xf32>
    %59 = arith.addf %55, %58 : vector<32x256xf32>
    %c1_29 = arith.constant 1 : index
    %c0_30 = arith.constant 0 : index
    %c0_31 = arith.constant 0 : index
    %60 = vector.load %arg7[%c1_29, %c0_30, %c0_31] : memref<9x32x32xf32, #tpu.memory_space<vmem>>, vector<1x32x32xf32>
    %61 = vector.shape_cast %60 : vector<1x32x32xf32> to vector<32x32xf32>
    %cst_32 = arith.constant dense<0.000000e+00> : vector<32x256xf32>
    %62 = tpu.matmul %61, %59, %cst_32 {dimension_numbers = #tpu.dot_dimension_numbers<[1], [0], [0], [1], [0, 0, 1, 1], [], []>} : vector<32x32xf32>, vector<32x256xf32>, vector<32x256xf32> -> vector<32x256xf32>
    %63 = arith.addf %48, %62 : vector<32x256xf32>
    %c6 = arith.constant 6 : index
    %c0_33 = arith.constant 0 : index
    %64 = vector.load %arg6[%c6, %c0_33] : memref<27x256xf32, #tpu.memory_space<vmem>>, vector<1x256xf32>
    %65 = vector.broadcast %64 : vector<1x256xf32> to vector<32x256xf32>
    %66 = arith.mulf %65, %30 : vector<32x256xf32>
    %c7 = arith.constant 7 : index
    %c0_34 = arith.constant 0 : index
    %67 = vector.load %arg6[%c7, %c0_34] : memref<27x256xf32, #tpu.memory_space<vmem>>, vector<1x256xf32>
    %68 = vector.broadcast %67 : vector<1x256xf32> to vector<32x256xf32>
    %69 = arith.mulf %68, %27 : vector<32x256xf32>
    %70 = arith.addf %66, %69 : vector<32x256xf32>
    %c8 = arith.constant 8 : index
    %c0_35 = arith.constant 0 : index
    %71 = vector.load %arg6[%c8, %c0_35] : memref<27x256xf32, #tpu.memory_space<vmem>>, vector<1x256xf32>
    %72 = vector.broadcast %71 : vector<1x256xf32> to vector<32x256xf32>
    %73 = arith.mulf %72, %32 : vector<32x256xf32>
    %74 = arith.addf %70, %73 : vector<32x256xf32>
    %c2_36 = arith.constant 2 : index
    %c0_37 = arith.constant 0 : index
    %c0_38 = arith.constant 0 : index
    %75 = vector.load %arg7[%c2_36, %c0_37, %c0_38] : memref<9x32x32xf32, #tpu.memory_space<vmem>>, vector<1x32x32xf32>
    %76 = vector.shape_cast %75 : vector<1x32x32xf32> to vector<32x32xf32>
    %cst_39 = arith.constant dense<0.000000e+00> : vector<32x256xf32>
    %77 = tpu.matmul %76, %74, %cst_39 {dimension_numbers = #tpu.dot_dimension_numbers<[1], [0], [0], [1], [0, 0, 1, 1], [], []>} : vector<32x32xf32>, vector<32x256xf32>, vector<32x256xf32> -> vector<32x256xf32>
    %78 = arith.addf %63, %77 : vector<32x256xf32>
    %c9 = arith.constant 9 : index
    %c0_40 = arith.constant 0 : index
    %79 = vector.load %arg6[%c9, %c0_40] : memref<27x256xf32, #tpu.memory_space<vmem>>, vector<1x256xf32>
    %80 = vector.broadcast %79 : vector<1x256xf32> to vector<32x256xf32>
    %81 = arith.mulf %80, %30 : vector<32x256xf32>
    %c10 = arith.constant 10 : index
    %c0_41 = arith.constant 0 : index
    %82 = vector.load %arg6[%c10, %c0_41] : memref<27x256xf32, #tpu.memory_space<vmem>>, vector<1x256xf32>
    %83 = vector.broadcast %82 : vector<1x256xf32> to vector<32x256xf32>
    %84 = arith.mulf %83, %27 : vector<32x256xf32>
    %85 = arith.addf %81, %84 : vector<32x256xf32>
    %c11 = arith.constant 11 : index
    %c0_42 = arith.constant 0 : index
    %86 = vector.load %arg6[%c11, %c0_42] : memref<27x256xf32, #tpu.memory_space<vmem>>, vector<1x256xf32>
    %87 = vector.broadcast %86 : vector<1x256xf32> to vector<32x256xf32>
    %88 = arith.mulf %87, %32 : vector<32x256xf32>
    %89 = arith.addf %85, %88 : vector<32x256xf32>
    %c3_43 = arith.constant 3 : index
    %c0_44 = arith.constant 0 : index
    %c0_45 = arith.constant 0 : index
    %90 = vector.load %arg7[%c3_43, %c0_44, %c0_45] : memref<9x32x32xf32, #tpu.memory_space<vmem>>, vector<1x32x32xf32>
    %91 = vector.shape_cast %90 : vector<1x32x32xf32> to vector<32x32xf32>
    %cst_46 = arith.constant dense<0.000000e+00> : vector<32x256xf32>
    %92 = tpu.matmul %91, %89, %cst_46 {dimension_numbers = #tpu.dot_dimension_numbers<[1], [0], [0], [1], [0, 0, 1, 1], [], []>} : vector<32x32xf32>, vector<32x256xf32>, vector<32x256xf32> -> vector<32x256xf32>
    %93 = arith.addf %78, %92 : vector<32x256xf32>
    %c12 = arith.constant 12 : index
    %c0_47 = arith.constant 0 : index
    %94 = vector.load %arg6[%c12, %c0_47] : memref<27x256xf32, #tpu.memory_space<vmem>>, vector<1x256xf32>
    %95 = vector.broadcast %94 : vector<1x256xf32> to vector<32x256xf32>
    %96 = arith.mulf %95, %30 : vector<32x256xf32>
    %c13 = arith.constant 13 : index
    %c0_48 = arith.constant 0 : index
    %97 = vector.load %arg6[%c13, %c0_48] : memref<27x256xf32, #tpu.memory_space<vmem>>, vector<1x256xf32>
    %98 = vector.broadcast %97 : vector<1x256xf32> to vector<32x256xf32>
    %99 = arith.mulf %98, %27 : vector<32x256xf32>
    %100 = arith.addf %96, %99 : vector<32x256xf32>
    %c14 = arith.constant 14 : index
    %c0_49 = arith.constant 0 : index
    %101 = vector.load %arg6[%c14, %c0_49] : memref<27x256xf32, #tpu.memory_space<vmem>>, vector<1x256xf32>
    %102 = vector.broadcast %101 : vector<1x256xf32> to vector<32x256xf32>
    %103 = arith.mulf %102, %32 : vector<32x256xf32>
    %104 = arith.addf %100, %103 : vector<32x256xf32>
    %c4_50 = arith.constant 4 : index
    %c0_51 = arith.constant 0 : index
    %c0_52 = arith.constant 0 : index
    %105 = vector.load %arg7[%c4_50, %c0_51, %c0_52] : memref<9x32x32xf32, #tpu.memory_space<vmem>>, vector<1x32x32xf32>
    %106 = vector.shape_cast %105 : vector<1x32x32xf32> to vector<32x32xf32>
    %cst_53 = arith.constant dense<0.000000e+00> : vector<32x256xf32>
    %107 = tpu.matmul %106, %104, %cst_53 {dimension_numbers = #tpu.dot_dimension_numbers<[1], [0], [0], [1], [0, 0, 1, 1], [], []>} : vector<32x32xf32>, vector<32x256xf32>, vector<32x256xf32> -> vector<32x256xf32>
    %108 = arith.addf %93, %107 : vector<32x256xf32>
    %c15 = arith.constant 15 : index
    %c0_54 = arith.constant 0 : index
    %109 = vector.load %arg6[%c15, %c0_54] : memref<27x256xf32, #tpu.memory_space<vmem>>, vector<1x256xf32>
    %110 = vector.broadcast %109 : vector<1x256xf32> to vector<32x256xf32>
    %111 = arith.mulf %110, %30 : vector<32x256xf32>
    %c16 = arith.constant 16 : index
    %c0_55 = arith.constant 0 : index
    %112 = vector.load %arg6[%c16, %c0_55] : memref<27x256xf32, #tpu.memory_space<vmem>>, vector<1x256xf32>
    %113 = vector.broadcast %112 : vector<1x256xf32> to vector<32x256xf32>
    %114 = arith.mulf %113, %27 : vector<32x256xf32>
    %115 = arith.addf %111, %114 : vector<32x256xf32>
    %c17 = arith.constant 17 : index
    %c0_56 = arith.constant 0 : index
    %116 = vector.load %arg6[%c17, %c0_56] : memref<27x256xf32, #tpu.memory_space<vmem>>, vector<1x256xf32>
    %117 = vector.broadcast %116 : vector<1x256xf32> to vector<32x256xf32>
    %118 = arith.mulf %117, %32 : vector<32x256xf32>
    %119 = arith.addf %115, %118 : vector<32x256xf32>
    %c5_57 = arith.constant 5 : index
    %c0_58 = arith.constant 0 : index
    %c0_59 = arith.constant 0 : index
    %120 = vector.load %arg7[%c5_57, %c0_58, %c0_59] : memref<9x32x32xf32, #tpu.memory_space<vmem>>, vector<1x32x32xf32>
    %121 = vector.shape_cast %120 : vector<1x32x32xf32> to vector<32x32xf32>
    %cst_60 = arith.constant dense<0.000000e+00> : vector<32x256xf32>
    %122 = tpu.matmul %121, %119, %cst_60 {dimension_numbers = #tpu.dot_dimension_numbers<[1], [0], [0], [1], [0, 0, 1, 1], [], []>} : vector<32x32xf32>, vector<32x256xf32>, vector<32x256xf32> -> vector<32x256xf32>
    %123 = arith.addf %108, %122 : vector<32x256xf32>
    %c18 = arith.constant 18 : index
    %c0_61 = arith.constant 0 : index
    %124 = vector.load %arg6[%c18, %c0_61] : memref<27x256xf32, #tpu.memory_space<vmem>>, vector<1x256xf32>
    %125 = vector.broadcast %124 : vector<1x256xf32> to vector<32x256xf32>
    %126 = arith.mulf %125, %30 : vector<32x256xf32>
    %c19 = arith.constant 19 : index
    %c0_62 = arith.constant 0 : index
    %127 = vector.load %arg6[%c19, %c0_62] : memref<27x256xf32, #tpu.memory_space<vmem>>, vector<1x256xf32>
    %128 = vector.broadcast %127 : vector<1x256xf32> to vector<32x256xf32>
    %129 = arith.mulf %128, %27 : vector<32x256xf32>
    %130 = arith.addf %126, %129 : vector<32x256xf32>
    %c20 = arith.constant 20 : index
    %c0_63 = arith.constant 0 : index
    %131 = vector.load %arg6[%c20, %c0_63] : memref<27x256xf32, #tpu.memory_space<vmem>>, vector<1x256xf32>
    %132 = vector.broadcast %131 : vector<1x256xf32> to vector<32x256xf32>
    %133 = arith.mulf %132, %32 : vector<32x256xf32>
    %134 = arith.addf %130, %133 : vector<32x256xf32>
    %c6_64 = arith.constant 6 : index
    %c0_65 = arith.constant 0 : index
    %c0_66 = arith.constant 0 : index
    %135 = vector.load %arg7[%c6_64, %c0_65, %c0_66] : memref<9x32x32xf32, #tpu.memory_space<vmem>>, vector<1x32x32xf32>
    %136 = vector.shape_cast %135 : vector<1x32x32xf32> to vector<32x32xf32>
    %cst_67 = arith.constant dense<0.000000e+00> : vector<32x256xf32>
    %137 = tpu.matmul %136, %134, %cst_67 {dimension_numbers = #tpu.dot_dimension_numbers<[1], [0], [0], [1], [0, 0, 1, 1], [], []>} : vector<32x32xf32>, vector<32x256xf32>, vector<32x256xf32> -> vector<32x256xf32>
    %138 = arith.addf %123, %137 : vector<32x256xf32>
    %c21 = arith.constant 21 : index
    %c0_68 = arith.constant 0 : index
    %139 = vector.load %arg6[%c21, %c0_68] : memref<27x256xf32, #tpu.memory_space<vmem>>, vector<1x256xf32>
    %140 = vector.broadcast %139 : vector<1x256xf32> to vector<32x256xf32>
    %141 = arith.mulf %140, %30 : vector<32x256xf32>
    %c22 = arith.constant 22 : index
    %c0_69 = arith.constant 0 : index
    %142 = vector.load %arg6[%c22, %c0_69] : memref<27x256xf32, #tpu.memory_space<vmem>>, vector<1x256xf32>
    %143 = vector.broadcast %142 : vector<1x256xf32> to vector<32x256xf32>
    %144 = arith.mulf %143, %27 : vector<32x256xf32>
    %145 = arith.addf %141, %144 : vector<32x256xf32>
    %c23 = arith.constant 23 : index
    %c0_70 = arith.constant 0 : index
    %146 = vector.load %arg6[%c23, %c0_70] : memref<27x256xf32, #tpu.memory_space<vmem>>, vector<1x256xf32>
    %147 = vector.broadcast %146 : vector<1x256xf32> to vector<32x256xf32>
    %148 = arith.mulf %147, %32 : vector<32x256xf32>
    %149 = arith.addf %145, %148 : vector<32x256xf32>
    %c7_71 = arith.constant 7 : index
    %c0_72 = arith.constant 0 : index
    %c0_73 = arith.constant 0 : index
    %150 = vector.load %arg7[%c7_71, %c0_72, %c0_73] : memref<9x32x32xf32, #tpu.memory_space<vmem>>, vector<1x32x32xf32>
    %151 = vector.shape_cast %150 : vector<1x32x32xf32> to vector<32x32xf32>
    %cst_74 = arith.constant dense<0.000000e+00> : vector<32x256xf32>
    %152 = tpu.matmul %151, %149, %cst_74 {dimension_numbers = #tpu.dot_dimension_numbers<[1], [0], [0], [1], [0, 0, 1, 1], [], []>} : vector<32x32xf32>, vector<32x256xf32>, vector<32x256xf32> -> vector<32x256xf32>
    %153 = arith.addf %138, %152 : vector<32x256xf32>
    %c24 = arith.constant 24 : index
    %c0_75 = arith.constant 0 : index
    %154 = vector.load %arg6[%c24, %c0_75] : memref<27x256xf32, #tpu.memory_space<vmem>>, vector<1x256xf32>
    %155 = vector.broadcast %154 : vector<1x256xf32> to vector<32x256xf32>
    %156 = arith.mulf %155, %30 : vector<32x256xf32>
    %c25 = arith.constant 25 : index
    %c0_76 = arith.constant 0 : index
    %157 = vector.load %arg6[%c25, %c0_76] : memref<27x256xf32, #tpu.memory_space<vmem>>, vector<1x256xf32>
    %158 = vector.broadcast %157 : vector<1x256xf32> to vector<32x256xf32>
    %159 = arith.mulf %158, %27 : vector<32x256xf32>
    %160 = arith.addf %156, %159 : vector<32x256xf32>
    %c26 = arith.constant 26 : index
    %c0_77 = arith.constant 0 : index
    %161 = vector.load %arg6[%c26, %c0_77] : memref<27x256xf32, #tpu.memory_space<vmem>>, vector<1x256xf32>
    %162 = vector.broadcast %161 : vector<1x256xf32> to vector<32x256xf32>
    %163 = arith.mulf %162, %32 : vector<32x256xf32>
    %164 = arith.addf %160, %163 : vector<32x256xf32>
    %c8_78 = arith.constant 8 : index
    %c0_79 = arith.constant 0 : index
    %c0_80 = arith.constant 0 : index
    %165 = vector.load %arg7[%c8_78, %c0_79, %c0_80] : memref<9x32x32xf32, #tpu.memory_space<vmem>>, vector<1x32x32xf32>
    %166 = vector.shape_cast %165 : vector<1x32x32xf32> to vector<32x32xf32>
    %cst_81 = arith.constant dense<0.000000e+00> : vector<32x256xf32>
    %167 = tpu.matmul %166, %164, %cst_81 {dimension_numbers = #tpu.dot_dimension_numbers<[1], [0], [0], [1], [0, 0, 1, 1], [], []>} : vector<32x32xf32>, vector<32x256xf32>, vector<32x256xf32> -> vector<32x256xf32>
    %168 = arith.addf %153, %167 : vector<32x256xf32>
    %cst_82 = arith.constant 5.000000e-01 : f32
    %169 = vector.broadcast %cst_82 : f32 to vector<32x256xf32>
    %170 = arith.mulf %169, %168 : vector<32x256xf32>
    %cst_83 = arith.constant 0.707106769 : f32
    %171 = vector.broadcast %cst_83 : f32 to vector<32x256xf32>
    %172 = arith.mulf %168, %171 : vector<32x256xf32>
    %173 = math.erf %172 : vector<32x256xf32>
    %cst_84 = arith.constant 1.000000e+00 : f32
    %174 = vector.broadcast %cst_84 : f32 to vector<32x256xf32>
    %175 = arith.addf %174, %173 : vector<32x256xf32>
    %176 = arith.mulf %170, %175 : vector<32x256xf32>
    %177 = arith.truncf %176 : vector<32x256xf32> to vector<32x256xbf16>
    %c0_85 = arith.constant 0 : index
    %c0_86 = arith.constant 0 : index
    %178 = vector.load %arg8[%c0_85, %c0_86] : memref<256x64xbf16, #tpu.memory_space<vmem>>, vector<256x64xbf16>
    %cst_87 = arith.constant dense<0.000000e+00> : vector<32x64xf32>
    %179 = tpu.matmul %177, %178, %cst_87 {dimension_numbers = #tpu.dot_dimension_numbers<[1], [0], [0], [1], [0, 0, 1, 1], [], []>} : vector<32x256xbf16>, vector<256x64xbf16>, vector<32x64xf32> -> vector<32x64xf32>
    %c0_88 = arith.constant 0 : index
    %c0_89 = arith.constant 0 : index
    %c0_90 = arith.constant 0 : index
    %180 = vector.load %arg9[%c0_88, %c0_89, %c0_90] : memref<1x32x64xf32, #tpu.memory_space<vmem>>, vector<1x32x64xf32>
    %181 = vector.shape_cast %180 : vector<1x32x64xf32> to vector<32x64xf32>
    %182 = vector.shape_cast %179 : vector<32x64xf32> to vector<1x32x64xf32>
    tpu.vector_store %arg9[%c0_88, %c0_89, %c0_90], %182 {strides = array<i32>} : memref<1x32x64xf32, #tpu.memory_space<vmem>>, vector<1x32x64xf32>,
    return
  }
  func.func @transform_0(%arg0: i32) -> (i32, i32, i32) {
    %c0_i32 = arith.constant 0 : i32
    %c0_i32_0 = arith.constant 0 : i32
    %c0_i32_1 = arith.constant 0 : i32
    return %arg0, %c0_i32, %c0_i32_0 : i32, i32, i32
  }
  func.func @transform_1(%arg0: i32) -> (i32, i32) {
    %c0_i32 = arith.constant 0 : i32
    %c0_i32_0 = arith.constant 0 : i32
    %c0_i32_1 = arith.constant 0 : i32
    return %c0_i32, %c0_i32_0 : i32, i32
  }
  func.func @transform_2(%arg0: i32) -> (i32, i32) {
    %c0_i32 = arith.constant 0 : i32
    %c0_i32_0 = arith.constant 0 : i32
    %c0_i32_1 = arith.constant 0 : i32
    return %c0_i32, %c0_i32_0 : i32, i32
  }
  func.func @transform_3(%arg0: i32) -> (i32, i32) {
    %c0_i32 = arith.constant 0 : i32
    %c0_i32_0 = arith.constant 0 : i32
    %c0_i32_1 = arith.constant 0 : i32
    return %c0_i32, %c0_i32_0 : i32, i32
  }
  func.func @transform_4(%arg0: i32) -> (i32, i32) {
    %c0_i32 = arith.constant 0 : i32
    %c0_i32_0 = arith.constant 0 : i32
    %c0_i32_1 = arith.constant 0 : i32
    return %c0_i32, %c0_i32_0 : i32, i32
  }
  func.func @transform_5(%arg0: i32) -> (i32, i32) {
    %c0_i32 = arith.constant 0 : i32
    %c0_i32_0 = arith.constant 0 : i32
    %c0_i32_1 = arith.constant 0 : i32
    return %c0_i32, %c0_i32_0 : i32, i32
  }
  func.func @transform_6(%arg0: i32) -> (i32, i32, i32) {
    %c0_i32 = arith.constant 0 : i32
    %c0_i32_0 = arith.constant 0 : i32
    %c0_i32_1 = arith.constant 0 : i32
    %c0_i32_2 = arith.constant 0 : i32
    return %c0_i32, %c0_i32_0, %c0_i32_1 : i32, i32, i32
  }
  func.func @transform_7(%arg0: i32) -> (i32, i32) {
    %c0_i32 = arith.constant 0 : i32
    %c0_i32_0 = arith.constant 0 : i32
    %c0_i32_1 = arith.constant 0 : i32
    return %c0_i32, %c0_i32_0 : i32, i32
  }
  func.func @transform_8(%arg0: i32) -> (i32, i32, i32) {
    %c0_i32 = arith.constant 0 : i32
    %c0_i32_0 = arith.constant 0 : i32
    %c0_i32_1 = arith.constant 0 : i32
    return %arg0, %c0_i32, %c0_i32_0 : i32, i32, i32
  }
}

</mosaic_0001>

<llo_original>
// kernel: tile.17
$region0: #{tile.17}
  #allocation0 [shape = 's32[1]{0}', space=sflag, size = 0x4, scoped, tag = 'scoped memory for tile.17']
  %s0 = inlined_call_operand.vmem [shape: f32[8], index: 0, kind: input, shape index: {}]
  %s1 = inlined_call_operand.vmem [shape: f32[8,8], index: 1, kind: output, shape index: {}]
  // Predicated region
  $region2: #{tile.17} parent=0 // pred_check
    _
  $region3: #{tile.17} parent=0 // pred_check_branch
    %3 = sbr.rel (0) target = $region5
  $region4: #{tile.17} parent=0 // pred_region
    _
  $region5: #{tile.17} parent=0 // pred_fallthru
    _
  %v4 = vld [vmem:[%s0] ss:$0 sm:$0xff]
  %5 = vst [vmem:[%s1] sm:$0xff] %v4

// kernel: tile.18
$region0: #{tile.18}
  %s0 = inlined_call_operand.vmem [shape: f32[8,8], index: 0, kind: input, shape index: {}]
  %s1 = inlined_call_operand.vmem [shape: f32[1,64], index: 1, kind: output, shape index: {}]
  $region1: #{tile.18} parent=0
    #allocation0 [shape = 'u8[4096]{0}', space=vmem, size = 0x1000, scoped, tag = 'scoped mem for output reshape']
    %v2 = vld [vmem:[%s0] sm:$0x1]
    %vm3 = vcmask 64512
    %4 = vst.msk [vmem:[#allocation0] sm:$0x1] %vm3, %v2
    %s5 = scalar_lea.vmem %s0, 7
    %v6 = vld [vmem:[%s5] sm:$0x1]
    %7 = vrot.lane.b32.xlu0 %v6, 56
    %v8 = vpop.permute.xlu0 %7
    %vm9 = vcmask 523712
    %10 = vst.msk [vmem:[#allocation0] sm:$0x1] %vm9, %v8
    %s11 = scalar_lea.vmem %s0, 6
    %v12 = vld [vmem:[%s11] sm:$0x1]
    %13 = vrot.lane.b32.xlu0 %v12, 48
    %v14 = vpop.permute.xlu0 %13
    %vm15 = vcmask 458112
    %16 = vst.msk [vmem:[#allocation0] sm:$0x1] %vm15, %v14
    %s17 = scalar_lea.vmem %s0, 5
    %v18 = vld [vmem:[%s17] sm:$0x1]
    %19 = vrot.lane.b32.xlu0 %v18, 40
    %v20 = vpop.permute.xlu0 %19
    %vm21 = vcmask 392512
    %22 = vst.msk [vmem:[#allocation0] sm:$0x1] %vm21, %v20
    %s23 = scalar_lea.vmem %s0, 4
    %v24 = vld [vmem:[%s23] sm:$0x1]
    %25 = vrot.lane.b32.xlu0 %v24, 32
    %v26 = vpop.permute.xlu0 %25
    %vm27 = vcmask 326912
    %28 = vst.msk [vmem:[#allocation0] sm:$0x1] %vm27, %v26
    %s29 = scalar_lea.vmem %s0, 3
    %v30 = vld [vmem:[%s29] sm:$0x1]
    %31 = vrot.lane.b32.xlu0 %v30, 24
    %v32 = vpop.permute.xlu0 %31
    %vm33 = vcmask 261312
    %34 = vst.msk [vmem:[#allocation0] sm:$0x1] %vm33, %v32
    %s35 = scalar_lea.vmem %s0, 2
    %v36 = vld [vmem:[%s35] sm:$0x1]
    %37 = vrot.lane.b32.xlu0 %v36, 16
    %v38 = vpop.permute.xlu0 %37
    %vm39 = vcmask 195712
    %40 = vst.msk [vmem:[#allocation0] sm:$0x1] %vm39, %v38
    %s41 = scalar_lea.vmem %s0, 1
    %v42 = vld [vmem:[%s41] sm:$0x1]
    %43 = vrot.lane.b32.xlu0 %v42, 8
    %v44 = vpop.permute.xlu0 %43
    %vm45 = vcmask 130112
    %46 = vst.msk [vmem:[#allocation0] sm:$0x1] %vm45, %v44
    %s48 = sshllo.u32 0, 1
    %v50 = vld [vmem:[#allocation0] sm:%s48]
    %s51 = sshllo.u32 0, 1
    %52 = vst [vmem:[%s1] sm:%s51] %v50

// kernel: tile.27
$region0: #{tile.27}
  %s0 = inlined_call_operand.vmem [shape: f32[27,8,32], index: 0, kind: input, shape index: {}]
  %s1 = inlined_call_operand.vmem [shape: f32[27,256], index: 1, kind: output, shape index: {}]
  %v2 = vld [vmem:[%s0] ss:$4 sm:$0xff]
  %vm3 = vcmask 261120
  %4 = vst.msk [vmem:[%s1] ss:$8 sm:$0x3] %vm3, %v2
  %s5 = scalar_lea.vmem %s1, 4294967281
  %6 = vst.msk [vmem:[%s5] ss:$8 sm:$0xc] %vm3, %v2
  %s7 = scalar_lea.vmem %s1, 4294967266
  %8 = vst.msk [vmem:[%s7] ss:$8 sm:$0x30] %vm3, %v2
  %s9 = scalar_lea.vmem %s1, 4294967251
  %10 = vst.msk [vmem:[%s9] ss:$8 sm:$0xc0] %vm3, %v2
  %s11 = scalar_lea.vmem %s0, 32
  %v12 = vld [vmem:[%s11] ss:$4 sm:$0xff]
  %vm13 = vcmask 261120
  %s14 = scalar_lea.vmem %s1, 4
  %15 = vst.msk [vmem:[%s14] ss:$8 sm:$0x3] %vm13, %v12
  %s16 = scalar_lea.vmem %s1, 4294967285
  %17 = vst.msk [vmem:[%s16] ss:$8 sm:$0xc] %vm13, %v12
  %s18 = scalar_lea.vmem %s1, 4294967270
  %19 = vst.msk [vmem:[%s18] ss:$8 sm:$0x30] %vm13, %v12
  %s20 = scalar_lea.vmem %s1, 4294967255
  %21 = vst.msk [vmem:[%s20] ss:$8 sm:$0xc0] %vm13, %v12
  %s22 = scalar_lea.vmem %s0, 64
  %v23 = vld [vmem:[%s22] ss:$4 sm:$0xff]
  %vm24 = vcmask 261120
  %s25 = scalar_lea.vmem %s1, 16
  %26 = vst.msk [vmem:[%s25] ss:$8 sm:$0x3] %vm24, %v23
  %s27 = scalar_lea.vmem %s1, 1
  %28 = vst.msk [vmem:[%s27] ss:$8 sm:$0xc] %vm24, %v23
  %s29 = scalar_lea.vmem %s1, 4294967282
  %30 = vst.msk [vmem:[%s29] ss:$8 sm:$0x30] %vm24, %v23
  %s31 = scalar_lea.vmem %s1, 4294967267
  %32 = vst.msk [vmem:[%s31] ss:$8 sm:$0xc0] %vm24, %v23
  %s33 = scalar_lea.vmem %s0, 96
  %v34 = vld [vmem:[%s33] ss:$4 sm:$0xff]
  %vm35 = vcmask 261120
  %s36 = scalar_lea.vmem %s1, 20
  %37 = vst.msk [vmem:[%s36] ss:$8 sm:$0x3] %vm35, %v34
  %s38 = scalar_lea.vmem %s1, 5
  %39 = vst.msk [vmem:[%s38] ss:$8 sm:$0xc] %vm35, %v34
  %s40 = scalar_lea.vmem %s1, 4294967286
  %41 = vst.msk [vmem:[%s40] ss:$8 sm:$0x30] %vm35, %v34
  %s42 = scalar_lea.vmem %s1, 4294967271
  %43 = vst.msk [vmem:[%s42] ss:$8 sm:$0xc0] %vm35, %v34
  %s44 = scalar_lea.vmem %s0, 128
  %v45 = vld [vmem:[%s44] ss:$4 sm:$0xff]
  %vm46 = vcmask 261120
  %s47 = scalar_lea.vmem %s1, 32
  %48 = vst.msk [vmem:[%s47] ss:$8 sm:$0x3] %vm46, %v45
  %s49 = scalar_lea.vmem %s1, 17
  %50 = vst.msk [vmem:[%s49] ss:$8 sm:$0xc] %vm46, %v45
  %s51 = scalar_lea.vmem %s1, 2
  %52 = vst.msk [vmem:[%s51] ss:$8 sm:$0x30] %vm46, %v45
  %s53 = scalar_lea.vmem %s1, 4294967283
  %54 = vst.msk [vmem:[%s53] ss:$8 sm:$0xc0] %vm46, %v45
  %s55 = scalar_lea.vmem %s0, 160
  %v56 = vld [vmem:[%s55] ss:$4 sm:$0xff]
  %vm57 = vcmask 261120
  %s58 = scalar_lea.vmem %s1, 36
  %59 = vst.msk [vmem:[%s58] ss:$8 sm:$0x3] %vm57, %v56
  %s60 = scalar_lea.vmem %s1, 21
  %61 = vst.msk [vmem:[%s60] ss:$8 sm:$0xc] %vm57, %v56
  %s62 = scalar_lea.vmem %s1, 6
  %63 = vst.msk [vmem:[%s62] ss:$8 sm:$0x30] %vm57, %v56
  %s64 = scalar_lea.vmem %s1, 4294967287
  %65 = vst.msk [vmem:[%s64] ss:$8 sm:$0xc0] %vm57, %v56
  %s66 = scalar_lea.vmem %s0, 192
  %v67 = vld [vmem:[%s66] ss:$4 sm:$0x3f]
  %vm68 = vcmask 261120
  %s69 = scalar_lea.vmem %s1, 48
  %70 = vst.msk [vmem:[%s69] ss:$8 sm:$0x3] %vm68, %v67
  %s71 = scalar_lea.vmem %s1, 33
  %72 = vst.msk [vmem:[%s71] ss:$8 sm:$0xc] %vm68, %v67
  %s73 = scalar_lea.vmem %s1, 18
  %74 = vst.msk [vmem:[%s73] ss:$8 sm:$0x30] %vm68, %v67
  %s75 = scalar_lea.vmem %s0, 3
  %v76 = vld [vmem:[%s75] ss:$8 sm:$0xf]
  %s77 = scalar_lea.vmem %s0, 3
  %v78 = vld [vmem:[%s77] ss:$8 sm:$0xf0]
  %vm79 = vcmask 1047556
  %v80 = vsel %vm79, %v78, %v76
  %81 = vrot.lane.b32.xlu0 %v80, 96
  %v82 = vpop.permute.xlu0 %81
  %vm83 = vcmask 1048320
  %84 = vst.msk [vmem:[%s1] sm:$0xff] %vm83, %v82
  %s85 = scalar_lea.vmem %s0, 131
  %v86 = vld [vmem:[%s85] ss:$8 sm:$0xf]
  %s87 = scalar_lea.vmem %s0, 131
  %v88 = vld [vmem:[%s87] ss:$8 sm:$0xf0]
  %vm89 = vcmask 1047556
  %v90 = vsel %vm89, %v88, %v86
  %91 = vrot.lane.b32.xlu0 %v90, 96
  %v92 = vpop.permute.xlu0 %91
  %vm93 = vcmask 1048320
  %s94 = scalar_lea.vmem %s1, 32
  %95 = vst.msk [vmem:[%s94] sm:$0xff] %vm93, %v92
  %s96 = scalar_lea.vmem %s0, 7
  %v97 = vld [vmem:[%s96] ss:$8 sm:$0xf]
  %s98 = scalar_lea.vmem %s0, 7
  %v99 = vld [vmem:[%s98] ss:$8 sm:$0xf0]
  %vm100 = vcmask 1047556
  %v101 = vsel %vm100, %v99, %v97
  %102 = vrot.lane.b32.xlu0 %v101, 96
  %v103 = vpop.permute.xlu0 %102
  %vm104 = vcmask 1048320
  %s105 = scalar_lea.vmem %s1, 8
  %106 = vst.msk [vmem:[%s105] sm:$0xff] %vm104, %v103
  %s107 = scalar_lea.vmem %s0, 135
  %v108 = vld [vmem:[%s107] ss:$8 sm:$0xf]
  %s109 = scalar_lea.vmem %s0, 135
  %v110 = vld [vmem:[%s109] ss:$8 sm:$0xf0]
  %vm111 = vcmask 1047556
  %v112 = vsel %vm111, %v110, %v108
  %113 = vrot.lane.b32.xlu0 %v112, 96
  %v114 = vpop.permute.xlu0 %113
  %vm115 = vcmask 1048320
  %s116 = scalar_lea.vmem %s1, 40
  %117 = vst.msk [vmem:[%s116] sm:$0xff] %vm115, %v114
  %s118 = scalar_lea.vmem %s0, 67
  %v119 = vld [vmem:[%s118] ss:$8 sm:$0xf]
  %s120 = scalar_lea.vmem %s0, 67
  %v121 = vld [vmem:[%s120] ss:$8 sm:$0xf0]
  %vm122 = vcmask 1047556
  %v123 = vsel %vm122, %v121, %v119
  %124 = vrot.lane.b32.xlu0 %v123, 96
  %v125 = vpop.permute.xlu0 %124
  %vm126 = vcmask 1048320
  %s127 = scalar_lea.vmem %s1, 16
  %128 = vst.msk [vmem:[%s127] sm:$0xff] %vm126, %v125
  %s129 = scalar_lea.vmem %s0, 195
  %v130 = vld [vmem:[%s129] ss:$8 sm:$0x7]
  %s131 = scalar_lea.vmem %s0, 47
  %v132 = vld [vmem:[%s131] ss:$8 sm:$0x78]
  %vm133 = vcmask 1046531
  %v134 = vsel %vm133, %v132, %v130
  %s135 = scalar_lea.vmem %s0, 96
  %v136 = vld [vmem:[%s135] sm:$0x80]
  %vm137 = vcmask 1047559
  %v138 = vsel %vm137, %v136, %v134
  %139 = vrot.lane.b32.xlu0 %v138, 96
  %v140 = vpop.permute.xlu0 %139
  %vm141 = vcmask 1048320
  %s142 = scalar_lea.vmem %s1, 48
  %143 = vst.msk [vmem:[%s142] sm:$0x7] %vm141, %v140
  %s144 = scalar_lea.vmem %s1, 21
  %145 = vst.msk [vmem:[%s144] sm:$0xf8] %vm141, %v140
  %s146 = scalar_lea.vmem %s0, 199
  %v147 = vld [vmem:[%s146] ss:$8 sm:$0x7]
  %s148 = scalar_lea.vmem %s0, 87
  %v149 = vld [vmem:[%s148] ss:$8 sm:$0x38]
  %vm150 = vcmask 1045507
  %v151 = vsel %vm150, %v149, %v147
  %152 = vrot.lane.b32.xlu0 %v151, 96
  %v153 = vpop.permute.xlu0 %152
  %vm154 = vcmask 1048320
  %s155 = scalar_lea.vmem %s1, 56
  %156 = vst.msk [vmem:[%s155] sm:$0x7] %vm154, %v153
  %s157 = scalar_lea.vmem %s1, 26
  %158 = vst.msk [vmem:[%s157] sm:$0x38] %vm154, %v153
  %s159 = scalar_lea.vmem %s0, 2
  %v160 = vld [vmem:[%s159] ss:$8 sm:$0xf]
  %s161 = scalar_lea.vmem %s0, 2
  %v162 = vld [vmem:[%s161] ss:$8 sm:$0xf0]
  %vm163 = vcmask 1047556
  %v164 = vsel %vm163, %v162, %v160
  %165 = vrot.lane.b32.xlu0 %v164, 64
  %v166 = vpop.permute.xlu0 %165
  %vm167 = vcmask 785920
  %168 = vst.msk [vmem:[%s1] sm:$0xff] %vm167, %v166
  %s169 = scalar_lea.vmem %s0, 130
  %v170 = vld [vmem:[%s169] ss:$8 sm:$0xf]
  %s171 = scalar_lea.vmem %s0, 130
  %v172 = vld [vmem:[%s171] ss:$8 sm:$0xf0]
  %vm173 = vcmask 1047556
  %v174 = vsel %vm173, %v172, %v170
  %175 = vrot.lane.b32.xlu0 %v174, 64
  %v176 = vpop.permute.xlu0 %175
  %vm177 = vcmask 785920
  %s178 = scalar_lea.vmem %s1, 32
  %179 = vst.msk [vmem:[%s178] sm:$0xff] %vm177, %v176
  %s180 = scalar_lea.vmem %s0, 6
  %v181 = vld [vmem:[%s180] ss:$8 sm:$0xf]
  %s182 = scalar_lea.vmem %s0, 6
  %v183 = vld [vmem:[%s182] ss:$8 sm:$0xf0]
  %vm184 = vcmask 1047556
  %v185 = vsel %vm184, %v183, %v181
  %186 = vrot.lane.b32.xlu0 %v185, 64
  %v187 = vpop.permute.xlu0 %186
  %vm188 = vcmask 785920
  %s189 = scalar_lea.vmem %s1, 8
  %190 = vst.msk [vmem:[%s189] sm:$0xff] %vm188, %v187
  %s191 = scalar_lea.vmem %s0, 134
  %v192 = vld [vmem:[%s191] ss:$8 sm:$0xf]
  %s193 = scalar_lea.vmem %s0, 134
  %v194 = vld [vmem:[%s193] ss:$8 sm:$0xf0]
  %vm195 = vcmask 1047556
  %v196 = vsel %vm195, %v194, %v192
  %197 = vrot.lane.b32.xlu0 %v196, 64
  %v198 = vpop.permute.xlu0 %197
  %vm199 = vcmask 785920
  %s200 = scalar_lea.vmem %s1, 40
  %201 = vst.msk [vmem:[%s200] sm:$0xff] %vm199, %v198
  %s202 = scalar_lea.vmem %s0, 66
  %v203 = vld [vmem:[%s202] ss:$8 sm:$0xf]
  %s204 = scalar_lea.vmem %s0, 66
  %v205 = vld [vmem:[%s204] ss:$8 sm:$0xf0]
  %vm206 = vcmask 1047556
  %v207 = vsel %vm206, %v205, %v203
  %208 = vrot.lane.b32.xlu0 %v207, 64
  %v209 = vpop.permute.xlu0 %208
  %vm210 = vcmask 785920
  %s211 = scalar_lea.vmem %s1, 16
  %212 = vst.msk [vmem:[%s211] sm:$0xff] %vm210, %v209
  %s213 = scalar_lea.vmem %s0, 194
  %v214 = vld [vmem:[%s213] ss:$8 sm:$0x7]
  %s215 = scalar_lea.vmem %s0, 46
  %v216 = vld [vmem:[%s215] ss:$8 sm:$0x78]
  %vm217 = vcmask 1046531
  %v218 = vsel %vm217, %v216, %v214
  %s219 = scalar_lea.vmem %s0, 95
  %v220 = vld [vmem:[%s219] sm:$0x80]
  %vm221 = vcmask 1047559
  %v222 = vsel %vm221, %v220, %v218
  %223 = vrot.lane.b32.xlu0 %v222, 64
  %v224 = vpop.permute.xlu0 %223
  %vm225 = vcmask 785920
  %s226 = scalar_lea.vmem %s1, 48
  %227 = vst.msk [vmem:[%s226] sm:$0x7] %vm225, %v224
  %s228 = scalar_lea.vmem %s1, 21
  %229 = vst.msk [vmem:[%s228] sm:$0xf8] %vm225, %v224
  %s230 = scalar_lea.vmem %s0, 198
  %v231 = vld [vmem:[%s230] ss:$8 sm:$0x7]
  %s232 = scalar_lea.vmem %s0, 86
  %v233 = vld [vmem:[%s232] ss:$8 sm:$0x38]
  %vm234 = vcmask 1045507
  %v235 = vsel %vm234, %v233, %v231
  %236 = vrot.lane.b32.xlu0 %v235, 64
  %v237 = vpop.permute.xlu0 %236
  %vm238 = vcmask 785920
  %s239 = scalar_lea.vmem %s1, 56
  %240 = vst.msk [vmem:[%s239] sm:$0x7] %vm238, %v237
  %s241 = scalar_lea.vmem %s1, 26
  %242 = vst.msk [vmem:[%s241] sm:$0x38] %vm238, %v237
  %s243 = scalar_lea.vmem %s0, 1
  %v244 = vld [vmem:[%s243] ss:$8 sm:$0xf]
  %s245 = scalar_lea.vmem %s0, 1
  %v246 = vld [vmem:[%s245] ss:$8 sm:$0xf0]
  %vm247 = vcmask 1047556
  %v248 = vsel %vm247, %v246, %v244
  %249 = vrot.lane.b32.xlu0 %v248, 32
  %v250 = vpop.permute.xlu0 %249
  %vm251 = vcmask 523520
  %252 = vst.msk [vmem:[%s1] sm:$0xff] %vm251, %v250
  %s253 = scalar_lea.vmem %s0, 129
  %v254 = vld [vmem:[%s253] ss:$8 sm:$0xf]
  %s255 = scalar_lea.vmem %s0, 129
  %v256 = vld [vmem:[%s255] ss:$8 sm:$0xf0]
  %vm257 = vcmask 1047556
  %v258 = vsel %vm257, %v256, %v254
  %259 = vrot.lane.b32.xlu0 %v258, 32
  %v260 = vpop.permute.xlu0 %259
  %vm261 = vcmask 523520
  %s262 = scalar_lea.vmem %s1, 32
  %263 = vst.msk [vmem:[%s262] sm:$0xff] %vm261, %v260
  %s264 = scalar_lea.vmem %s0, 5
  %v265 = vld [vmem:[%s264] ss:$8 sm:$0xf]
  %s266 = scalar_lea.vmem %s0, 5
  %v267 = vld [vmem:[%s266] ss:$8 sm:$0xf0]
  %vm268 = vcmask 1047556
  %v269 = vsel %vm268, %v267, %v265
  %270 = vrot.lane.b32.xlu0 %v269, 32
  %v271 = vpop.permute.xlu0 %270
  %vm272 = vcmask 523520
  %s273 = scalar_lea.vmem %s1, 8
  %274 = vst.msk [vmem:[%s273] sm:$0xff] %vm272, %v271
  %s275 = scalar_lea.vmem %s0, 133
  %v276 = vld [vmem:[%s275] ss:$8 sm:$0xf]
  %s277 = scalar_lea.vmem %s0, 133
  %v278 = vld [vmem:[%s277] ss:$8 sm:$0xf0]
  %vm279 = vcmask 1047556
  %v280 = vsel %vm279, %v278, %v276
  %281 = vrot.lane.b32.xlu0 %v280, 32
  %v282 = vpop.permute.xlu0 %281
  %vm283 = vcmask 523520
  %s284 = scalar_lea.vmem %s1, 40
  %285 = vst.msk [vmem:[%s284] sm:$0xff] %vm283, %v282
  %s286 = scalar_lea.vmem %s0, 65
  %v287 = vld [vmem:[%s286] ss:$8 sm:$0xf]
  %s288 = scalar_lea.vmem %s0, 65
  %v289 = vld [vmem:[%s288] ss:$8 sm:$0xf0]
  %vm290 = vcmask 1047556
  %v291 = vsel %vm290, %v289, %v287
  %292 = vrot.lane.b32.xlu0 %v291, 32
  %v293 = vpop.permute.xlu0 %292
  %vm294 = vcmask 523520
  %s295 = scalar_lea.vmem %s1, 16
  %296 = vst.msk [vmem:[%s295] sm:$0xff] %vm294, %v293
  %s297 = scalar_lea.vmem %s0, 193
  %v298 = vld [vmem:[%s297] ss:$8 sm:$0x7]
  %s299 = scalar_lea.vmem %s0, 45
  %v300 = vld [vmem:[%s299] ss:$8 sm:$0x78]
  %vm301 = vcmask 1046531
  %v302 = vsel %vm301, %v300, %v298
  %s303 = scalar_lea.vmem %s0, 94
  %v304 = vld [vmem:[%s303] sm:$0x80]
  %vm305 = vcmask 1047559
  %v306 = vsel %vm305, %v304, %v302
  %307 = vrot.lane.b32.xlu0 %v306, 32
  %v308 = vpop.permute.xlu0 %307
  %vm309 = vcmask 523520
  %s310 = scalar_lea.vmem %s1, 48
  %311 = vst.msk [vmem:[%s310] sm:$0x7] %vm309, %v308
  %s312 = scalar_lea.vmem %s1, 21
  %313 = vst.msk [vmem:[%s312] sm:$0xf8] %vm309, %v308
  %s314 = scalar_lea.vmem %s0, 197
  %v315 = vld [vmem:[%s314] ss:$8 sm:$0x7]
  %s316 = scalar_lea.vmem %s0, 85
  %v317 = vld [vmem:[%s316] ss:$8 sm:$0x38]
  %vm318 = vcmask 1045507
  %v319 = vsel %vm318, %v317, %v315
  %320 = vrot.lane.b32.xlu0 %v319, 32
  %v321 = vpop.permute.xlu0 %320
  %vm322 = vcmask 523520
  %s323 = scalar_lea.vmem %s1, 56
  %324 = vst.msk [vmem:[%s323] sm:$0x7] %vm322, %v321
  %s325 = scalar_lea.vmem %s1, 26
  %326 = vst.msk [vmem:[%s325] sm:$0x38] %vm322, %v321

// kernel: prenorm_feedforward_pallas.1
$region0: #{prenorm_feedforward_pallas.1}
  #allocation0 [shape = 'u32[]', space=smem, size = 0x4, offset = 0x4, fixed_abs, tag = 'smem constant byte address 0x4 - core index']
  #allocation1 [shape = 'u32[144,128]{1,0:T(1,128)}', space=vmem, size = 0x12000, scoped, tag = 'internal scratch']
  %s0 = inlined_call_operand.vmem [shape: f32[2,32,64], index: 0, kind: input, shape index: {}]
  %s1 = inlined_call_operand.vmem [shape: f32[64,64], index: 1, kind: input, shape index: {}]
  %s2 = inlined_call_operand.vmem [shape: f32[1,64], index: 2, kind: input, shape index: {}]
  %s3 = inlined_call_operand.vmem [shape: f32[1,64], index: 3, kind: input, shape index: {}]
  %s4 = inlined_call_operand.vmem [shape: bf16[64,256], index: 4, kind: input, shape index: {}]
  %s5 = inlined_call_operand.vmem [shape: f32[27,256], index: 5, kind: input, shape index: {}]
  %s6 = inlined_call_operand.vmem [shape: f32[9,32,32], index: 6, kind: input, shape index: {}]
  %s7 = inlined_call_operand.vmem [shape: bf16[256,64], index: 7, kind: input, shape index: {}]
  %s8 = inlined_call_operand.vmem [shape: f32[2,32,64], index: 8, kind: output, shape index: {}]
  %s9 = sld [smem:[#allocation0]]
  $region65: #{prenorm_feedforward_pallas.1} parent=0
    _
  %s11 = ssub.s32 1, %s9
  %s12 = scalar_select 0, %s11, %s9
  loop: start=0, step=1, limit=4
  $region2: #{prenorm_feedforward_pallas.1} parent=0 // loop_pre_header
    _
  $region3: #{prenorm_feedforward_pallas.1} parent=0 // loop_header
    %s14 = sphi 0, %s18
    %p15 = scmp.ge.s32.totalorder %s14, 4
    %s24 = sphi 0, %s26
    %s27 = sphi 0, %s24
    %s28 = sphi 0, %s27
    %s44 = sphi 0, %s28
    %s48 = sphi 0, %s48
    %s50 = sphi 0, %s48
    %s51 = sphi 0, %s50
    %s65 = sphi 0, %s51
    %s69 = sphi 0, %s69
    %s71 = sphi 0, %s69
    %s72 = sphi 0, %s71
    %s86 = sphi 0, %s72
    %s90 = sphi 0, %s90
    %s92 = sphi 0, %s90
    %s93 = sphi 0, %s92
    %s107 = sphi 0, %s93
    %s111 = sphi 0, %s111
    %s113 = sphi 0, %s111
    %s114 = sphi 0, %s113
    %s128 = sphi 0, %s114
    %s132 = sphi 0, %s132
    %s134 = sphi 0, %s132
    %s135 = sphi 0, %s134
    %s149 = sphi 0, %s135
    %s153 = sphi 0, %s153
    %s155 = sphi 0, %s153
    %s156 = sphi 0, %s155
    %s170 = sphi 0, %s156
    %s174 = sphi 0, %s174
    %s176 = sphi 0, %s174
    %s177 = sphi 0, %s176
    %s191 = sphi 0, %s177
    %s197 = sphi 0, %s199
    %s200 = sphi 0, %s197
    %s201 = sphi 0, %s200
    %s217 = sphi 0, %s201
  $region4: #{prenorm_feedforward_pallas.1} parent=0 // loop_header_branch
    %17 = sbr.rel (%p15) target = $region8
  $region5: #{prenorm_feedforward_pallas.1} parent=0 // loop_body
    %s19 = ssub.s32 %s14, 1
    %s20 = ssub.s32 %s14, 2
    %s21 = sadd.s32 %s14, 1
    %s22 = ssub.s32 %s14, %s21
    %p23 = scmp.eq.s32.totalorder %s22, 0
    %s25 = sadd.s32 %s24, 1
    %s26 = scalar_select %p23, %s24, %s25
    %p29 = pneg %p23
    %p30 = scmp.eq.s32.totalorder %s14, 1
    %p31 = por %p29, %p30
    %p32 = scmp.ne.s32.totalorder %s24, %s27
    %p33 = scmp.eq.s32.totalorder %s14, 0
    %p34 = por %p32, %p33
    %p35 = scmp.ne.s32.totalorder %s24, %s27
    %p36 = scmp.eq.s32.totalorder %s19, 1
    %p37 = por %p35, %p36
    %p38 = scmp.ne.s32.totalorder %s27, %s28
    %p39 = scmp.eq.s32.totalorder %s19, 0
    %p40 = por %p38, %p39
    %p41 = scmp.ne.s32.totalorder %s27, %s28
    %p42 = scmp.eq.s32.totalorder %s20, 1
    %p43 = por %p41, %p42
    %p45 = scmp.ne.s32.totalorder %s28, %s44
    %p46 = scmp.eq.s32.totalorder %s20, 0
    %p47 = por %p45, %p46
    %s49 = sadd.s32 %s48, 1
    %p52 = scmp.eq.s32.totalorder %s14, 1
    %p53 = scmp.ne.s32.totalorder %s48, %s50
    %p54 = scmp.eq.s32.totalorder %s14, 0
    %p55 = por %p53, %p54
    %p56 = scmp.ne.s32.totalorder %s48, %s50
    %p57 = scmp.eq.s32.totalorder %s19, 1
    %p58 = por %p56, %p57
    %p59 = scmp.ne.s32.totalorder %s50, %s51
    %p60 = scmp.eq.s32.totalorder %s19, 0
    %p61 = por %p59, %p60
    %p62 = scmp.ne.s32.totalorder %s50, %s51
    %p63 = scmp.eq.s32.totalorder %s20, 1
    %p64 = por %p62, %p63
    %p66 = scmp.ne.s32.totalorder %s51, %s65
    %p67 = scmp.eq.s32.totalorder %s20, 0
    %p68 = por %p66, %p67
    %s70 = sadd.s32 %s69, 1
    %p73 = scmp.eq.s32.totalorder %s14, 1
    %p74 = scmp.ne.s32.totalorder %s69, %s71
    %p75 = scmp.eq.s32.totalorder %s14, 0
    %p76 = por %p74, %p75
    %p77 = scmp.ne.s32.totalorder %s69, %s71
    %p78 = scmp.eq.s32.totalorder %s19, 1
    %p79 = por %p77, %p78
    %p80 = scmp.ne.s32.totalorder %s71, %s72
    %p81 = scmp.eq.s32.totalorder %s19, 0
    %p82 = por %p80, %p81
    %p83 = scmp.ne.s32.totalorder %s71, %s72
    %p84 = scmp.eq.s32.totalorder %s20, 1
    %p85 = por %p83, %p84
    %p87 = scmp.ne.s32.totalorder %s72, %s86
    %p88 = scmp.eq.s32.totalorder %s20, 0
    %p89 = por %p87, %p88
    %s91 = sadd.s32 %s90, 1
    %p94 = scmp.eq.s32.totalorder %s14, 1
    %p95 = scmp.ne.s32.totalorder %s90, %s92
    %p96 = scmp.eq.s32.totalorder %s14, 0
    %p97 = por %p95, %p96
    %p98 = scmp.ne.s32.totalorder %s90, %s92
    %p99 = scmp.eq.s32.totalorder %s19, 1
    %p100 = por %p98, %p99
    %p101 = scmp.ne.s32.totalorder %s92, %s93
    %p102 = scmp.eq.s32.totalorder %s19, 0
    %p103 = por %p101, %p102
    %p104 = scmp.ne.s32.totalorder %s92, %s93
    %p105 = scmp.eq.s32.totalorder %s20, 1
    %p106 = por %p104, %p105
    %p108 = scmp.ne.s32.totalorder %s93, %s107
    %p109 = scmp.eq.s32.totalorder %s20, 0
    %p110 = por %p108, %p109
    %s112 = sadd.s32 %s111, 1
    %p115 = scmp.eq.s32.totalorder %s14, 1
    %p116 = scmp.ne.s32.totalorder %s111, %s113
    %p117 = scmp.eq.s32.totalorder %s14, 0
    %p118 = por %p116, %p117
    %p119 = scmp.ne.s32.totalorder %s111, %s113
    %p120 = scmp.eq.s32.totalorder %s19, 1
    %p121 = por %p119, %p120
    %p122 = scmp.ne.s32.totalorder %s113, %s114
    %p123 = scmp.eq.s32.totalorder %s19, 0
    %p124 = por %p122, %p123
    %p125 = scmp.ne.s32.totalorder %s113, %s114
    %p126 = scmp.eq.s32.totalorder %s20, 1
    %p127 = por %p125, %p126
    %p129 = scmp.ne.s32.totalorder %s114, %s128
    %p130 = scmp.eq.s32.totalorder %s20, 0
    %p131 = por %p129, %p130
    %s133 = sadd.s32 %s132, 1
    %p136 = scmp.eq.s32.totalorder %s14, 1
    %p137 = scmp.ne.s32.totalorder %s132, %s134
    %p138 = scmp.eq.s32.totalorder %s14, 0
    %p139 = por %p137, %p138
    %p140 = scmp.ne.s32.totalorder %s132, %s134
    %p141 = scmp.eq.s32.totalorder %s19, 1
    %p142 = por %p140, %p141
    %p143 = scmp.ne.s32.totalorder %s134, %s135
    %p144 = scmp.eq.s32.totalorder %s19, 0
    %p145 = por %p143, %p144
    %p146 = scmp.ne.s32.totalorder %s134, %s135
    %p147 = scmp.eq.s32.totalorder %s20, 1
    %p148 = por %p146, %p147
    %p150 = scmp.ne.s32.totalorder %s135, %s149
    %p151 = scmp.eq.s32.totalorder %s20, 0
    %p152 = por %p150, %p151
    %s154 = sadd.s32 %s153, 1
    %p157 = scmp.eq.s32.totalorder %s14, 1
    %p158 = scmp.ne.s32.totalorder %s153, %s155
    %p159 = scmp.eq.s32.totalorder %s14, 0
    %p160 = por %p158, %p159
    %p161 = scmp.ne.s32.totalorder %s153, %s155
    %p162 = scmp.eq.s32.totalorder %s19, 1
    %p163 = por %p161, %p162
    %p164 = scmp.ne.s32.totalorder %s155, %s156
    %p165 = scmp.eq.s32.totalorder %s19, 0
    %p166 = por %p164, %p165
    %p167 = scmp.ne.s32.totalorder %s155, %s156
    %p168 = scmp.eq.s32.totalorder %s20, 1
    %p169 = por %p167, %p168
    %p171 = scmp.ne.s32.totalorder %s156, %s170
    %p172 = scmp.eq.s32.totalorder %s20, 0
    %p173 = por %p171, %p172
    %s175 = sadd.s32 %s174, 1
    %p178 = scmp.eq.s32.totalorder %s14, 1
    %p179 = scmp.ne.s32.totalorder %s174, %s176
    %p180 = scmp.eq.s32.totalorder %s14, 0
    %p181 = por %p179, %p180
    %p182 = scmp.ne.s32.totalorder %s174, %s176
    %p183 = scmp.eq.s32.totalorder %s19, 1
    %p184 = por %p182, %p183
    %p185 = scmp.ne.s32.totalorder %s176, %s177
    %p186 = scmp.eq.s32.totalorder %s19, 0
    %p187 = por %p185, %p186
    %p188 = scmp.ne.s32.totalorder %s176, %s177
    %p189 = scmp.eq.s32.totalorder %s20, 1
    %p190 = por %p188, %p189
    %p192 = scmp.ne.s32.totalorder %s177, %s191
    %p193 = scmp.eq.s32.totalorder %s20, 0
    %p194 = por %p192, %p193
    %s195 = ssub.s32 %s14, %s21
    %p196 = scmp.eq.s32.totalorder %s195, 0
    %s198 = sadd.s32 %s197, 1
    %s199 = scalar_select %p196, %s197, %s198
    %p202 = pneg %p196
    %p203 = scmp.eq.s32.totalorder %s14, 1
    %p204 = por %p202, %p203
    %p205 = scmp.ne.s32.totalorder %s197, %s200
    %p206 = scmp.eq.s32.totalorder %s14, 0
    %p207 = por %p205, %p206
    %p208 = scmp.ne.s32.totalorder %s197, %s200
    %p209 = scmp.eq.s32.totalorder %s19, 1
    %p210 = por %p208, %p209
    %p211 = scmp.ne.s32.totalorder %s200, %s201
    %p212 = scmp.eq.s32.totalorder %s19, 0
    %p213 = por %p211, %p212
    %p214 = scmp.ne.s32.totalorder %s200, %s201
    %p215 = scmp.eq.s32.totalorder %s20, 1
    %p216 = por %p214, %p215
    %p218 = scmp.ne.s32.totalorder %s201, %s217
    %p219 = scmp.eq.s32.totalorder %s20, 0
    %p220 = por %p218, %p219
    %p221 = scmp.le.s32.totalorder 1, %s14
    %p222 = scmp.lt.s32.totalorder %s14, 3
    %p223 = pnand %p221, %p222
    %p224 = pneg %p223
    // Predicated region
    $region9: #{prenorm_feedforward_pallas.1} parent=5 // pred_check
      _
    $region10: #{prenorm_feedforward_pallas.1} parent=5 // pred_check_branch
      %226 = sbr.rel (%p223) target = $region12
    $region11: #{prenorm_feedforward_pallas.1} parent=5 // pred_region
      %s227 = ssub.s32 %s14, 1
      // Predicated region
      $region13: #{prenorm_feedforward_pallas.1} parent=11 // pred_check
        %p228 = pneg %p61
      $region14: #{prenorm_feedforward_pallas.1} parent=11 // pred_check_branch
        %230 = sbr.rel (%p228) target = $region16
      $region15: #{prenorm_feedforward_pallas.1} parent=11 // pred_region
        _
      $region16: #{prenorm_feedforward_pallas.1} parent=11 // pred_fallthru
        _
      // Predicated region
      $region17: #{prenorm_feedforward_pallas.1} parent=11 // pred_check
        %p231 = pneg %p82
      $region18: #{prenorm_feedforward_pallas.1} parent=11 // pred_check_branch
        %233 = sbr.rel (%p231) target = $region20
      $region19: #{prenorm_feedforward_pallas.1} parent=11 // pred_region
        _
      $region20: #{prenorm_feedforward_pallas.1} parent=11 // pred_fallthru
        _
      // Predicated region
      $region21: #{prenorm_feedforward_pallas.1} parent=11 // pred_check
        %p234 = pneg %p103
      $region22: #{prenorm_feedforward_pallas.1} parent=11 // pred_check_branch
        %236 = sbr.rel (%p234) target = $region24
      $region23: #{prenorm_feedforward_pallas.1} parent=11 // pred_region
        _
      $region24: #{prenorm_feedforward_pallas.1} parent=11 // pred_fallthru
        _
      // Predicated region
      $region25: #{prenorm_feedforward_pallas.1} parent=11 // pred_check
        %p237 = pneg %p124
      $region26: #{prenorm_feedforward_pallas.1} parent=11 // pred_check_branch
        %239 = sbr.rel (%p237) target = $region28
      $region27: #{prenorm_feedforward_pallas.1} parent=11 // pred_region
        _
      $region28: #{prenorm_feedforward_pallas.1} parent=11 // pred_fallthru
        _
      // Predicated region
      $region29: #{prenorm_feedforward_pallas.1} parent=11 // pred_check
        %p240 = pneg %p145
      $region30: #{prenorm_feedforward_pallas.1} parent=11 // pred_check_branch
        %242 = sbr.rel (%p240) target = $region32
      $region31: #{prenorm_feedforward_pallas.1} parent=11 // pred_region
        _
      $region32: #{prenorm_feedforward_pallas.1} parent=11 // pred_fallthru
        _
      // Predicated region
      $region33: #{prenorm_feedforward_pallas.1} parent=11 // pred_check
        %p243 = pneg %p166
      $region34: #{prenorm_feedforward_pallas.1} parent=11 // pred_check_branch
        %245 = sbr.rel (%p243) target = $region36
      $region35: #{prenorm_feedforward_pallas.1} parent=11 // pred_region
        _
      $region36: #{prenorm_feedforward_pallas.1} parent=11 // pred_fallthru
        _
      // Predicated region
      $region37: #{prenorm_feedforward_pallas.1} parent=11 // pred_check
        %p246 = pneg %p187
      $region38: #{prenorm_feedforward_pallas.1} parent=11 // pred_check_branch
        %248 = sbr.rel (%p246) target = $region40
      $region39: #{prenorm_feedforward_pallas.1} parent=11 // pred_region
        _
      $region40: #{prenorm_feedforward_pallas.1} parent=11 // pred_fallthru
        _
    $region12: #{prenorm_feedforward_pallas.1} parent=5 // pred_fallthru
      _
    %p249 = scmp.lt.s32.totalorder %s14, 2
    // Predicated region
    $region41: #{prenorm_feedforward_pallas.1} parent=5 // pred_check
      %p250 = pneg %p249
    $region42: #{prenorm_feedforward_pallas.1} parent=5 // pred_check_branch
      %252 = sbr.rel (%p250) target = $region44
    $region43: #{prenorm_feedforward_pallas.1} parent=5 // pred_region
      // Predicated region
      $region45: #{prenorm_feedforward_pallas.1} parent=43 // pred_check
        %p253 = pneg %p34
      $region46: #{prenorm_feedforward_pallas.1} parent=43 // pred_check_branch
        %255 = sbr.rel (%p253) target = $region48
      $region47: #{prenorm_feedforward_pallas.1} parent=43 // pred_region
        %p256 = scmp.lt.s32.totalorder %s14, 1
        %s257 = scalar_select %p256, %s14, 1
        %s258 = smul.addr %s257, 4
        %s259 = smul.addr %s258, 8
        %s260 = scalar_lea.vmem %s0, %s259
      $region48: #{prenorm_feedforward_pallas.1} parent=43 // pred_fallthru
        _
    $region44: #{prenorm_feedforward_pallas.1} parent=5 // pred_fallthru
      _
    %p261 = scmp.le.s32.totalorder 1, %s14
    %p262 = scmp.lt.s32.totalorder %s14, 3
    %p263 = pnand %p261, %p262
    %p264 = pneg %p263
    // Predicated region
    $region49: #{prenorm_feedforward_pallas.1} parent=5 // pred_check
      _
    $region50: #{prenorm_feedforward_pallas.1} parent=5 // pred_check_branch
      %266 = sbr.rel (%p263) target = $region52
    $region51: #{prenorm_feedforward_pallas.1} parent=5 // pred_region
      %s267 = ssub.s32 %s14, 1
      %p268 = scmp.lt.s32.totalorder %s19, 1
      %s269 = scalar_select %p268, %s19, 1
      %s270 = smul.addr %s269, 4
      %s271 = smul.addr %s270, 8
      %s272 = scalar_lea.vmem %s0, %s271
      %p273 = pneg %p40
      %p274 = pneg %p37
      %p275 = pneg %p61
      %p276 = pneg %p58
      %p277 = pneg %p82
      %p278 = pneg %p79
      %p279 = pneg %p103
      %p280 = pneg %p100
      %p281 = pneg %p124
      %p282 = pneg %p121
      %p283 = pneg %p145
      %p284 = pneg %p142
      %p285 = pneg %p166
      %p286 = pneg %p163
      %p287 = pneg %p187
      %p288 = pneg %p184
      %p289 = pneg %p213
      %p290 = pneg %p210
      %p291 = scmp.lt.s32.totalorder %s19, 1
      %s292 = scalar_select %p291, %s19, 1
      %s293 = smul.addr %s292, 4
      %s294 = smul.addr %s293, 8
      %s295 = scalar_lea.vmem %s8, %s294
      %p296 = scmp.lt.s32.totalorder %s19, 1
      %s297 = scalar_select %p296, %s19, 1
      %s298 = smul.addr %s297, 4
      %s299 = smul.addr %s298, 8
      %s300 = scalar_lea.vmem %s0, %s299
      %p301 = scmp.lt.s32.totalorder %s19, 1
      %s302 = scalar_select %p301, %s19, 1
      %s303 = smul.addr %s302, 4
      %s304 = smul.addr %s303, 8
      %s305 = scalar_lea.vmem %s8, %s304
      %v307 = vld [vmem:[%s300] sm:$0xff]
      %v308 = vld [vmem:[%s300 + $0x8] sm:$0xff]
      %v309 = vld [vmem:[%s300 + $0x10] sm:$0xff]
      %v310 = vld [vmem:[%s300 + $0x18] sm:$0xff]
      %v311 = vld [vmem:[%s1] sm:$0xff]
      %v312 = vld [vmem:[%s1 + $0x8] sm:$0xff]
      %v313 = vld [vmem:[%s1 + $0x10] sm:$0xff]
      %v314 = vld [vmem:[%s1 + $0x18] sm:$0xff]
      %v315 = vld [vmem:[%s1 + $0x20] sm:$0xff]
      %v316 = vld [vmem:[%s1 + $0x28] sm:$0xff]
      %v317 = vld [vmem:[%s1 + $0x30] sm:$0xff]
      %v318 = vld [vmem:[%s1 + $0x38] sm:$0xff]
      %vm319 = vcmask 523264
      %v321 = vsel %vm319, %v307, 0
      %v324 = vsel %vm319, %v308, 0
      %v327 = vsel %vm319, %v309, 0
      %v330 = vsel %vm319, %v310, 0
      %332 = vmatprep.subr.mxu0 0.0
      %333 = vmatpush1.msra.mxu0 %v311
      %334 = vmatprep.subr.mxu0 0.0
      %335 = vmatpush1.msra.mxu0 %v312
      %336 = vmatprep.subr.mxu0 0.0
      %337 = vmatpush1.msra.mxu0 %v313
      %338 = vmatprep.subr.mxu0 0.0
      %339 = vmatpush1.msra.mxu0 %v314
      %340 = vmatprep.subr.mxu0 0.0
      %341 = vmatpush1.msra.mxu0 %v315
      %342 = vmatprep.subr.mxu0 0.0
      %343 = vmatpush1.msra.mxu0 %v316
      %344 = vmatprep.subr.mxu0 0.0
      %345 = vmatpush1.msra.mxu0 %v317
      %346 = vmatprep.subr.mxu0 0.0
      %347 = vmatpush1.msra.mxu0 %v318
      %348 = vmatprep.subr.mxu0 0.0
      %349 = vmatpush1.msra.mxu0 0.0
      %350 = vmatprep.subr.mxu0 0.0
      %351 = vmatpush1.msra.mxu0 0.0
      %352 = vmatprep.subr.mxu0 0.0
      %353 = vmatpush1.msra.mxu0 0.0
      %354 = vmatprep.subr.mxu0 0.0
      %355 = vmatpush1.msra.mxu0 0.0
      %356 = vmatprep.subr.mxu0 0.0
      %357 = vmatpush1.msra.mxu0 0.0
      %358 = vmatprep.subr.mxu0 0.0
      %359 = vmatpush1.msra.mxu0 0.0
      %360 = vmatprep.subr.mxu0 0.0
      %361 = vmatpush1.msra.mxu0 0.0
      %362 = vmatprep.subr.mxu0 0.0
      %363 = vmatpush1.msra.mxu0 0.0
      %364 = vmatprep.subr.mxu0 0.0
      %365 = vmatpush1.msra.mxu0 0.0
      %366 = vmatprep.subr.mxu0 0.0
      %367 = vmatpush1.msra.mxu0 0.0
      %368 = vmatprep.subr.mxu0 0.0
      %369 = vmatpush1.msra.mxu0 0.0
      %370 = vmatprep.subr.mxu0 0.0
      %371 = vmatpush1.msra.mxu0 0.0
      %372 = vmatprep.subr.mxu0 0.0
      %373 = vmatpush1.msra.mxu0 0.0
      %374 = vmatprep.subr.mxu0 0.0
      %375 = vmatpush1.msra.mxu0 0.0
      %376 = vmatprep.subr.mxu0 0.0
      %377 = vmatpush1.msra.mxu0 0.0
      %378 = vmatprep.subr.mxu0 0.0
      %379 = vmatpush1.msra.mxu0 0.0
      %380 = vmatprep.subr.mxu0 0.0
      %381 = vmatpush1.msra.mxu0 0.0
      %382 = vmatprep.subr.mxu0 0.0
      %383 = vmatpush1.msra.mxu0 0.0
      %384 = vmatprep.subr.mxu0 0.0
      %385 = vmatpush1.msra.mxu0 0.0
      %386 = vmatprep.subr.mxu0 0.0
      %387 = vmatpush1.msra.mxu0 0.0
      %388 = vmatprep.subr.mxu0 0.0
      %389 = vmatpush1.msra.mxu0 0.0
      %390 = vmatprep.subr.mxu0 0.0
      %391 = vmatpush1.msra.mxu0 0.0
      %392 = vmatprep.subr.mxu0 0.0
      %393 = vmatpush1.msra.mxu0 0.0
      %394 = vmatprep.subr.mxu0 0.0
      %395 = vmatpush1.msra.mxu0 0.0
      %396 = vmatprep.mubr.f32.mxu0 0.0
      %397 = vmatmul.mubr.f32.gmra.mrb[0].mxu0 %v321
      %v398 = vpop.f32.mrb[0].mxu0
      %v399 = vadd.f32 0.0, %v398
      %v400 = vpop.f32.mrb[0].mxu0
      %401 = vmatprep.mubr.f32.mxu0 0.0
      %402 = vmatmul.mubr.f32.gmra.mrb[0].mxu0 %v324
      %v403 = vpop.f32.mrb[0].mxu0
      %v404 = vadd.f32 0.0, %v403
      %v405 = vpop.f32.mrb[0].mxu0
      %406 = vmatprep.mubr.f32.mxu0 0.0
      %407 = vmatmul.mubr.f32.gmra.mrb[0].mxu0 %v327
      %v408 = vpop.f32.mrb[0].mxu0
      %v409 = vadd.f32 0.0, %v408
      %v410 = vpop.f32.mrb[0].mxu0
      %411 = vmatprep.mubr.f32.mxu0 0.0
      %412 = vmatmul.mubr.f32.gmra.mrb[0].mxu0 %v330
      %v413 = vpop.f32.mrb[0].mxu0
      %v414 = vadd.f32 0.0, %v413
      %v415 = vpop.f32.mrb[0].mxu0
      %416 = vdwg.mxu0
      %v417 = vsub.f32 %v307, %v399
      %v418 = vsub.f32 %v308, %v404
      %v419 = vsub.f32 %v309, %v409
      %v420 = vsub.f32 %v310, %v414
      %v421 = vmul.f32 %v417, %v417
      %v422 = vmul.f32 %v418, %v418
      %v423 = vmul.f32 %v419, %v419
      %v424 = vmul.f32 %v420, %v420
      %v426 = vsel %vm319, %v421, 0
      %v429 = vsel %vm319, %v422, 0
      %v432 = vsel %vm319, %v423, 0
      %v435 = vsel %vm319, %v424, 0
      %437 = vmatprep.subr.mxu0 0.0
      %438 = vmatpush1.msra.mxu0 %v311
      %439 = vmatprep.subr.mxu0 0.0
      %440 = vmatpush1.msra.mxu0 %v312
      %441 = vmatprep.subr.mxu0 0.0
      %442 = vmatpush1.msra.mxu0 %v313
      %443 = vmatprep.subr.mxu0 0.0
      %444 = vmatpush1.msra.mxu0 %v314
      %445 = vmatprep.subr.mxu0 0.0
      %446 = vmatpush1.msra.mxu0 %v315
      %447 = vmatprep.subr.mxu0 0.0
      %448 = vmatpush1.msra.mxu0 %v316
      %449 = vmatprep.subr.mxu0 0.0
      %450 = vmatpush1.msra.mxu0 %v317
      %451 = vmatprep.subr.mxu0 0.0
      %452 = vmatpush1.msra.mxu0 %v318
      %453 = vmatprep.subr.mxu0 0.0
      %454 = vmatpush1.msra.mxu0 0.0
      %455 = vmatprep.subr.mxu0 0.0
      %456 = vmatpush1.msra.mxu0 0.0
      %457 = vmatprep.subr.mxu0 0.0
      %458 = vmatpush1.msra.mxu0 0.0
      %459 = vmatprep.subr.mxu0 0.0
      %460 = vmatpush1.msra.mxu0 0.0
      %461 = vmatprep.subr.mxu0 0.0
      %462 = vmatpush1.msra.mxu0 0.0
      %463 = vmatprep.subr.mxu0 0.0
      %464 = vmatpush1.msra.mxu0 0.0
      %465 = vmatprep.subr.mxu0 0.0
      %466 = vmatpush1.msra.mxu0 0.0
      %467 = vmatprep.subr.mxu0 0.0
      %468 = vmatpush1.msra.mxu0 0.0
      %469 = vmatprep.subr.mxu0 0.0
      %470 = vmatpush1.msra.mxu0 0.0
      %471 = vmatprep.subr.mxu0 0.0
      %472 = vmatpush1.msra.mxu0 0.0
      %473 = vmatprep.subr.mxu0 0.0
      %474 = vmatpush1.msra.mxu0 0.0
      %475 = vmatprep.subr.mxu0 0.0
      %476 = vmatpush1.msra.mxu0 0.0
      %477 = vmatprep.subr.mxu0 0.0
      %478 = vmatpush1.msra.mxu0 0.0
      %479 = vmatprep.subr.mxu0 0.0
      %480 = vmatpush1.msra.mxu0 0.0
      %481 = vmatprep.subr.mxu0 0.0
      %482 = vmatpush1.msra.mxu0 0.0
      %483 = vmatprep.subr.mxu0 0.0
      %484 = vmatpush1.msra.mxu0 0.0
      %485 = vmatprep.subr.mxu0 0.0
      %486 = vmatpush1.msra.mxu0 0.0
      %487 = vmatprep.subr.mxu0 0.0
      %488 = vmatpush1.msra.mxu0 0.0
      %489 = vmatprep.subr.mxu0 0.0
      %490 = vmatpush1.msra.mxu0 0.0
      %491 = vmatprep.subr.mxu0 0.0
      %492 = vmatpush1.msra.mxu0 0.0
      %493 = vmatprep.subr.mxu0 0.0
      %494 = vmatpush1.msra.mxu0 0.0
      %495 = vmatprep.subr.mxu0 0.0
      %496 = vmatpush1.msra.mxu0 0.0
      %497 = vmatprep.subr.mxu0 0.0
      %498 = vmatpush1.msra.mxu0 0.0
      %499 = vmatprep.subr.mxu0 0.0
      %500 = vmatpush1.msra.mxu0 0.0
      %501 = vmatprep.mubr.f32.mxu0 0.0
      %502 = vmatmul.mubr.f32.gmra.mrb[0].mxu0 %v426
      %v503 = vpop.f32.mrb[0].mxu0
      %v504 = vadd.f32 1e-05, %v503
      %v505 = vpop.f32.mrb[0].mxu0
      %506 = vmatprep.mubr.f32.mxu0 0.0
      %507 = vmatmul.mubr.f32.gmra.mrb[0].mxu0 %v429
      %v508 = vpop.f32.mrb[0].mxu0
      %v509 = vadd.f32 1e-05, %v508
      %v510 = vpop.f32.mrb[0].mxu0
      %511 = vmatprep.mubr.f32.mxu0 0.0
      %512 = vmatmul.mubr.f32.gmra.mrb[0].mxu0 %v432
      %v513 = vpop.f32.mrb[0].mxu0
      %v514 = vadd.f32 1e-05, %v513
      %v515 = vpop.f32.mrb[0].mxu0
      %516 = vmatprep.mubr.f32.mxu0 0.0
      %517 = vmatmul.mubr.f32.gmra.mrb[0].mxu0 %v435
      %v518 = vpop.f32.mrb[0].mxu0
      %v519 = vadd.f32 1e-05, %v518
      %v520 = vpop.f32.mrb[0].mxu0
      %521 = vdwg.mxu0
      %v522 = vrsqrt.pop %v504
      %v523 = vrsqrt.pop %v509
      %v524 = vrsqrt.pop %v514
      %v525 = vrsqrt.pop %v519
      %v526 = vmul.f32 %v417, %v522
      %v527 = vmul.f32 %v418, %v523
      %v528 = vmul.f32 %v419, %v524
      %v529 = vmul.f32 %v420, %v525
      %v530 = vld [vmem:[%s2] sm:$0x1]
      %v532 = vlaneseq
      %v533 = vshrl.u32 %v532, 7
      %v534 = vsub.s32 0, %v533
      %v535 = vrot.slane %v530, %v534
      %v537 = vmul.f32 %v526, %v535
      %v538 = vmul.f32 %v527, %v535
      %v539 = vmul.f32 %v528, %v535
      %v540 = vmul.f32 %v529, %v535
      %v541 = vld [vmem:[%s3] sm:$0x1]
      %v543 = vlaneseq
      %v544 = vshrl.u32 %v543, 7
      %v545 = vsub.s32 0, %v544
      %v546 = vrot.slane %v541, %v545
      %v548 = vadd.f32 %v537, %v546
      %v549 = vadd.f32 %v538, %v546
      %v550 = vadd.f32 %v539, %v546
      %v551 = vadd.f32 %v540, %v546
      %v552 = vpack.c.bf16 %v549, %v548
      %v553 = vpack.c.bf16 %v551, %v550
      %v554 = vld [vmem:[%s4] sm:$0xff]
      %v555 = vld [vmem:[%s4 + $0x8] sm:$0xff]
      %v556 = vld [vmem:[%s4 + $0x10] sm:$0xff]
      %v557 = vld [vmem:[%s4 + $0x18] sm:$0xff]
      %v558 = vld [vmem:[%s4 + $0x20] sm:$0xff]
      %v559 = vld [vmem:[%s4 + $0x28] sm:$0xff]
      %v560 = vld [vmem:[%s4 + $0x30] sm:$0xff]
      %v561 = vld [vmem:[%s4 + $0x38] sm:$0xff]
      %v570 = vunpack.c.l.b16 %v554
      %v571 = vunpack.c.h.b16 %v554
      %v572 = vunpack.c.l.b16 %v555
      %v573 = vunpack.c.h.b16 %v555
      %v574 = vunpack.c.l.b16 %v556
      %v575 = vunpack.c.h.b16 %v556
      %v576 = vunpack.c.l.b16 %v557
      %v577 = vunpack.c.h.b16 %v557
      %v578 = vunpack.c.l.b16 %v558
      %v579 = vunpack.c.h.b16 %v558
      %v580 = vunpack.c.l.b16 %v559
      %v581 = vunpack.c.h.b16 %v559
      %v582 = vunpack.c.l.b16 %v560
      %v583 = vunpack.c.h.b16 %v560
      %v584 = vunpack.c.l.b16 %v561
      %v585 = vunpack.c.h.b16 %v561
      %v586 = vpack.c.b16 %v572, %v570
      %v587 = vpack.c.b16 %v573, %v571
      %v588 = vpack.c.b16 %v576, %v574
      %v589 = vpack.c.b16 %v577, %v575
      %v590 = vpack.c.b16 %v580, %v578
      %v591 = vpack.c.b16 %v581, %v579
      %v592 = vpack.c.b16 %v584, %v582
      %v593 = vpack.c.b16 %v585, %v583
      %v603 = vsel %vm319, %v552, 0
      %v606 = vsel %vm319, %v553, 0
      %608 = vmatprep.subr.bf16.mxu0 %v587
      %609 = vmatpush1.bf16.msra.mxu0 %v586
      %610 = vmatprep.subr.bf16.mxu0 %v589
      %611 = vmatpush1.bf16.msra.mxu0 %v588
      %612 = vmatprep.subr.bf16.mxu0 %v591
      %613 = vmatpush1.bf16.msra.mxu0 %v590
      %614 = vmatprep.subr.bf16.mxu0 %v593
      %615 = vmatpush1.bf16.msra.mxu0 %v592
      %616 = vmatprep.subr.bf16.mxu0 0
      %617 = vmatpush1.bf16.msra.mxu0 0
      %618 = vmatprep.subr.bf16.mxu0 0
      %619 = vmatpush1.bf16.msra.mxu0 0
      %620 = vmatprep.subr.bf16.mxu0 0
      %621 = vmatpush1.bf16.msra.mxu0 0
      %622 = vmatprep.subr.bf16.mxu0 0
      %623 = vmatpush1.bf16.msra.mxu0 0
      %624 = vmatprep.subr.bf16.mxu0 0
      %625 = vmatpush1.bf16.msra.mxu0 0
      %626 = vmatprep.subr.bf16.mxu0 0
      %627 = vmatpush1.bf16.msra.mxu0 0
      %628 = vmatprep.subr.bf16.mxu0 0
      %629 = vmatpush1.bf16.msra.mxu0 0
      %630 = vmatprep.subr.bf16.mxu0 0
      %631 = vmatpush1.bf16.msra.mxu0 0
      %632 = vmatprep.subr.bf16.mxu0 0
      %633 = vmatpush1.bf16.msra.mxu0 0
      %634 = vmatprep.subr.bf16.mxu0 0
      %635 = vmatpush1.bf16.msra.mxu0 0
      %636 = vmatprep.subr.bf16.mxu0 0
      %637 = vmatpush1.bf16.msra.mxu0 0
      %638 = vmatprep.subr.bf16.mxu0 0
      %639 = vmatpush1.bf16.msra.mxu0 0
      %640 = vmatprep.mubr.bf16.mxu0 0
      %641 = vmatmul.mubr.bf16.gmra.mrb[0].mxu0 %v603
      %v642 = vpop.f32.mrb[0].mxu0
      %v643 = vadd.f32 0.0, %v642
      %v644 = vpop.f32.mrb[0].mxu0
      %v645 = vadd.f32 0.0, %v644
      %v646 = vpop.f32.mrb[0].mxu0
      %v647 = vadd.f32 0.0, %v646
      %v648 = vpop.f32.mrb[0].mxu0
      %v649 = vadd.f32 0.0, %v648
      %650 = vmatprep.mubr.bf16.mxu0 0
      %651 = vmatmul.mubr.bf16.gmra.mrb[0].mxu0 %v606
      %v652 = vpop.f32.mrb[0].mxu0
      %v653 = vadd.f32 0.0, %v652
      %v654 = vpop.f32.mrb[0].mxu0
      %v655 = vadd.f32 0.0, %v654
      %v656 = vpop.f32.mrb[0].mxu0
      %v657 = vadd.f32 0.0, %v656
      %v658 = vpop.f32.mrb[0].mxu0
      %v659 = vadd.f32 0.0, %v658
      %660 = vdwg.mxu0
      %v661 = vmul.f32 %v643, 0.5
      %v662 = vmul.f32 %v645, 0.5
      %v663 = vmul.f32 %v647, 0.5
      %v664 = vmul.f32 %v649, 0.5
      %v665 = vmul.f32 %v653, 0.5
      %v666 = vmul.f32 %v655, 0.5
      %v667 = vmul.f32 %v657, 0.5
      %v668 = vmul.f32 %v659, 0.5
      %v669 = vmul.f32 %v643, 0.70710677
      %v670 = vmul.f32 %v645, 0.70710677
      %v671 = vmul.f32 %v647, 0.70710677
      %v672 = vmul.f32 %v649, 0.70710677
      %v673 = vmul.f32 %v653, 0.70710677
      %v674 = vmul.f32 %v655, 0.70710677
      %v675 = vmul.f32 %v657, 0.70710677
      %v676 = vmul.f32 %v659, 0.70710677
      %v677 = verf.f32.pop %v669
      %v678 = verf.f32.pop %v670
      %v679 = verf.f32.pop %v671
      %v680 = verf.f32.pop %v672
      %v681 = verf.f32.pop %v673
      %v682 = verf.f32.pop %v674
      %v683 = verf.f32.pop %v675
      %v684 = verf.f32.pop %v676
      %v685 = vadd.f32 %v677, 1.0
      %v686 = vadd.f32 %v678, 1.0
      %v687 = vadd.f32 %v679, 1.0
      %v688 = vadd.f32 %v680, 1.0
      %v689 = vadd.f32 %v681, 1.0
      %v690 = vadd.f32 %v682, 1.0
      %v691 = vadd.f32 %v683, 1.0
      %v692 = vadd.f32 %v684, 1.0
      %v693 = vmul.f32 %v661, %v685
      %v694 = vmul.f32 %v662, %v686
      %v695 = vmul.f32 %v663, %v687
      %v696 = vmul.f32 %v664, %v688
      %v697 = vmul.f32 %v665, %v689
      %v698 = vmul.f32 %v666, %v690
      %v699 = vmul.f32 %v667, %v691
      %v700 = vmul.f32 %v668, %v692
      %709 = vrot.lane.b32.xlu0 %v693, 32
      %v710 = vpop.permute.xlu0 %709
      %711 = vrot.lane.b32.xlu0 %v694, 32
      %v712 = vpop.permute.xlu0 %711
      %713 = vrot.lane.b32.xlu0 %v695, 32
      %v714 = vpop.permute.xlu0 %713
      %715 = vrot.lane.b32.xlu0 %v696, 32
      %v716 = vpop.permute.xlu0 %715
      %717 = vrot.lane.b32.xlu0 %v697, 32
      %v718 = vpop.permute.xlu0 %717
      %719 = vrot.lane.b32.xlu0 %v698, 32
      %v720 = vpop.permute.xlu0 %719
      %721 = vrot.lane.b32.xlu0 %v699, 32
      %v722 = vpop.permute.xlu0 %721
      %723 = vrot.lane.b32.xlu0 %v700, 32
      %v724 = vpop.permute.xlu0 %723
      %vm725 = vcmask 261120
      %v726 = vsel %vm725, %v710, %v712
      %v727 = vsel %vm725, %v714, %v716
      %v728 = vsel %vm725, %v718, %v720
      %v729 = vsel %vm725, %v722, %v724
      %v738 = vsel %vm725, 0.0, %v710
      %v739 = vsel %vm725, 0.0, %v714
      %v740 = vsel %vm725, 0.0, %v718
      %v741 = vsel %vm725, 0.0, %v722
      %742 = vrot.lane.b32.xlu0 %v693, 96
      %v743 = vpop.permute.xlu0 %742
      %744 = vrot.lane.b32.xlu0 %v694, 96
      %v745 = vpop.permute.xlu0 %744
      %746 = vrot.lane.b32.xlu0 %v695, 96
      %v747 = vpop.permute.xlu0 %746
      %748 = vrot.lane.b32.xlu0 %v696, 96
      %v749 = vpop.permute.xlu0 %748
      %750 = vrot.lane.b32.xlu0 %v697, 96
      %v751 = vpop.permute.xlu0 %750
      %752 = vrot.lane.b32.xlu0 %v698, 96
      %v753 = vpop.permute.xlu0 %752
      %754 = vrot.lane.b32.xlu0 %v699, 96
      %v755 = vpop.permute.xlu0 %754
      %756 = vrot.lane.b32.xlu0 %v700, 96
      %v757 = vpop.permute.xlu0 %756
      %vm758 = vcmask 785408
      %v759 = vsel %vm758, %v743, %v745
      %v760 = vsel %vm758, %v747, %v749
      %v761 = vsel %vm758, %v751, %v753
      %v762 = vsel %vm758, %v755, %v757
      %v771 = vsel %vm758, %v745, 0.0
      %v772 = vsel %vm758, %v749, 0.0
      %v773 = vsel %vm758, %v753, 0.0
      %v774 = vsel %vm758, %v757, 0.0
      %v775 = vld [vmem:[%s5] ss:$8 sm:$0x3]
      %v777 = vlaneseq
      %v778 = vshrl.u32 %v777, 7
      %v779 = vsub.s32 0, %v778
      %v780 = vrot.slane %v775, %v779
      %v781 = vlaneseq
      %v782 = vshrl.u32 %v781, 7
      %v783 = vsub.s32 1, %v782
      %v784 = vrot.slane %v775, %v783
      %v787 = vmul.f32 %v780, %v738
      %v788 = vmul.f32 %v784, %v726
      %v789 = vmul.f32 %v780, %v739
      %v790 = vmul.f32 %v784, %v727
      %v791 = vmul.f32 %v780, %v740
      %v792 = vmul.f32 %v784, %v728
      %v793 = vmul.f32 %v780, %v741
      %v794 = vmul.f32 %v784, %v729
      %s795 = scalar_lea.vmem %s5, 1
      %v796 = vld [vmem:[%s795] ss:$8 sm:$0x3]
      %v798 = vlaneseq
      %v799 = vshrl.u32 %v798, 7
      %v800 = vsub.s32 0, %v799
      %v801 = vrot.slane %v796, %v800
      %v802 = vlaneseq
      %v803 = vshrl.u32 %v802, 7
      %v804 = vsub.s32 1, %v803
      %v805 = vrot.slane %v796, %v804
      %v808 = vmul.f32 %v801, %v693
      %v809 = vmul.f32 %v805, %v694
      %v810 = vmul.f32 %v801, %v695
      %v811 = vmul.f32 %v805, %v696
      %v812 = vmul.f32 %v801, %v697
      %v813 = vmul.f32 %v805, %v698
      %v814 = vmul.f32 %v801, %v699
      %v815 = vmul.f32 %v805, %v700
      %v816 = vadd.f32 %v787, %v808
      %v817 = vadd.f32 %v788, %v809
      %v818 = vadd.f32 %v789, %v810
      %v819 = vadd.f32 %v790, %v811
      %v820 = vadd.f32 %v791, %v812
      %v821 = vadd.f32 %v792, %v813
      %v822 = vadd.f32 %v793, %v814
      %v823 = vadd.f32 %v794, %v815
      %s824 = scalar_lea.vmem %s5, 2
      %v825 = vld [vmem:[%s824] ss:$8 sm:$0x3]
      %v827 = vlaneseq
      %v828 = vshrl.u32 %v827, 7
      %v829 = vsub.s32 0, %v828
      %v830 = vrot.slane %v825, %v829
      %v831 = vlaneseq
      %v832 = vshrl.u32 %v831, 7
      %v833 = vsub.s32 1, %v832
      %v834 = vrot.slane %v825, %v833
      %v837 = vmul.f32 %v830, %v759
      %v838 = vmul.f32 %v834, %v771
      %v839 = vmul.f32 %v830, %v760
      %v840 = vmul.f32 %v834, %v772
      %v841 = vmul.f32 %v830, %v761
      %v842 = vmul.f32 %v834, %v773
      %v843 = vmul.f32 %v830, %v762
      %v844 = vmul.f32 %v834, %v774
      %v845 = vadd.f32 %v816, %v837
      %v846 = vadd.f32 %v817, %v838
      %v847 = vadd.f32 %v818, %v839
      %v848 = vadd.f32 %v819, %v840
      %v849 = vadd.f32 %v820, %v841
      %v850 = vadd.f32 %v821, %v842
      %v851 = vadd.f32 %v822, %v843
      %v852 = vadd.f32 %v823, %v844
      %v853 = vld [vmem:[%s6] sm:$0xff]
      %v854 = vld [vmem:[%s6 + $0x8] sm:$0xff]
      %v855 = vld [vmem:[%s6 + $0x10] sm:$0xff]
      %v856 = vld [vmem:[%s6 + $0x18] sm:$0xff]
      %s857 = scalar_lea.vmem %s5, 3
      %v858 = vld [vmem:[%s857] ss:$8 sm:$0x3]
      %v860 = vlaneseq
      %v861 = vshrl.u32 %v860, 7
      %v862 = vsub.s32 0, %v861
      %v863 = vrot.slane %v858, %v862
      %v864 = vlaneseq
      %v865 = vshrl.u32 %v864, 7
      %v866 = vsub.s32 1, %v865
      %v867 = vrot.slane %v858, %v866
      %v870 = vmul.f32 %v863, %v738
      %v871 = vmul.f32 %v867, %v726
      %v872 = vmul.f32 %v863, %v739
      %v873 = vmul.f32 %v867, %v727
      %v874 = vmul.f32 %v863, %v740
      %v875 = vmul.f32 %v867, %v728
      %v876 = vmul.f32 %v863, %v741
      %v877 = vmul.f32 %v867, %v729
      %s878 = scalar_lea.vmem %s5, 4
      %v879 = vld [vmem:[%s878] ss:$8 sm:$0x3]
      %v881 = vlaneseq
      %v882 = vshrl.u32 %v881, 7
      %v883 = vsub.s32 0, %v882
      %v884 = vrot.slane %v879, %v883
      %v885 = vlaneseq
      %v886 = vshrl.u32 %v885, 7
      %v887 = vsub.s32 1, %v886
      %v888 = vrot.slane %v879, %v887
      %v891 = vmul.f32 %v884, %v693
      %v892 = vmul.f32 %v888, %v694
      %v893 = vmul.f32 %v884, %v695
      %v894 = vmul.f32 %v888, %v696
      %v895 = vmul.f32 %v884, %v697
      %v896 = vmul.f32 %v888, %v698
      %v897 = vmul.f32 %v884, %v699
      %v898 = vmul.f32 %v888, %v700
      %v899 = vadd.f32 %v870, %v891
      %v900 = vadd.f32 %v871, %v892
      %v901 = vadd.f32 %v872, %v893
      %v902 = vadd.f32 %v873, %v894
      %v903 = vadd.f32 %v874, %v895
      %v904 = vadd.f32 %v875, %v896
      %v905 = vadd.f32 %v876, %v897
      %v906 = vadd.f32 %v877, %v898
      %s907 = scalar_lea.vmem %s5, 5
      %v908 = vld [vmem:[%s907] ss:$8 sm:$0x3]
      %v910 = vlaneseq
      %v911 = vshrl.u32 %v910, 7
      %v912 = vsub.s32 0, %v911
      %v913 = vrot.slane %v908, %v912
      %v914 = vlaneseq
      %v915 = vshrl.u32 %v914, 7
      %v916 = vsub.s32 1, %v915
      %v917 = vrot.slane %v908, %v916
      %v920 = vmul.f32 %v913, %v759
      %v921 = vmul.f32 %v917, %v771
      %v922 = vmul.f32 %v913, %v760
      %v923 = vmul.f32 %v917, %v772
      %v924 = vmul.f32 %v913, %v761
      %v925 = vmul.f32 %v917, %v773
      %v926 = vmul.f32 %v913, %v762
      %v927 = vmul.f32 %v917, %v774
      %v928 = vadd.f32 %v899, %v920
      %v929 = vadd.f32 %v900, %v921
      %v930 = vadd.f32 %v901, %v922
      %v931 = vadd.f32 %v902, %v923
      %v932 = vadd.f32 %v903, %v924
      %v933 = vadd.f32 %v904, %v925
      %v934 = vadd.f32 %v905, %v926
      %v935 = vadd.f32 %v906, %v927
      %s936 = scalar_lea.vmem %s6, 32
      %v937 = vld [vmem:[%s936] sm:$0xff]
      %v938 = vld [vmem:[%s936 + $0x8] sm:$0xff]
      %v939 = vld [vmem:[%s936 + $0x10] sm:$0xff]
      %v940 = vld [vmem:[%s936 + $0x18] sm:$0xff]
      %v942 = vsel %vm725, %v937, 0
      %v945 = vsel %vm725, %v938, 0
      %v948 = vsel %vm725, %v939, 0
      %v951 = vsel %vm725, %v940, 0
      %953 = vmatprep.subr.mxu0 %v929
      %954 = vmatpush1.msra.mxu0 %v928
      %955 = vmatprep.subr.mxu0 %v931
      %956 = vmatpush1.msra.mxu0 %v930
      %957 = vmatprep.subr.mxu0 %v933
      %958 = vmatpush1.msra.mxu0 %v932
      %959 = vmatprep.subr.mxu0 %v935
      %960 = vmatpush1.msra.mxu0 %v934
      %961 = vmatprep.subr.mxu0 0.0
      %962 = vmatpush1.msra.mxu0 0.0
      %963 = vmatprep.subr.mxu0 0.0
      %964 = vmatpush1.msra.mxu0 0.0
      %965 = vmatprep.subr.mxu0 0.0
      %966 = vmatpush1.msra.mxu0 0.0
      %967 = vmatprep.subr.mxu0 0.0
      %968 = vmatpush1.msra.mxu0 0.0
      %969 = vmatprep.subr.mxu0 0.0
      %970 = vmatpush1.msra.mxu0 0.0
      %971 = vmatprep.subr.mxu0 0.0
      %972 = vmatpush1.msra.mxu0 0.0
      %973 = vmatprep.subr.mxu0 0.0
      %974 = vmatpush1.msra.mxu0 0.0
      %975 = vmatprep.subr.mxu0 0.0
      %976 = vmatpush1.msra.mxu0 0.0
      %977 = vmatprep.subr.mxu0 0.0
      %978 = vmatpush1.msra.mxu0 0.0
      %979 = vmatprep.subr.mxu0 0.0
      %980 = vmatpush1.msra.mxu0 0.0
      %981 = vmatprep.subr.mxu0 0.0
      %982 = vmatpush1.msra.mxu0 0.0
      %983 = vmatprep.subr.mxu0 0.0
      %984 = vmatpush1.msra.mxu0 0.0
      %985 = vmatprep.subr.mxu0 0.0
      %986 = vmatpush1.msra.mxu0 0.0
      %987 = vmatprep.subr.mxu0 0.0
      %988 = vmatpush1.msra.mxu0 0.0
      %989 = vmatprep.subr.mxu0 0.0
      %990 = vmatpush1.msra.mxu0 0.0
      %991 = vmatprep.subr.mxu0 0.0
      %992 = vmatpush1.msra.mxu0 0.0
      %993 = vmatprep.subr.mxu0 0.0
      %994 = vmatpush1.msra.mxu0 0.0
      %995 = vmatprep.subr.mxu0 0.0
      %996 = vmatpush1.msra.mxu0 0.0
      %997 = vmatprep.subr.mxu0 0.0
      %998 = vmatpush1.msra.mxu0 0.0
      %999 = vmatprep.subr.mxu0 0.0
      %1000 = vmatpush1.msra.mxu0 0.0
      %1001 = vmatprep.subr.mxu0 0.0
      %1002 = vmatpush1.msra.mxu0 0.0
      %1003 = vmatprep.subr.mxu0 0.0
      %1004 = vmatpush1.msra.mxu0 0.0
      %1005 = vmatprep.subr.mxu0 0.0
      %1006 = vmatpush1.msra.mxu0 0.0
      %1007 = vmatprep.subr.mxu0 0.0
      %1008 = vmatpush1.msra.mxu0 0.0
      %1009 = vmatprep.subr.mxu0 0.0
      %1010 = vmatpush1.msra.mxu0 0.0
      %1011 = vmatprep.subr.mxu0 0.0
      %1012 = vmatpush1.msra.mxu0 0.0
      %1013 = vmatprep.subr.mxu0 0.0
      %1014 = vmatpush1.msra.mxu0 0.0
      %1015 = vmatprep.subr.mxu0 0.0
      %1016 = vmatpush1.msra.mxu0 0.0
      %1017 = vmatprep.mubr.f32.mxu0 0.0
      %1018 = vmatmul.mubr.f32.gmra.mrb[0].mxu0 %v942
      %v1019 = vpop.f32.mrb[0].mxu0
      %v1020 = vadd.f32 0.0, %v1019
      %v1021 = vpop.f32.mrb[0].mxu0
      %v1022 = vadd.f32 0.0, %v1021
      %1023 = vmatprep.mubr.f32.mxu0 0.0
      %1024 = vmatmul.mubr.f32.gmra.mrb[0].mxu0 %v945
      %v1025 = vpop.f32.mrb[0].mxu0
      %v1026 = vadd.f32 0.0, %v1025
      %v1027 = vpop.f32.mrb[0].mxu0
      %v1028 = vadd.f32 0.0, %v1027
      %1029 = vmatprep.mubr.f32.mxu0 0.0
      %1030 = vmatmul.mubr.f32.gmra.mrb[0].mxu0 %v948
      %v1031 = vpop.f32.mrb[0].mxu0
      %v1032 = vadd.f32 0.0, %v1031
      %v1033 = vpop.f32.mrb[0].mxu0
      %v1034 = vadd.f32 0.0, %v1033
      %1035 = vmatprep.mubr.f32.mxu0 0.0
      %1036 = vmatmul.mubr.f32.gmra.mrb[0].mxu0 %v951
      %v1037 = vpop.f32.mrb[0].mxu0
      %v1038 = vadd.f32 0.0, %v1037
      %v1039 = vpop.f32.mrb[0].mxu0
      %v1040 = vadd.f32 0.0, %v1039
      %1041 = vdwg.mxu0
      %v1043 = vsel %vm725, %v853, 0
      %v1046 = vsel %vm725, %v854, 0
      %v1049 = vsel %vm725, %v855, 0
      %v1052 = vsel %vm725, %v856, 0
      %1054 = vmatprep.subr.mxu0 %v846
      %1055 = vmatpush1.msra.mxu0 %v845
      %1056 = vmatprep.subr.mxu0 %v848
      %1057 = vmatpush1.msra.mxu0 %v847
      %1058 = vmatprep.subr.mxu0 %v850
      %1059 = vmatpush1.msra.mxu0 %v849
      %1060 = vmatprep.subr.mxu0 %v852
      %1061 = vmatpush1.msra.mxu0 %v851
      %1062 = vmatprep.subr.mxu0 0.0
      %1063 = vmatpush1.msra.mxu0 0.0
      %1064 = vmatprep.subr.mxu0 0.0
      %1065 = vmatpush1.msra.mxu0 0.0
      %1066 = vmatprep.subr.mxu0 0.0
      %1067 = vmatpush1.msra.mxu0 0.0
      %1068 = vmatprep.subr.mxu0 0.0
      %1069 = vmatpush1.msra.mxu0 0.0
      %1070 = vmatprep.subr.mxu0 0.0
      %1071 = vmatpush1.msra.mxu0 0.0
      %1072 = vmatprep.subr.mxu0 0.0
      %1073 = vmatpush1.msra.mxu0 0.0
      %1074 = vmatprep.subr.mxu0 0.0
      %1075 = vmatpush1.msra.mxu0 0.0
      %1076 = vmatprep.subr.mxu0 0.0
      %1077 = vmatpush1.msra.mxu0 0.0
      %1078 = vmatprep.subr.mxu0 0.0
      %1079 = vmatpush1.msra.mxu0 0.0
      %1080 = vmatprep.subr.mxu0 0.0
      %1081 = vmatpush1.msra.mxu0 0.0
      %1082 = vmatprep.subr.mxu0 0.0
      %1083 = vmatpush1.msra.mxu0 0.0
      %1084 = vmatprep.subr.mxu0 0.0
      %1085 = vmatpush1.msra.mxu0 0.0
      %1086 = vmatprep.subr.mxu0 0.0
      %1087 = vmatpush1.msra.mxu0 0.0
      %1088 = vmatprep.subr.mxu0 0.0
      %1089 = vmatpush1.msra.mxu0 0.0
      %1090 = vmatprep.subr.mxu0 0.0
      %1091 = vmatpush1.msra.mxu0 0.0
      %1092 = vmatprep.subr.mxu0 0.0
      %1093 = vmatpush1.msra.mxu0 0.0
      %1094 = vmatprep.subr.mxu0 0.0
      %1095 = vmatpush1.msra.mxu0 0.0
      %1096 = vmatprep.subr.mxu0 0.0
      %1097 = vmatpush1.msra.mxu0 0.0
      %1098 = vmatprep.subr.mxu0 0.0
      %1099 = vmatpush1.msra.mxu0 0.0
      %1100 = vmatprep.subr.mxu0 0.0
      %1101 = vmatpush1.msra.mxu0 0.0
      %1102 = vmatprep.subr.mxu0 0.0
      %1103 = vmatpush1.msra.mxu0 0.0
      %1104 = vmatprep.subr.mxu0 0.0
      %1105 = vmatpush1.msra.mxu0 0.0
      %1106 = vmatprep.subr.mxu0 0.0
      %1107 = vmatpush1.msra.mxu0 0.0
      %1108 = vmatprep.subr.mxu0 0.0
      %1109 = vmatpush1.msra.mxu0 0.0
      %1110 = vmatprep.subr.mxu0 0.0
      %1111 = vmatpush1.msra.mxu0 0.0
      %1112 = vmatprep.subr.mxu0 0.0
      %1113 = vmatpush1.msra.mxu0 0.0
      %1114 = vmatprep.subr.mxu0 0.0
      %1115 = vmatpush1.msra.mxu0 0.0
      %1116 = vmatprep.subr.mxu0 0.0
      %1117 = vmatpush1.msra.mxu0 0.0
      %1118 = vmatprep.mubr.f32.mxu0 0.0
      %1119 = vmatmul.mubr.f32.gmra.mrb[0].mxu0 %v1043
      %v1120 = vpop.f32.mrb[0].mxu0
      %v1121 = vadd.f32 %v1020, %v1120
      %v1122 = vpop.f32.mrb[0].mxu0
      %v1123 = vadd.f32 %v1022, %v1122
      %1124 = vmatprep.mubr.f32.mxu0 0.0
      %1125 = vmatmul.mubr.f32.gmra.mrb[0].mxu0 %v1046
      %v1126 = vpop.f32.mrb[0].mxu0
      %v1127 = vadd.f32 %v1026, %v1126
      %v1128 = vpop.f32.mrb[0].mxu0
      %v1129 = vadd.f32 %v1028, %v1128
      %1130 = vmatprep.mubr.f32.mxu0 0.0
      %1131 = vmatmul.mubr.f32.gmra.mrb[0].mxu0 %v1049
      %v1132 = vpop.f32.mrb[0].mxu0
      %v1133 = vadd.f32 %v1032, %v1132
      %v1134 = vpop.f32.mrb[0].mxu0
      %v1135 = vadd.f32 %v1034, %v1134
      %1136 = vmatprep.mubr.f32.mxu0 0.0
      %1137 = vmatmul.mubr.f32.gmra.mrb[0].mxu0 %v1052
      %v1138 = vpop.f32.mrb[0].mxu0
      %v1139 = vadd.f32 %v1038, %v1138
      %v1140 = vpop.f32.mrb[0].mxu0
      %v1141 = vadd.f32 %v1040, %v1140
      %1142 = vdwg.mxu0
      %s1143 = scalar_lea.vmem %s5, 6
      %v1144 = vld [vmem:[%s1143] ss:$8 sm:$0x3]
      %v1146 = vlaneseq
      %v1147 = vshrl.u32 %v1146, 7
      %v1148 = vsub.s32 0, %v1147
      %v1149 = vrot.slane %v1144, %v1148
      %v1150 = vlaneseq
      %v1151 = vshrl.u32 %v1150, 7
      %v1152 = vsub.s32 1, %v1151
      %v1153 = vrot.slane %v1144, %v1152
      %v1156 = vmul.f32 %v1149, %v738
      %v1157 = vmul.f32 %v1153, %v726
      %v1158 = vmul.f32 %v1149, %v739
      %v1159 = vmul.f32 %v1153, %v727
      %v1160 = vmul.f32 %v1149, %v740
      %v1161 = vmul.f32 %v1153, %v728
      %v1162 = vmul.f32 %v1149, %v741
      %v1163 = vmul.f32 %v1153, %v729
      %s1164 = scalar_lea.vmem %s5, 7
      %v1165 = vld [vmem:[%s1164] ss:$8 sm:$0x3]
      %v1167 = vlaneseq
      %v1168 = vshrl.u32 %v1167, 7
      %v1169 = vsub.s32 0, %v1168
      %v1170 = vrot.slane %v1165, %v1169
      %v1171 = vlaneseq
      %v1172 = vshrl.u32 %v1171, 7
      %v1173 = vsub.s32 1, %v1172
      %v1174 = vrot.slane %v1165, %v1173
      %v1177 = vmul.f32 %v1170, %v693
      %v1178 = vmul.f32 %v1174, %v694
      %v1179 = vmul.f32 %v1170, %v695
      %v1180 = vmul.f32 %v1174, %v696
      %v1181 = vmul.f32 %v1170, %v697
      %v1182 = vmul.f32 %v1174, %v698
      %v1183 = vmul.f32 %v1170, %v699
      %v1184 = vmul.f32 %v1174, %v700
      %v1185 = vadd.f32 %v1156, %v1177
      %v1186 = vadd.f32 %v1157, %v1178
      %v1187 = vadd.f32 %v1158, %v1179
      %v1188 = vadd.f32 %v1159, %v1180
      %v1189 = vadd.f32 %v1160, %v1181
      %v1190 = vadd.f32 %v1161, %v1182
      %v1191 = vadd.f32 %v1162, %v1183
      %v1192 = vadd.f32 %v1163, %v1184
      %s1193 = scalar_lea.vmem %s5, 16
      %v1194 = vld [vmem:[%s1193] ss:$8 sm:$0x3]
      %v1196 = vlaneseq
      %v1197 = vshrl.u32 %v1196, 7
      %v1198 = vsub.s32 0, %v1197
      %v1199 = vrot.slane %v1194, %v1198
      %v1200 = vlaneseq
      %v1201 = vshrl.u32 %v1200, 7
      %v1202 = vsub.s32 1, %v1201
      %v1203 = vrot.slane %v1194, %v1202
      %v1206 = vmul.f32 %v1199, %v759
      %v1207 = vmul.f32 %v1203, %v771
      %v1208 = vmul.f32 %v1199, %v760
      %v1209 = vmul.f32 %v1203, %v772
      %v1210 = vmul.f32 %v1199, %v761
      %v1211 = vmul.f32 %v1203, %v773
      %v1212 = vmul.f32 %v1199, %v762
      %v1213 = vmul.f32 %v1203, %v774
      %v1214 = vadd.f32 %v1185, %v1206
      %v1215 = vadd.f32 %v1186, %v1207
      %v1216 = vadd.f32 %v1187, %v1208
      %v1217 = vadd.f32 %v1188, %v1209
      %v1218 = vadd.f32 %v1189, %v1210
      %v1219 = vadd.f32 %v1190, %v1211
      %v1220 = vadd.f32 %v1191, %v1212
      %v1221 = vadd.f32 %v1192, %v1213
      %s1222 = scalar_lea.vmem %s6, 64
      %v1223 = vld [vmem:[%s1222] sm:$0xff]
      %v1224 = vld [vmem:[%s1222 + $0x8] sm:$0xff]
      %v1225 = vld [vmem:[%s1222 + $0x10] sm:$0xff]
      %v1226 = vld [vmem:[%s1222 + $0x18] sm:$0xff]
      %v1228 = vsel %vm725, %v1223, 0
      %v1231 = vsel %vm725, %v1224, 0
      %v1234 = vsel %vm725, %v1225, 0
      %v1237 = vsel %vm725, %v1226, 0
      %1239 = vmatprep.subr.mxu0 %v1215
      %1240 = vmatpush1.msra.mxu0 %v1214
      %1241 = vmatprep.subr.mxu0 %v1217
      %1242 = vmatpush1.msra.mxu0 %v1216
      %1243 = vmatprep.subr.mxu0 %v1219
      %1244 = vmatpush1.msra.mxu0 %v1218
      %1245 = vmatprep.subr.mxu0 %v1221
      %1246 = vmatpush1.msra.mxu0 %v1220
      %1247 = vmatprep.subr.mxu0 0.0
      %1248 = vmatpush1.msra.mxu0 0.0
      %1249 = vmatprep.subr.mxu0 0.0
      %1250 = vmatpush1.msra.mxu0 0.0
      %1251 = vmatprep.subr.mxu0 0.0
      %1252 = vmatpush1.msra.mxu0 0.0
      %1253 = vmatprep.subr.mxu0 0.0
      %1254 = vmatpush1.msra.mxu0 0.0
      %1255 = vmatprep.subr.mxu0 0.0
      %1256 = vmatpush1.msra.mxu0 0.0
      %1257 = vmatprep.subr.mxu0 0.0
      %1258 = vmatpush1.msra.mxu0 0.0
      %1259 = vmatprep.subr.mxu0 0.0
      %1260 = vmatpush1.msra.mxu0 0.0
      %1261 = vmatprep.subr.mxu0 0.0
      %1262 = vmatpush1.msra.mxu0 0.0
      %1263 = vmatprep.subr.mxu0 0.0
      %1264 = vmatpush1.msra.mxu0 0.0
      %1265 = vmatprep.subr.mxu0 0.0
      %1266 = vmatpush1.msra.mxu0 0.0
      %1267 = vmatprep.subr.mxu0 0.0
      %1268 = vmatpush1.msra.mxu0 0.0
      %1269 = vmatprep.subr.mxu0 0.0
      %1270 = vmatpush1.msra.mxu0 0.0
      %1271 = vmatprep.subr.mxu0 0.0
      %1272 = vmatpush1.msra.mxu0 0.0
      %1273 = vmatprep.subr.mxu0 0.0
      %1274 = vmatpush1.msra.mxu0 0.0
      %1275 = vmatprep.subr.mxu0 0.0
      %1276 = vmatpush1.msra.mxu0 0.0
      %1277 = vmatprep.subr.mxu0 0.0
      %1278 = vmatpush1.msra.mxu0 0.0
      %1279 = vmatprep.subr.mxu0 0.0
      %1280 = vmatpush1.msra.mxu0 0.0
      %1281 = vmatprep.subr.mxu0 0.0
      %1282 = vmatpush1.msra.mxu0 0.0
      %1283 = vmatprep.subr.mxu0 0.0
      %1284 = vmatpush1.msra.mxu0 0.0
      %1285 = vmatprep.subr.mxu0 0.0
      %1286 = vmatpush1.msra.mxu0 0.0
      %1287 = vmatprep.subr.mxu0 0.0
      %1288 = vmatpush1.msra.mxu0 0.0
      %1289 = vmatprep.subr.mxu0 0.0
      %1290 = vmatpush1.msra.mxu0 0.0
      %1291 = vmatprep.subr.mxu0 0.0
      %1292 = vmatpush1.msra.mxu0 0.0
      %1293 = vmatprep.subr.mxu0 0.0
      %1294 = vmatpush1.msra.mxu0 0.0
      %1295 = vmatprep.subr.mxu0 0.0
      %1296 = vmatpush1.msra.mxu0 0.0
      %1297 = vmatprep.subr.mxu0 0.0
      %1298 = vmatpush1.msra.mxu0 0.0
      %1299 = vmatprep.subr.mxu0 0.0
      %1300 = vmatpush1.msra.mxu0 0.0
      %1301 = vmatprep.subr.mxu0 0.0
      %1302 = vmatpush1.msra.mxu0 0.0
      %1303 = vmatprep.mubr.f32.mxu0 0.0
      %1304 = vmatmul.mubr.f32.gmra.mrb[0].mxu0 %v1228
      %v1305 = vpop.f32.mrb[0].mxu0
      %v1306 = vadd.f32 0.0, %v1305
      %v1307 = vpop.f32.mrb[0].mxu0
      %v1308 = vadd.f32 0.0, %v1307
      %1309 = vmatprep.mubr.f32.mxu0 0.0
      %1310 = vmatmul.mubr.f32.gmra.mrb[0].mxu0 %v1231
      %v1311 = vpop.f32.mrb[0].mxu0
      %v1312 = vadd.f32 0.0, %v1311
      %v1313 = vpop.f32.mrb[0].mxu0
      %v1314 = vadd.f32 0.0, %v1313
      %1315 = vmatprep.mubr.f32.mxu0 0.0
      %1316 = vmatmul.mubr.f32.gmra.mrb[0].mxu0 %v1234
      %v1317 = vpop.f32.mrb[0].mxu0
      %v1318 = vadd.f32 0.0, %v1317
      %v1319 = vpop.f32.mrb[0].mxu0
      %v1320 = vadd.f32 0.0, %v1319
      %1321 = vmatprep.mubr.f32.mxu0 0.0
      %1322 = vmatmul.mubr.f32.gmra.mrb[0].mxu0 %v1237
      %v1323 = vpop.f32.mrb[0].mxu0
      %v1324 = vadd.f32 0.0, %v1323
      %v1325 = vpop.f32.mrb[0].mxu0
      %v1326 = vadd.f32 0.0, %v1325
      %1327 = vdwg.mxu0
      %v1328 = vadd.f32 %v1121, %v1306
      %v1329 = vadd.f32 %v1123, %v1308
      %v1330 = vadd.f32 %v1127, %v1312
      %v1331 = vadd.f32 %v1129, %v1314
      %v1332 = vadd.f32 %v1133, %v1318
      %v1333 = vadd.f32 %v1135, %v1320
      %v1334 = vadd.f32 %v1139, %v1324
      %v1335 = vadd.f32 %v1141, %v1326
      %s1336 = scalar_lea.vmem %s5, 17
      %v1337 = vld [vmem:[%s1336] ss:$8 sm:$0x3]
      %v1339 = vlaneseq
      %v1340 = vshrl.u32 %v1339, 7
      %v1341 = vsub.s32 0, %v1340
      %v1342 = vrot.slane %v1337, %v1341
      %v1343 = vlaneseq
      %v1344 = vshrl.u32 %v1343, 7
      %v1345 = vsub.s32 1, %v1344
      %v1346 = vrot.slane %v1337, %v1345
      %v1349 = vmul.f32 %v1342, %v738
      %v1350 = vmul.f32 %v1346, %v726
      %v1351 = vmul.f32 %v1342, %v739
      %v1352 = vmul.f32 %v1346, %v727
      %v1353 = vmul.f32 %v1342, %v740
      %v1354 = vmul.f32 %v1346, %v728
      %v1355 = vmul.f32 %v1342, %v741
      %v1356 = vmul.f32 %v1346, %v729
      %s1357 = scalar_lea.vmem %s5, 18
      %v1358 = vld [vmem:[%s1357] ss:$8 sm:$0x3]
      %v1360 = vlaneseq
      %v1361 = vshrl.u32 %v1360, 7
      %v1362 = vsub.s32 0, %v1361
      %v1363 = vrot.slane %v1358, %v1362
      %v1364 = vlaneseq
      %v1365 = vshrl.u32 %v1364, 7
      %v1366 = vsub.s32 1, %v1365
      %v1367 = vrot.slane %v1358, %v1366
      %v1370 = vmul.f32 %v1363, %v693
      %v1371 = vmul.f32 %v1367, %v694
      %v1372 = vmul.f32 %v1363, %v695
      %v1373 = vmul.f32 %v1367, %v696
      %v1374 = vmul.f32 %v1363, %v697
      %v1375 = vmul.f32 %v1367, %v698
      %v1376 = vmul.f32 %v1363, %v699
      %v1377 = vmul.f32 %v1367, %v700
      %v1378 = vadd.f32 %v1349, %v1370
      %v1379 = vadd.f32 %v1350, %v1371
      %v1380 = vadd.f32 %v1351, %v1372
      %v1381 = vadd.f32 %v1352, %v1373
      %v1382 = vadd.f32 %v1353, %v1374
      %v1383 = vadd.f32 %v1354, %v1375
      %v1384 = vadd.f32 %v1355, %v1376
      %v1385 = vadd.f32 %v1356, %v1377
      %s1386 = scalar_lea.vmem %s5, 19
      %v1387 = vld [vmem:[%s1386] ss:$8 sm:$0x3]
      %v1389 = vlaneseq
      %v1390 = vshrl.u32 %v1389, 7
      %v1391 = vsub.s32 0, %v1390
      %v1392 = vrot.slane %v1387, %v1391
      %v1393 = vlaneseq
      %v1394 = vshrl.u32 %v1393, 7
      %v1395 = vsub.s32 1, %v1394
      %v1396 = vrot.slane %v1387, %v1395
      %v1399 = vmul.f32 %v1392, %v759
      %v1400 = vmul.f32 %v1396, %v771
      %v1401 = vmul.f32 %v1392, %v760
      %v1402 = vmul.f32 %v1396, %v772
      %v1403 = vmul.f32 %v1392, %v761
      %v1404 = vmul.f32 %v1396, %v773
      %v1405 = vmul.f32 %v1392, %v762
      %v1406 = vmul.f32 %v1396, %v774
      %v1407 = vadd.f32 %v1378, %v1399
      %v1408 = vadd.f32 %v1379, %v1400
      %v1409 = vadd.f32 %v1380, %v1401
      %v1410 = vadd.f32 %v1381, %v1402
      %v1411 = vadd.f32 %v1382, %v1403
      %v1412 = vadd.f32 %v1383, %v1404
      %v1413 = vadd.f32 %v1384, %v1405
      %v1414 = vadd.f32 %v1385, %v1406
      %s1415 = scalar_lea.vmem %s6, 96
      %v1416 = vld [vmem:[%s1415] sm:$0xff]
      %v1417 = vld [vmem:[%s1415 + $0x8] sm:$0xff]
      %v1418 = vld [vmem:[%s1415 + $0x10] sm:$0xff]
      %v1419 = vld [vmem:[%s1415 + $0x18] sm:$0xff]
      %v1421 = vsel %vm725, %v1416, 0
      %v1424 = vsel %vm725, %v1417, 0
      %v1427 = vsel %vm725, %v1418, 0
      %v1430 = vsel %vm725, %v1419, 0
      %1432 = vmatprep.subr.mxu0 %v1408
      %1433 = vmatpush1.msra.mxu0 %v1407
      %1434 = vmatprep.subr.mxu0 %v1410
      %1435 = vmatpush1.msra.mxu0 %v1409
      %1436 = vmatprep.subr.mxu0 %v1412
      %1437 = vmatpush1.msra.mxu0 %v1411
      %1438 = vmatprep.subr.mxu0 %v1414
      %1439 = vmatpush1.msra.mxu0 %v1413
      %1440 = vmatprep.subr.mxu0 0.0
      %1441 = vmatpush1.msra.mxu0 0.0
      %1442 = vmatprep.subr.mxu0 0.0
      %1443 = vmatpush1.msra.mxu0 0.0
      %1444 = vmatprep.subr.mxu0 0.0
      %1445 = vmatpush1.msra.mxu0 0.0
      %1446 = vmatprep.subr.mxu0 0.0
      %1447 = vmatpush1.msra.mxu0 0.0
      %1448 = vmatprep.subr.mxu0 0.0
      %1449 = vmatpush1.msra.mxu0 0.0
      %1450 = vmatprep.subr.mxu0 0.0
      %1451 = vmatpush1.msra.mxu0 0.0
      %1452 = vmatprep.subr.mxu0 0.0
      %1453 = vmatpush1.msra.mxu0 0.0
      %1454 = vmatprep.subr.mxu0 0.0
      %1455 = vmatpush1.msra.mxu0 0.0
      %1456 = vmatprep.subr.mxu0 0.0
      %1457 = vmatpush1.msra.mxu0 0.0
      %1458 = vmatprep.subr.mxu0 0.0
      %1459 = vmatpush1.msra.mxu0 0.0
      %1460 = vmatprep.subr.mxu0 0.0
      %1461 = vmatpush1.msra.mxu0 0.0
      %1462 = vmatprep.subr.mxu0 0.0
      %1463 = vmatpush1.msra.mxu0 0.0
      %1464 = vmatprep.subr.mxu0 0.0
      %1465 = vmatpush1.msra.mxu0 0.0
      %1466 = vmatprep.subr.mxu0 0.0
      %1467 = vmatpush1.msra.mxu0 0.0
      %1468 = vmatprep.subr.mxu0 0.0
      %1469 = vmatpush1.msra.mxu0 0.0
      %1470 = vmatprep.subr.mxu0 0.0
      %1471 = vmatpush1.msra.mxu0 0.0
      %1472 = vmatprep.subr.mxu0 0.0
      %1473 = vmatpush1.msra.mxu0 0.0
      %1474 = vmatprep.subr.mxu0 0.0
      %1475 = vmatpush1.msra.mxu0 0.0
      %1476 = vmatprep.subr.mxu0 0.0
      %1477 = vmatpush1.msra.mxu0 0.0
      %1478 = vmatprep.subr.mxu0 0.0
      %1479 = vmatpush1.msra.mxu0 0.0
      %1480 = vmatprep.subr.mxu0 0.0
      %1481 = vmatpush1.msra.mxu0 0.0
      %1482 = vmatprep.subr.mxu0 0.0
      %1483 = vmatpush1.msra.mxu0 0.0
      %1484 = vmatprep.subr.mxu0 0.0
      %1485 = vmatpush1.msra.mxu0 0.0
      %1486 = vmatprep.subr.mxu0 0.0
      %1487 = vmatpush1.msra.mxu0 0.0
      %1488 = vmatprep.subr.mxu0 0.0
      %1489 = vmatpush1.msra.mxu0 0.0
      %1490 = vmatprep.subr.mxu0 0.0
      %1491 = vmatpush1.msra.mxu0 0.0
      %1492 = vmatprep.subr.mxu0 0.0
      %1493 = vmatpush1.msra.mxu0 0.0
      %1494 = vmatprep.subr.mxu0 0.0
      %1495 = vmatpush1.msra.mxu0 0.0
      %1496 = vmatprep.mubr.f32.mxu0 0.0
      %1497 = vmatmul.mubr.f32.gmra.mrb[0].mxu0 %v1421
      %v1498 = vpop.f32.mrb[0].mxu0
      %v1499 = vadd.f32 0.0, %v1498
      %v1500 = vpop.f32.mrb[0].mxu0
      %v1501 = vadd.f32 0.0, %v1500
      %1502 = vmatprep.mubr.f32.mxu0 0.0
      %1503 = vmatmul.mubr.f32.gmra.mrb[0].mxu0 %v1424
      %v1504 = vpop.f32.mrb[0].mxu0
      %v1505 = vadd.f32 0.0, %v1504
      %v1506 = vpop.f32.mrb[0].mxu0
      %v1507 = vadd.f32 0.0, %v1506
      %1508 = vmatprep.mubr.f32.mxu0 0.0
      %1509 = vmatmul.mubr.f32.gmra.mrb[0].mxu0 %v1427
      %v1510 = vpop.f32.mrb[0].mxu0
      %v1511 = vadd.f32 0.0, %v1510
      %v1512 = vpop.f32.mrb[0].mxu0
      %v1513 = vadd.f32 0.0, %v1512
      %1514 = vmatprep.mubr.f32.mxu0 0.0
      %1515 = vmatmul.mubr.f32.gmra.mrb[0].mxu0 %v1430
      %v1516 = vpop.f32.mrb[0].mxu0
      %v1517 = vadd.f32 0.0, %v1516
      %v1518 = vpop.f32.mrb[0].mxu0
      %v1519 = vadd.f32 0.0, %v1518
      %1520 = vdwg.mxu0
      %v1521 = vadd.f32 %v1328, %v1499
      %v1522 = vadd.f32 %v1329, %v1501
      %v1523 = vadd.f32 %v1330, %v1505
      %v1524 = vadd.f32 %v1331, %v1507
      %v1525 = vadd.f32 %v1332, %v1511
      %v1526 = vadd.f32 %v1333, %v1513
      %v1527 = vadd.f32 %v1334, %v1517
      %v1528 = vadd.f32 %v1335, %v1519
      %s1529 = scalar_lea.vmem %s5, 20
      %v1530 = vld [vmem:[%s1529] ss:$8 sm:$0x3]
      %v1532 = vlaneseq
      %v1533 = vshrl.u32 %v1532, 7
      %v1534 = vsub.s32 0, %v1533
      %v1535 = vrot.slane %v1530, %v1534
      %v1536 = vlaneseq
      %v1537 = vshrl.u32 %v1536, 7
      %v1538 = vsub.s32 1, %v1537
      %v1539 = vrot.slane %v1530, %v1538
      %v1542 = vmul.f32 %v1535, %v738
      %v1543 = vmul.f32 %v1539, %v726
      %v1544 = vmul.f32 %v1535, %v739
      %v1545 = vmul.f32 %v1539, %v727
      %v1546 = vmul.f32 %v1535, %v740
      %v1547 = vmul.f32 %v1539, %v728
      %v1548 = vmul.f32 %v1535, %v741
      %v1549 = vmul.f32 %v1539, %v729
      %s1550 = scalar_lea.vmem %s5, 21
      %v1551 = vld [vmem:[%s1550] ss:$8 sm:$0x3]
      %v1553 = vlaneseq
      %v1554 = vshrl.u32 %v1553, 7
      %v1555 = vsub.s32 0, %v1554
      %v1556 = vrot.slane %v1551, %v1555
      %v1557 = vlaneseq
      %v1558 = vshrl.u32 %v1557, 7
      %v1559 = vsub.s32 1, %v1558
      %v1560 = vrot.slane %v1551, %v1559
      %v1563 = vmul.f32 %v1556, %v693
      %v1564 = vmul.f32 %v1560, %v694
      %v1565 = vmul.f32 %v1556, %v695
      %v1566 = vmul.f32 %v1560, %v696
      %v1567 = vmul.f32 %v1556, %v697
      %v1568 = vmul.f32 %v1560, %v698
      %v1569 = vmul.f32 %v1556, %v699
      %v1570 = vmul.f32 %v1560, %v700
      %v1571 = vadd.f32 %v1542, %v1563
      %v1572 = vadd.f32 %v1543, %v1564
      %v1573 = vadd.f32 %v1544, %v1565
      %v1574 = vadd.f32 %v1545, %v1566
      %v1575 = vadd.f32 %v1546, %v1567
      %v1576 = vadd.f32 %v1547, %v1568
      %v1577 = vadd.f32 %v1548, %v1569
      %v1578 = vadd.f32 %v1549, %v1570
      %s1579 = scalar_lea.vmem %s5, 22
      %v1580 = vld [vmem:[%s1579] ss:$8 sm:$0x3]
      %v1582 = vlaneseq
      %v1583 = vshrl.u32 %v1582, 7
      %v1584 = vsub.s32 0, %v1583
      %v1585 = vrot.slane %v1580, %v1584
      %v1586 = vlaneseq
      %v1587 = vshrl.u32 %v1586, 7
      %v1588 = vsub.s32 1, %v1587
      %v1589 = vrot.slane %v1580, %v1588
      %v1592 = vmul.f32 %v1585, %v759
      %v1593 = vmul.f32 %v1589, %v771
      %v1594 = vmul.f32 %v1585, %v760
      %v1595 = vmul.f32 %v1589, %v772
      %v1596 = vmul.f32 %v1585, %v761
      %v1597 = vmul.f32 %v1589, %v773
      %v1598 = vmul.f32 %v1585, %v762
      %v1599 = vmul.f32 %v1589, %v774
      %v1600 = vadd.f32 %v1571, %v1592
      %v1601 = vadd.f32 %v1572, %v1593
      %v1602 = vadd.f32 %v1573, %v1594
      %v1603 = vadd.f32 %v1574, %v1595
      %v1604 = vadd.f32 %v1575, %v1596
      %v1605 = vadd.f32 %v1576, %v1597
      %v1606 = vadd.f32 %v1577, %v1598
      %v1607 = vadd.f32 %v1578, %v1599
      %s1608 = scalar_lea.vmem %s6, 128
      %v1609 = vld [vmem:[%s1608] sm:$0xff]
      %v1610 = vld [vmem:[%s1608 + $0x8] sm:$0xff]
      %v1611 = vld [vmem:[%s1608 + $0x10] sm:$0xff]
      %v1612 = vld [vmem:[%s1608 + $0x18] sm:$0xff]
      %v1614 = vsel %vm725, %v1609, 0
      %v1617 = vsel %vm725, %v1610, 0
      %v1620 = vsel %vm725, %v1611, 0
      %v1623 = vsel %vm725, %v1612, 0
      %1625 = vmatprep.subr.mxu0 %v1601
      %1626 = vmatpush1.msra.mxu0 %v1600
      %1627 = vmatprep.subr.mxu0 %v1603
      %1628 = vmatpush1.msra.mxu0 %v1602
      %1629 = vmatprep.subr.mxu0 %v1605
      %1630 = vmatpush1.msra.mxu0 %v1604
      %1631 = vmatprep.subr.mxu0 %v1607
      %1632 = vmatpush1.msra.mxu0 %v1606
      %1633 = vmatprep.subr.mxu0 0.0
      %1634 = vmatpush1.msra.mxu0 0.0
      %1635 = vmatprep.subr.mxu0 0.0
      %1636 = vmatpush1.msra.mxu0 0.0
      %1637 = vmatprep.subr.mxu0 0.0
      %1638 = vmatpush1.msra.mxu0 0.0
      %1639 = vmatprep.subr.mxu0 0.0
      %1640 = vmatpush1.msra.mxu0 0.0
      %1641 = vmatprep.subr.mxu0 0.0
      %1642 = vmatpush1.msra.mxu0 0.0
      %1643 = vmatprep.subr.mxu0 0.0
      %1644 = vmatpush1.msra.mxu0 0.0
      %1645 = vmatprep.subr.mxu0 0.0
      %1646 = vmatpush1.msra.mxu0 0.0
      %1647 = vmatprep.subr.mxu0 0.0
      %1648 = vmatpush1.msra.mxu0 0.0
      %1649 = vmatprep.subr.mxu0 0.0
      %1650 = vmatpush1.msra.mxu0 0.0
      %1651 = vmatprep.subr.mxu0 0.0
      %1652 = vmatpush1.msra.mxu0 0.0
      %1653 = vmatprep.subr.mxu0 0.0
      %1654 = vmatpush1.msra.mxu0 0.0
      %1655 = vmatprep.subr.mxu0 0.0
      %1656 = vmatpush1.msra.mxu0 0.0
      %1657 = vmatprep.subr.mxu0 0.0
      %1658 = vmatpush1.msra.mxu0 0.0
      %1659 = vmatprep.subr.mxu0 0.0
      %1660 = vmatpush1.msra.mxu0 0.0
      %1661 = vmatprep.subr.mxu0 0.0
      %1662 = vmatpush1.msra.mxu0 0.0
      %1663 = vmatprep.subr.mxu0 0.0
      %1664 = vmatpush1.msra.mxu0 0.0
      %1665 = vmatprep.subr.mxu0 0.0
      %1666 = vmatpush1.msra.mxu0 0.0
      %1667 = vmatprep.subr.mxu0 0.0
      %1668 = vmatpush1.msra.mxu0 0.0
      %1669 = vmatprep.subr.mxu0 0.0
      %1670 = vmatpush1.msra.mxu0 0.0
      %1671 = vmatprep.subr.mxu0 0.0
      %1672 = vmatpush1.msra.mxu0 0.0
      %1673 = vmatprep.subr.mxu0 0.0
      %1674 = vmatpush1.msra.mxu0 0.0
      %1675 = vmatprep.subr.mxu0 0.0
      %1676 = vmatpush1.msra.mxu0 0.0
      %1677 = vmatprep.subr.mxu0 0.0
      %1678 = vmatpush1.msra.mxu0 0.0
      %1679 = vmatprep.subr.mxu0 0.0
      %1680 = vmatpush1.msra.mxu0 0.0
      %1681 = vmatprep.subr.mxu0 0.0
      %1682 = vmatpush1.msra.mxu0 0.0
      %1683 = vmatprep.subr.mxu0 0.0
      %1684 = vmatpush1.msra.mxu0 0.0
      %1685 = vmatprep.subr.mxu0 0.0
      %1686 = vmatpush1.msra.mxu0 0.0
      %1687 = vmatprep.subr.mxu0 0.0
      %1688 = vmatpush1.msra.mxu0 0.0
      %1689 = vmatprep.mubr.f32.mxu0 0.0
      %1690 = vmatmul.mubr.f32.gmra.mrb[0].mxu0 %v1614
      %v1691 = vpop.f32.mrb[0].mxu0
      %v1692 = vadd.f32 0.0, %v1691
      %v1693 = vpop.f32.mrb[0].mxu0
      %v1694 = vadd.f32 0.0, %v1693
      %1695 = vmatprep.mubr.f32.mxu0 0.0
      %1696 = vmatmul.mubr.f32.gmra.mrb[0].mxu0 %v1617
      %v1697 = vpop.f32.mrb[0].mxu0
      %v1698 = vadd.f32 0.0, %v1697
      %v1699 = vpop.f32.mrb[0].mxu0
      %v1700 = vadd.f32 0.0, %v1699
      %1701 = vmatprep.mubr.f32.mxu0 0.0
      %1702 = vmatmul.mubr.f32.gmra.mrb[0].mxu0 %v1620
      %v1703 = vpop.f32.mrb[0].mxu0
      %v1704 = vadd.f32 0.0, %v1703
      %v1705 = vpop.f32.mrb[0].mxu0
      %v1706 = vadd.f32 0.0, %v1705
      %1707 = vmatprep.mubr.f32.mxu0 0.0
      %1708 = vmatmul.mubr.f32.gmra.mrb[0].mxu0 %v1623
      %v1709 = vpop.f32.mrb[0].mxu0
      %v1710 = vadd.f32 0.0, %v1709
      %v1711 = vpop.f32.mrb[0].mxu0
      %v1712 = vadd.f32 0.0, %v1711
      %1713 = vdwg.mxu0
      %v1714 = vadd.f32 %v1521, %v1692
      %v1715 = vadd.f32 %v1522, %v1694
      %v1716 = vadd.f32 %v1523, %v1698
      %v1717 = vadd.f32 %v1524, %v1700
      %v1718 = vadd.f32 %v1525, %v1704
      %v1719 = vadd.f32 %v1526, %v1706
      %v1720 = vadd.f32 %v1527, %v1710
      %v1721 = vadd.f32 %v1528, %v1712
      %s1722 = scalar_lea.vmem %s5, 23
      %v1723 = vld [vmem:[%s1722] ss:$8 sm:$0x3]
      %v1725 = vlaneseq
      %v1726 = vshrl.u32 %v1725, 7
      %v1727 = vsub.s32 0, %v1726
      %v1728 = vrot.slane %v1723, %v1727
      %v1729 = vlaneseq
      %v1730 = vshrl.u32 %v1729, 7
      %v1731 = vsub.s32 1, %v1730
      %v1732 = vrot.slane %v1723, %v1731
      %v1735 = vmul.f32 %v1728, %v738
      %v1736 = vmul.f32 %v1732, %v726
      %v1737 = vmul.f32 %v1728, %v739
      %v1738 = vmul.f32 %v1732, %v727
      %v1739 = vmul.f32 %v1728, %v740
      %v1740 = vmul.f32 %v1732, %v728
      %v1741 = vmul.f32 %v1728, %v741
      %v1742 = vmul.f32 %v1732, %v729
      %s1743 = scalar_lea.vmem %s5, 32
      %v1744 = vld [vmem:[%s1743] ss:$8 sm:$0x3]
      %v1746 = vlaneseq
      %v1747 = vshrl.u32 %v1746, 7
      %v1748 = vsub.s32 0, %v1747
      %v1749 = vrot.slane %v1744, %v1748
      %v1750 = vlaneseq
      %v1751 = vshrl.u32 %v1750, 7
      %v1752 = vsub.s32 1, %v1751
      %v1753 = vrot.slane %v1744, %v1752
      %v1756 = vmul.f32 %v1749, %v693
      %v1757 = vmul.f32 %v1753, %v694
      %v1758 = vmul.f32 %v1749, %v695
      %v1759 = vmul.f32 %v1753, %v696
      %v1760 = vmul.f32 %v1749, %v697
      %v1761 = vmul.f32 %v1753, %v698
      %v1762 = vmul.f32 %v1749, %v699
      %v1763 = vmul.f32 %v1753, %v700
      %v1764 = vadd.f32 %v1735, %v1756
      %v1765 = vadd.f32 %v1736, %v1757
      %v1766 = vadd.f32 %v1737, %v1758
      %v1767 = vadd.f32 %v1738, %v1759
      %v1768 = vadd.f32 %v1739, %v1760
      %v1769 = vadd.f32 %v1740, %v1761
      %v1770 = vadd.f32 %v1741, %v1762
      %v1771 = vadd.f32 %v1742, %v1763
      %s1772 = scalar_lea.vmem %s5, 33
      %v1773 = vld [vmem:[%s1772] ss:$8 sm:$0x3]
      %v1775 = vlaneseq
      %v1776 = vshrl.u32 %v1775, 7
      %v1777 = vsub.s32 0, %v1776
      %v1778 = vrot.slane %v1773, %v1777
      %v1779 = vlaneseq
      %v1780 = vshrl.u32 %v1779, 7
      %v1781 = vsub.s32 1, %v1780
      %v1782 = vrot.slane %v1773, %v1781
      %v1785 = vmul.f32 %v1778, %v759
      %v1786 = vmul.f32 %v1782, %v771
      %v1787 = vmul.f32 %v1778, %v760
      %v1788 = vmul.f32 %v1782, %v772
      %v1789 = vmul.f32 %v1778, %v761
      %v1790 = vmul.f32 %v1782, %v773
      %v1791 = vmul.f32 %v1778, %v762
      %v1792 = vmul.f32 %v1782, %v774
      %v1793 = vadd.f32 %v1764, %v1785
      %v1794 = vadd.f32 %v1765, %v1786
      %v1795 = vadd.f32 %v1766, %v1787
      %v1796 = vadd.f32 %v1767, %v1788
      %v1797 = vadd.f32 %v1768, %v1789
      %v1798 = vadd.f32 %v1769, %v1790
      %v1799 = vadd.f32 %v1770, %v1791
      %v1800 = vadd.f32 %v1771, %v1792
      %s1801 = scalar_lea.vmem %s6, 160
      %v1802 = vld [vmem:[%s1801] sm:$0xff]
      %v1803 = vld [vmem:[%s1801 + $0x8] sm:$0xff]
      %v1804 = vld [vmem:[%s1801 + $0x10] sm:$0xff]
      %v1805 = vld [vmem:[%s1801 + $0x18] sm:$0xff]
      %v1807 = vsel %vm725, %v1802, 0
      %v1810 = vsel %vm725, %v1803, 0
      %v1813 = vsel %vm725, %v1804, 0
      %v1816 = vsel %vm725, %v1805, 0
      %1818 = vmatprep.subr.mxu0 %v1794
      %1819 = vmatpush1.msra.mxu0 %v1793
      %1820 = vmatprep.subr.mxu0 %v1796
      %1821 = vmatpush1.msra.mxu0 %v1795
      %1822 = vmatprep.subr.mxu0 %v1798
      %1823 = vmatpush1.msra.mxu0 %v1797
      %1824 = vmatprep.subr.mxu0 %v1800
      %1825 = vmatpush1.msra.mxu0 %v1799
      %1826 = vmatprep.subr.mxu0 0.0
      %1827 = vmatpush1.msra.mxu0 0.0
      %1828 = vmatprep.subr.mxu0 0.0
      %1829 = vmatpush1.msra.mxu0 0.0
      %1830 = vmatprep.subr.mxu0 0.0
      %1831 = vmatpush1.msra.mxu0 0.0
      %1832 = vmatprep.subr.mxu0 0.0
      %1833 = vmatpush1.msra.mxu0 0.0
      %1834 = vmatprep.subr.mxu0 0.0
      %1835 = vmatpush1.msra.mxu0 0.0
      %1836 = vmatprep.subr.mxu0 0.0
      %1837 = vmatpush1.msra.mxu0 0.0
      %1838 = vmatprep.subr.mxu0 0.0
      %1839 = vmatpush1.msra.mxu0 0.0
      %1840 = vmatprep.subr.mxu0 0.0
      %1841 = vmatpush1.msra.mxu0 0.0
      %1842 = vmatprep.subr.mxu0 0.0
      %1843 = vmatpush1.msra.mxu0 0.0
      %1844 = vmatprep.subr.mxu0 0.0
      %1845 = vmatpush1.msra.mxu0 0.0
      %1846 = vmatprep.subr.mxu0 0.0
      %1847 = vmatpush1.msra.mxu0 0.0
      %1848 = vmatprep.subr.mxu0 0.0
      %1849 = vmatpush1.msra.mxu0 0.0
      %1850 = vmatprep.subr.mxu0 0.0
      %1851 = vmatpush1.msra.mxu0 0.0
      %1852 = vmatprep.subr.mxu0 0.0
      %1853 = vmatpush1.msra.mxu0 0.0
      %1854 = vmatprep.subr.mxu0 0.0
      %1855 = vmatpush1.msra.mxu0 0.0
      %1856 = vmatprep.subr.mxu0 0.0
      %1857 = vmatpush1.msra.mxu0 0.0
      %1858 = vmatprep.subr.mxu0 0.0
      %1859 = vmatpush1.msra.mxu0 0.0
      %1860 = vmatprep.subr.mxu0 0.0
      %1861 = vmatpush1.msra.mxu0 0.0
      %1862 = vmatprep.subr.mxu0 0.0
      %1863 = vmatpush1.msra.mxu0 0.0
      %1864 = vmatprep.subr.mxu0 0.0
      %1865 = vmatpush1.msra.mxu0 0.0
      %1866 = vmatprep.subr.mxu0 0.0
      %1867 = vmatpush1.msra.mxu0 0.0
      %1868 = vmatprep.subr.mxu0 0.0
      %1869 = vmatpush1.msra.mxu0 0.0
      %1870 = vmatprep.subr.mxu0 0.0
      %1871 = vmatpush1.msra.mxu0 0.0
      %1872 = vmatprep.subr.mxu0 0.0
      %1873 = vmatpush1.msra.mxu0 0.0
      %1874 = vmatprep.subr.mxu0 0.0
      %1875 = vmatpush1.msra.mxu0 0.0
      %1876 = vmatprep.subr.mxu0 0.0
      %1877 = vmatpush1.msra.mxu0 0.0
      %1878 = vmatprep.subr.mxu0 0.0
      %1879 = vmatpush1.msra.mxu0 0.0
      %1880 = vmatprep.subr.mxu0 0.0
      %1881 = vmatpush1.msra.mxu0 0.0
      %1882 = vmatprep.mubr.f32.mxu0 0.0
      %1883 = vmatmul.mubr.f32.gmra.mrb[0].mxu0 %v1807
      %v1884 = vpop.f32.mrb[0].mxu0
      %v1885 = vadd.f32 0.0, %v1884
      %v1886 = vpop.f32.mrb[0].mxu0
      %v1887 = vadd.f32 0.0, %v1886
      %1888 = vmatprep.mubr.f32.mxu0 0.0
      %1889 = vmatmul.mubr.f32.gmra.mrb[0].mxu0 %v1810
      %v1890 = vpop.f32.mrb[0].mxu0
      %v1891 = vadd.f32 0.0, %v1890
      %v1892 = vpop.f32.mrb[0].mxu0
      %v1893 = vadd.f32 0.0, %v1892
      %1894 = vmatprep.mubr.f32.mxu0 0.0
      %1895 = vmatmul.mubr.f32.gmra.mrb[0].mxu0 %v1813
      %v1896 = vpop.f32.mrb[0].mxu0
      %v1897 = vadd.f32 0.0, %v1896
      %v1898 = vpop.f32.mrb[0].mxu0
      %v1899 = vadd.f32 0.0, %v1898
      %1900 = vmatprep.mubr.f32.mxu0 0.0
      %1901 = vmatmul.mubr.f32.gmra.mrb[0].mxu0 %v1816
      %v1902 = vpop.f32.mrb[0].mxu0
      %v1903 = vadd.f32 0.0, %v1902
      %v1904 = vpop.f32.mrb[0].mxu0
      %v1905 = vadd.f32 0.0, %v1904
      %1906 = vdwg.mxu0
      %v1907 = vadd.f32 %v1714, %v1885
      %v1908 = vadd.f32 %v1715, %v1887
      %v1909 = vadd.f32 %v1716, %v1891
      %v1910 = vadd.f32 %v1717, %v1893
      %v1911 = vadd.f32 %v1718, %v1897
      %v1912 = vadd.f32 %v1719, %v1899
      %v1913 = vadd.f32 %v1720, %v1903
      %v1914 = vadd.f32 %v1721, %v1905
      %s1915 = scalar_lea.vmem %s5, 34
      %v1916 = vld [vmem:[%s1915] ss:$8 sm:$0x3]
      %v1918 = vlaneseq
      %v1919 = vshrl.u32 %v1918, 7
      %v1920 = vsub.s32 0, %v1919
      %v1921 = vrot.slane %v1916, %v1920
      %v1922 = vlaneseq
      %v1923 = vshrl.u32 %v1922, 7
      %v1924 = vsub.s32 1, %v1923
      %v1925 = vrot.slane %v1916, %v1924
      %v1928 = vmul.f32 %v1921, %v738
      %v1929 = vmul.f32 %v1925, %v726
      %v1930 = vmul.f32 %v1921, %v739
      %v1931 = vmul.f32 %v1925, %v727
      %v1932 = vmul.f32 %v1921, %v740
      %v1933 = vmul.f32 %v1925, %v728
      %v1934 = vmul.f32 %v1921, %v741
      %v1935 = vmul.f32 %v1925, %v729
      %s1936 = scalar_lea.vmem %s5, 35
      %v1937 = vld [vmem:[%s1936] ss:$8 sm:$0x3]
      %v1939 = vlaneseq
      %v1940 = vshrl.u32 %v1939, 7
      %v1941 = vsub.s32 0, %v1940
      %v1942 = vrot.slane %v1937, %v1941
      %v1943 = vlaneseq
      %v1944 = vshrl.u32 %v1943, 7
      %v1945 = vsub.s32 1, %v1944
      %v1946 = vrot.slane %v1937, %v1945
      %v1949 = vmul.f32 %v1942, %v693
      %v1950 = vmul.f32 %v1946, %v694
      %v1951 = vmul.f32 %v1942, %v695
      %v1952 = vmul.f32 %v1946, %v696
      %v1953 = vmul.f32 %v1942, %v697
      %v1954 = vmul.f32 %v1946, %v698
      %v1955 = vmul.f32 %v1942, %v699
      %v1956 = vmul.f32 %v1946, %v700
      %v1957 = vadd.f32 %v1928, %v1949
      %v1958 = vadd.f32 %v1929, %v1950
      %v1959 = vadd.f32 %v1930, %v1951
      %v1960 = vadd.f32 %v1931, %v1952
      %v1961 = vadd.f32 %v1932, %v1953
      %v1962 = vadd.f32 %v1933, %v1954
      %v1963 = vadd.f32 %v1934, %v1955
      %v1964 = vadd.f32 %v1935, %v1956
      %s1965 = scalar_lea.vmem %s5, 36
      %v1966 = vld [vmem:[%s1965] ss:$8 sm:$0x3]
      %v1968 = vlaneseq
      %v1969 = vshrl.u32 %v1968, 7
      %v1970 = vsub.s32 0, %v1969
      %v1971 = vrot.slane %v1966, %v1970
      %v1972 = vlaneseq
      %v1973 = vshrl.u32 %v1972, 7
      %v1974 = vsub.s32 1, %v1973
      %v1975 = vrot.slane %v1966, %v1974
      %v1978 = vmul.f32 %v1971, %v759
      %v1979 = vmul.f32 %v1975, %v771
      %v1980 = vmul.f32 %v1971, %v760
      %v1981 = vmul.f32 %v1975, %v772
      %v1982 = vmul.f32 %v1971, %v761
      %v1983 = vmul.f32 %v1975, %v773
      %v1984 = vmul.f32 %v1971, %v762
      %v1985 = vmul.f32 %v1975, %v774
      %v1986 = vadd.f32 %v1957, %v1978
      %v1987 = vadd.f32 %v1958, %v1979
      %v1988 = vadd.f32 %v1959, %v1980
      %v1989 = vadd.f32 %v1960, %v1981
      %v1990 = vadd.f32 %v1961, %v1982
      %v1991 = vadd.f32 %v1962, %v1983
      %v1992 = vadd.f32 %v1963, %v1984
      %v1993 = vadd.f32 %v1964, %v1985
      %s1994 = scalar_lea.vmem %s6, 192
      %v1995 = vld [vmem:[%s1994] sm:$0xff]
      %v1996 = vld [vmem:[%s1994 + $0x8] sm:$0xff]
      %v1997 = vld [vmem:[%s1994 + $0x10] sm:$0xff]
      %v1998 = vld [vmem:[%s1994 + $0x18] sm:$0xff]
      %v2000 = vsel %vm725, %v1995, 0
      %v2003 = vsel %vm725, %v1996, 0
      %v2006 = vsel %vm725, %v1997, 0
      %v2009 = vsel %vm725, %v1998, 0
      %2011 = vmatprep.subr.mxu0 %v1987
      %2012 = vmatpush1.msra.mxu0 %v1986
      %2013 = vmatprep.subr.mxu0 %v1989
      %2014 = vmatpush1.msra.mxu0 %v1988
      %2015 = vmatprep.subr.mxu0 %v1991
      %2016 = vmatpush1.msra.mxu0 %v1990
      %2017 = vmatprep.subr.mxu0 %v1993
      %2018 = vmatpush1.msra.mxu0 %v1992
      %2019 = vmatprep.subr.mxu0 0.0
      %2020 = vmatpush1.msra.mxu0 0.0
      %2021 = vmatprep.subr.mxu0 0.0
      %2022 = vmatpush1.msra.mxu0 0.0
      %2023 = vmatprep.subr.mxu0 0.0
      %2024 = vmatpush1.msra.mxu0 0.0
      %2025 = vmatprep.subr.mxu0 0.0
      %2026 = vmatpush1.msra.mxu0 0.0
      %2027 = vmatprep.subr.mxu0 0.0
      %2028 = vmatpush1.msra.mxu0 0.0
      %2029 = vmatprep.subr.mxu0 0.0
      %2030 = vmatpush1.msra.mxu0 0.0
      %2031 = vmatprep.subr.mxu0 0.0
      %2032 = vmatpush1.msra.mxu0 0.0
      %2033 = vmatprep.subr.mxu0 0.0
      %2034 = vmatpush1.msra.mxu0 0.0
      %2035 = vmatprep.subr.mxu0 0.0
      %2036 = vmatpush1.msra.mxu0 0.0
      %2037 = vmatprep.subr.mxu0 0.0
      %2038 = vmatpush1.msra.mxu0 0.0
      %2039 = vmatprep.subr.mxu0 0.0
      %2040 = vmatpush1.msra.mxu0 0.0
      %2041 = vmatprep.subr.mxu0 0.0
      %2042 = vmatpush1.msra.mxu0 0.0
      %2043 = vmatprep.subr.mxu0 0.0
      %2044 = vmatpush1.msra.mxu0 0.0
      %2045 = vmatprep.subr.mxu0 0.0
      %2046 = vmatpush1.msra.mxu0 0.0
      %2047 = vmatprep.subr.mxu0 0.0
      %2048 = vmatpush1.msra.mxu0 0.0
      %2049 = vmatprep.subr.mxu0 0.0
      %2050 = vmatpush1.msra.mxu0 0.0
      %2051 = vmatprep.subr.mxu0 0.0
      %2052 = vmatpush1.msra.mxu0 0.0
      %2053 = vmatprep.subr.mxu0 0.0
      %2054 = vmatpush1.msra.mxu0 0.0
      %2055 = vmatprep.subr.mxu0 0.0
      %2056 = vmatpush1.msra.mxu0 0.0
      %2057 = vmatprep.subr.mxu0 0.0
      %2058 = vmatpush1.msra.mxu0 0.0
      %2059 = vmatprep.subr.mxu0 0.0
      %2060 = vmatpush1.msra.mxu0 0.0
      %2061 = vmatprep.subr.mxu0 0.0
      %2062 = vmatpush1.msra.mxu0 0.0
      %2063 = vmatprep.subr.mxu0 0.0
      %2064 = vmatpush1.msra.mxu0 0.0
      %2065 = vmatprep.subr.mxu0 0.0
      %2066 = vmatpush1.msra.mxu0 0.0
      %2067 = vmatprep.subr.mxu0 0.0
      %2068 = vmatpush1.msra.mxu0 0.0
      %2069 = vmatprep.subr.mxu0 0.0
      %2070 = vmatpush1.msra.mxu0 0.0
      %2071 = vmatprep.subr.mxu0 0.0
      %2072 = vmatpush1.msra.mxu0 0.0
      %2073 = vmatprep.subr.mxu0 0.0
      %2074 = vmatpush1.msra.mxu0 0.0
      %2075 = vmatprep.mubr.f32.mxu0 0.0
      %2076 = vmatmul.mubr.f32.gmra.mrb[0].mxu0 %v2000
      %v2077 = vpop.f32.mrb[0].mxu0
      %v2078 = vadd.f32 0.0, %v2077
      %v2079 = vpop.f32.mrb[0].mxu0
      %v2080 = vadd.f32 0.0, %v2079
      %2081 = vmatprep.mubr.f32.mxu0 0.0
      %2082 = vmatmul.mubr.f32.gmra.mrb[0].mxu0 %v2003
      %v2083 = vpop.f32.mrb[0].mxu0
      %v2084 = vadd.f32 0.0, %v2083
      %v2085 = vpop.f32.mrb[0].mxu0
      %v2086 = vadd.f32 0.0, %v2085
      %2087 = vmatprep.mubr.f32.mxu0 0.0
      %2088 = vmatmul.mubr.f32.gmra.mrb[0].mxu0 %v2006
      %v2089 = vpop.f32.mrb[0].mxu0
      %v2090 = vadd.f32 0.0, %v2089
      %v2091 = vpop.f32.mrb[0].mxu0
      %v2092 = vadd.f32 0.0, %v2091
      %2093 = vmatprep.mubr.f32.mxu0 0.0
      %2094 = vmatmul.mubr.f32.gmra.mrb[0].mxu0 %v2009
      %v2095 = vpop.f32.mrb[0].mxu0
      %v2096 = vadd.f32 0.0, %v2095
      %v2097 = vpop.f32.mrb[0].mxu0
      %v2098 = vadd.f32 0.0, %v2097
      %2099 = vdwg.mxu0
      %v2100 = vadd.f32 %v1907, %v2078
      %v2101 = vadd.f32 %v1908, %v2080
      %v2102 = vadd.f32 %v1909, %v2084
      %v2103 = vadd.f32 %v1910, %v2086
      %v2104 = vadd.f32 %v1911, %v2090
      %v2105 = vadd.f32 %v1912, %v2092
      %v2106 = vadd.f32 %v1913, %v2096
      %v2107 = vadd.f32 %v1914, %v2098
      %s2108 = scalar_lea.vmem %s5, 37
      %v2109 = vld [vmem:[%s2108] ss:$8 sm:$0x3]
      %v2111 = vlaneseq
      %v2112 = vshrl.u32 %v2111, 7
      %v2113 = vsub.s32 0, %v2112
      %v2114 = vrot.slane %v2109, %v2113
      %v2115 = vlaneseq
      %v2116 = vshrl.u32 %v2115, 7
      %v2117 = vsub.s32 1, %v2116
      %v2118 = vrot.slane %v2109, %v2117
      %v2121 = vmul.f32 %v2114, %v738
      %v2122 = vmul.f32 %v2118, %v726
      %v2123 = vmul.f32 %v2114, %v739
      %v2124 = vmul.f32 %v2118, %v727
      %v2125 = vmul.f32 %v2114, %v740
      %v2126 = vmul.f32 %v2118, %v728
      %v2127 = vmul.f32 %v2114, %v741
      %v2128 = vmul.f32 %v2118, %v729
      %s2129 = scalar_lea.vmem %s5, 38
      %v2130 = vld [vmem:[%s2129] ss:$8 sm:$0x3]
      %v2132 = vlaneseq
      %v2133 = vshrl.u32 %v2132, 7
      %v2134 = vsub.s32 0, %v2133
      %v2135 = vrot.slane %v2130, %v2134
      %v2136 = vlaneseq
      %v2137 = vshrl.u32 %v2136, 7
      %v2138 = vsub.s32 1, %v2137
      %v2139 = vrot.slane %v2130, %v2138
      %v2142 = vmul.f32 %v2135, %v693
      %v2143 = vmul.f32 %v2139, %v694
      %v2144 = vmul.f32 %v2135, %v695
      %v2145 = vmul.f32 %v2139, %v696
      %v2146 = vmul.f32 %v2135, %v697
      %v2147 = vmul.f32 %v2139, %v698
      %v2148 = vmul.f32 %v2135, %v699
      %v2149 = vmul.f32 %v2139, %v700
      %v2150 = vadd.f32 %v2121, %v2142
      %v2151 = vadd.f32 %v2122, %v2143
      %v2152 = vadd.f32 %v2123, %v2144
      %v2153 = vadd.f32 %v2124, %v2145
      %v2154 = vadd.f32 %v2125, %v2146
      %v2155 = vadd.f32 %v2126, %v2147
      %v2156 = vadd.f32 %v2127, %v2148
      %v2157 = vadd.f32 %v2128, %v2149
      %s2158 = scalar_lea.vmem %s5, 39
      %v2159 = vld [vmem:[%s2158] ss:$8 sm:$0x3]
      %v2161 = vlaneseq
      %v2162 = vshrl.u32 %v2161, 7
      %v2163 = vsub.s32 0, %v2162
      %v2164 = vrot.slane %v2159, %v2163
      %v2165 = vlaneseq
      %v2166 = vshrl.u32 %v2165, 7
      %v2167 = vsub.s32 1, %v2166
      %v2168 = vrot.slane %v2159, %v2167
      %v2171 = vmul.f32 %v2164, %v759
      %v2172 = vmul.f32 %v2168, %v771
      %v2173 = vmul.f32 %v2164, %v760
      %v2174 = vmul.f32 %v2168, %v772
      %v2175 = vmul.f32 %v2164, %v761
      %v2176 = vmul.f32 %v2168, %v773
      %v2177 = vmul.f32 %v2164, %v762
      %v2178 = vmul.f32 %v2168, %v774
      %v2179 = vadd.f32 %v2150, %v2171
      %v2180 = vadd.f32 %v2151, %v2172
      %v2181 = vadd.f32 %v2152, %v2173
      %v2182 = vadd.f32 %v2153, %v2174
      %v2183 = vadd.f32 %v2154, %v2175
      %v2184 = vadd.f32 %v2155, %v2176
      %v2185 = vadd.f32 %v2156, %v2177
      %v2186 = vadd.f32 %v2157, %v2178
      %s2187 = scalar_lea.vmem %s6, 224
      %v2188 = vld [vmem:[%s2187] sm:$0xff]
      %v2189 = vld [vmem:[%s2187 + $0x8] sm:$0xff]
      %v2190 = vld [vmem:[%s2187 + $0x10] sm:$0xff]
      %v2191 = vld [vmem:[%s2187 + $0x18] sm:$0xff]
      %v2193 = vsel %vm725, %v2188, 0
      %v2196 = vsel %vm725, %v2189, 0
      %v2199 = vsel %vm725, %v2190, 0
      %v2202 = vsel %vm725, %v2191, 0
      %2204 = vmatprep.subr.mxu0 %v2180
      %2205 = vmatpush1.msra.mxu0 %v2179
      %2206 = vmatprep.subr.mxu0 %v2182
      %2207 = vmatpush1.msra.mxu0 %v2181
      %2208 = vmatprep.subr.mxu0 %v2184
      %2209 = vmatpush1.msra.mxu0 %v2183
      %2210 = vmatprep.subr.mxu0 %v2186
      %2211 = vmatpush1.msra.mxu0 %v2185
      %2212 = vmatprep.subr.mxu0 0.0
      %2213 = vmatpush1.msra.mxu0 0.0
      %2214 = vmatprep.subr.mxu0 0.0
      %2215 = vmatpush1.msra.mxu0 0.0
      %2216 = vmatprep.subr.mxu0 0.0
      %2217 = vmatpush1.msra.mxu0 0.0
      %2218 = vmatprep.subr.mxu0 0.0
      %2219 = vmatpush1.msra.mxu0 0.0
      %2220 = vmatprep.subr.mxu0 0.0
      %2221 = vmatpush1.msra.mxu0 0.0
      %2222 = vmatprep.subr.mxu0 0.0
      %2223 = vmatpush1.msra.mxu0 0.0
      %2224 = vmatprep.subr.mxu0 0.0
      %2225 = vmatpush1.msra.mxu0 0.0
      %2226 = vmatprep.subr.mxu0 0.0
      %2227 = vmatpush1.msra.mxu0 0.0
      %2228 = vmatprep.subr.mxu0 0.0
      %2229 = vmatpush1.msra.mxu0 0.0
      %2230 = vmatprep.subr.mxu0 0.0
      %2231 = vmatpush1.msra.mxu0 0.0
      %2232 = vmatprep.subr.mxu0 0.0
      %2233 = vmatpush1.msra.mxu0 0.0
      %2234 = vmatprep.subr.mxu0 0.0
      %2235 = vmatpush1.msra.mxu0 0.0
      %2236 = vmatprep.subr.mxu0 0.0
      %2237 = vmatpush1.msra.mxu0 0.0
      %2238 = vmatprep.subr.mxu0 0.0
      %2239 = vmatpush1.msra.mxu0 0.0
      %2240 = vmatprep.subr.mxu0 0.0
      %2241 = vmatpush1.msra.mxu0 0.0
      %2242 = vmatprep.subr.mxu0 0.0
      %2243 = vmatpush1.msra.mxu0 0.0
      %2244 = vmatprep.subr.mxu0 0.0
      %2245 = vmatpush1.msra.mxu0 0.0
      %2246 = vmatprep.subr.mxu0 0.0
      %2247 = vmatpush1.msra.mxu0 0.0
      %2248 = vmatprep.subr.mxu0 0.0
      %2249 = vmatpush1.msra.mxu0 0.0
      %2250 = vmatprep.subr.mxu0 0.0
      %2251 = vmatpush1.msra.mxu0 0.0
      %2252 = vmatprep.subr.mxu0 0.0
      %2253 = vmatpush1.msra.mxu0 0.0
      %2254 = vmatprep.subr.mxu0 0.0
      %2255 = vmatpush1.msra.mxu0 0.0
      %2256 = vmatprep.subr.mxu0 0.0
      %2257 = vmatpush1.msra.mxu0 0.0
      %2258 = vmatprep.subr.mxu0 0.0
      %2259 = vmatpush1.msra.mxu0 0.0
      %2260 = vmatprep.subr.mxu0 0.0
      %2261 = vmatpush1.msra.mxu0 0.0
      %2262 = vmatprep.subr.mxu0 0.0
      %2263 = vmatpush1.msra.mxu0 0.0
      %2264 = vmatprep.subr.mxu0 0.0
      %2265 = vmatpush1.msra.mxu0 0.0
      %2266 = vmatprep.subr.mxu0 0.0
      %2267 = vmatpush1.msra.mxu0 0.0
      %2268 = vmatprep.mubr.f32.mxu0 0.0
      %2269 = vmatmul.mubr.f32.gmra.mrb[0].mxu0 %v2193
      %v2270 = vpop.f32.mrb[0].mxu0
      %v2271 = vadd.f32 0.0, %v2270
      %v2272 = vpop.f32.mrb[0].mxu0
      %v2273 = vadd.f32 0.0, %v2272
      %2274 = vmatprep.mubr.f32.mxu0 0.0
      %2275 = vmatmul.mubr.f32.gmra.mrb[0].mxu0 %v2196
      %v2276 = vpop.f32.mrb[0].mxu0
      %v2277 = vadd.f32 0.0, %v2276
      %v2278 = vpop.f32.mrb[0].mxu0
      %v2279 = vadd.f32 0.0, %v2278
      %2280 = vmatprep.mubr.f32.mxu0 0.0
      %2281 = vmatmul.mubr.f32.gmra.mrb[0].mxu0 %v2199
      %v2282 = vpop.f32.mrb[0].mxu0
      %v2283 = vadd.f32 0.0, %v2282
      %v2284 = vpop.f32.mrb[0].mxu0
      %v2285 = vadd.f32 0.0, %v2284
      %2286 = vmatprep.mubr.f32.mxu0 0.0
      %2287 = vmatmul.mubr.f32.gmra.mrb[0].mxu0 %v2202
      %v2288 = vpop.f32.mrb[0].mxu0
      %v2289 = vadd.f32 0.0, %v2288
      %v2290 = vpop.f32.mrb[0].mxu0
      %v2291 = vadd.f32 0.0, %v2290
      %2292 = vdwg.mxu0
      %v2293 = vadd.f32 %v2100, %v2271
      %v2294 = vadd.f32 %v2101, %v2273
      %v2295 = vadd.f32 %v2102, %v2277
      %v2296 = vadd.f32 %v2103, %v2279
      %v2297 = vadd.f32 %v2104, %v2283
      %v2298 = vadd.f32 %v2105, %v2285
      %v2299 = vadd.f32 %v2106, %v2289
      %v2300 = vadd.f32 %v2107, %v2291
      %s2301 = scalar_lea.vmem %s5, 48
      %v2302 = vld [vmem:[%s2301] ss:$8 sm:$0x3]
      %v2304 = vlaneseq
      %v2305 = vshrl.u32 %v2304, 7
      %v2306 = vsub.s32 0, %v2305
      %v2307 = vrot.slane %v2302, %v2306
      %v2308 = vlaneseq
      %v2309 = vshrl.u32 %v2308, 7
      %v2310 = vsub.s32 1, %v2309
      %v2311 = vrot.slane %v2302, %v2310
      %v2314 = vmul.f32 %v2307, %v738
      %v2315 = vmul.f32 %v2311, %v726
      %v2316 = vmul.f32 %v2307, %v739
      %v2317 = vmul.f32 %v2311, %v727
      %v2318 = vmul.f32 %v2307, %v740
      %v2319 = vmul.f32 %v2311, %v728
      %v2320 = vmul.f32 %v2307, %v741
      %v2321 = vmul.f32 %v2311, %v729
      %s2322 = scalar_lea.vmem %s5, 49
      %v2323 = vld [vmem:[%s2322] ss:$8 sm:$0x3]
      %v2325 = vlaneseq
      %v2326 = vshrl.u32 %v2325, 7
      %v2327 = vsub.s32 0, %v2326
      %v2328 = vrot.slane %v2323, %v2327
      %v2329 = vlaneseq
      %v2330 = vshrl.u32 %v2329, 7
      %v2331 = vsub.s32 1, %v2330
      %v2332 = vrot.slane %v2323, %v2331
      %v2335 = vmul.f32 %v2328, %v693
      %v2336 = vmul.f32 %v2332, %v694
      %v2337 = vmul.f32 %v2328, %v695
      %v2338 = vmul.f32 %v2332, %v696
      %v2339 = vmul.f32 %v2328, %v697
      %v2340 = vmul.f32 %v2332, %v698
      %v2341 = vmul.f32 %v2328, %v699
      %v2342 = vmul.f32 %v2332, %v700
      %v2343 = vadd.f32 %v2314, %v2335
      %v2344 = vadd.f32 %v2315, %v2336
      %v2345 = vadd.f32 %v2316, %v2337
      %v2346 = vadd.f32 %v2317, %v2338
      %v2347 = vadd.f32 %v2318, %v2339
      %v2348 = vadd.f32 %v2319, %v2340
      %v2349 = vadd.f32 %v2320, %v2341
      %v2350 = vadd.f32 %v2321, %v2342
      %s2351 = scalar_lea.vmem %s5, 50
      %v2352 = vld [vmem:[%s2351] ss:$8 sm:$0x3]
      %v2354 = vlaneseq
      %v2355 = vshrl.u32 %v2354, 7
      %v2356 = vsub.s32 0, %v2355
      %v2357 = vrot.slane %v2352, %v2356
      %v2358 = vlaneseq
      %v2359 = vshrl.u32 %v2358, 7
      %v2360 = vsub.s32 1, %v2359
      %v2361 = vrot.slane %v2352, %v2360
      %v2364 = vmul.f32 %v2357, %v759
      %v2365 = vmul.f32 %v2361, %v771
      %v2366 = vmul.f32 %v2357, %v760
      %v2367 = vmul.f32 %v2361, %v772
      %v2368 = vmul.f32 %v2357, %v761
      %v2369 = vmul.f32 %v2361, %v773
      %v2370 = vmul.f32 %v2357, %v762
      %v2371 = vmul.f32 %v2361, %v774
      %v2372 = vadd.f32 %v2343, %v2364
      %v2373 = vadd.f32 %v2344, %v2365
      %v2374 = vadd.f32 %v2345, %v2366
      %v2375 = vadd.f32 %v2346, %v2367
      %v2376 = vadd.f32 %v2347, %v2368
      %v2377 = vadd.f32 %v2348, %v2369
      %v2378 = vadd.f32 %v2349, %v2370
      %v2379 = vadd.f32 %v2350, %v2371
      %s2380 = scalar_lea.vmem %s6, 256
      %v2381 = vld [vmem:[%s2380] sm:$0xff]
      %v2382 = vld [vmem:[%s2380 + $0x8] sm:$0xff]
      %v2383 = vld [vmem:[%s2380 + $0x10] sm:$0xff]
      %v2384 = vld [vmem:[%s2380 + $0x18] sm:$0xff]
      %v2386 = vsel %vm725, %v2381, 0
      %v2389 = vsel %vm725, %v2382, 0
      %v2392 = vsel %vm725, %v2383, 0
      %v2395 = vsel %vm725, %v2384, 0
      %2397 = vmatprep.subr.mxu0 %v2373
      %2398 = vmatpush1.msra.mxu0 %v2372
      %2399 = vmatprep.subr.mxu0 %v2375
      %2400 = vmatpush1.msra.mxu0 %v2374
      %2401 = vmatprep.subr.mxu0 %v2377
      %2402 = vmatpush1.msra.mxu0 %v2376
      %2403 = vmatprep.subr.mxu0 %v2379
      %2404 = vmatpush1.msra.mxu0 %v2378
      %2405 = vmatprep.subr.mxu0 0.0
      %2406 = vmatpush1.msra.mxu0 0.0
      %2407 = vmatprep.subr.mxu0 0.0
      %2408 = vmatpush1.msra.mxu0 0.0
      %2409 = vmatprep.subr.mxu0 0.0
      %2410 = vmatpush1.msra.mxu0 0.0
      %2411 = vmatprep.subr.mxu0 0.0
      %2412 = vmatpush1.msra.mxu0 0.0
      %2413 = vmatprep.subr.mxu0 0.0
      %2414 = vmatpush1.msra.mxu0 0.0
      %2415 = vmatprep.subr.mxu0 0.0
      %2416 = vmatpush1.msra.mxu0 0.0
      %2417 = vmatprep.subr.mxu0 0.0
      %2418 = vmatpush1.msra.mxu0 0.0
      %2419 = vmatprep.subr.mxu0 0.0
      %2420 = vmatpush1.msra.mxu0 0.0
      %2421 = vmatprep.subr.mxu0 0.0
      %2422 = vmatpush1.msra.mxu0 0.0
      %2423 = vmatprep.subr.mxu0 0.0
      %2424 = vmatpush1.msra.mxu0 0.0
      %2425 = vmatprep.subr.mxu0 0.0
      %2426 = vmatpush1.msra.mxu0 0.0
      %2427 = vmatprep.subr.mxu0 0.0
      %2428 = vmatpush1.msra.mxu0 0.0
      %2429 = vmatprep.subr.mxu0 0.0
      %2430 = vmatpush1.msra.mxu0 0.0
      %2431 = vmatprep.subr.mxu0 0.0
      %2432 = vmatpush1.msra.mxu0 0.0
      %2433 = vmatprep.subr.mxu0 0.0
      %2434 = vmatpush1.msra.mxu0 0.0
      %2435 = vmatprep.subr.mxu0 0.0
      %2436 = vmatpush1.msra.mxu0 0.0
      %2437 = vmatprep.subr.mxu0 0.0
      %2438 = vmatpush1.msra.mxu0 0.0
      %2439 = vmatprep.subr.mxu0 0.0
      %2440 = vmatpush1.msra.mxu0 0.0
      %2441 = vmatprep.subr.mxu0 0.0
      %2442 = vmatpush1.msra.mxu0 0.0
      %2443 = vmatprep.subr.mxu0 0.0
      %2444 = vmatpush1.msra.mxu0 0.0
      %2445 = vmatprep.subr.mxu0 0.0
      %2446 = vmatpush1.msra.mxu0 0.0
      %2447 = vmatprep.subr.mxu0 0.0
      %2448 = vmatpush1.msra.mxu0 0.0
      %2449 = vmatprep.subr.mxu0 0.0
      %2450 = vmatpush1.msra.mxu0 0.0
      %2451 = vmatprep.subr.mxu0 0.0
      %2452 = vmatpush1.msra.mxu0 0.0
      %2453 = vmatprep.subr.mxu0 0.0
      %2454 = vmatpush1.msra.mxu0 0.0
      %2455 = vmatprep.subr.mxu0 0.0
      %2456 = vmatpush1.msra.mxu0 0.0
      %2457 = vmatprep.subr.mxu0 0.0
      %2458 = vmatpush1.msra.mxu0 0.0
      %2459 = vmatprep.subr.mxu0 0.0
      %2460 = vmatpush1.msra.mxu0 0.0
      %2461 = vmatprep.mubr.f32.mxu0 0.0
      %2462 = vmatmul.mubr.f32.gmra.mrb[0].mxu0 %v2386
      %v2463 = vpop.f32.mrb[0].mxu0
      %v2464 = vadd.f32 0.0, %v2463
      %v2465 = vpop.f32.mrb[0].mxu0
      %v2466 = vadd.f32 0.0, %v2465
      %2467 = vmatprep.mubr.f32.mxu0 0.0
      %2468 = vmatmul.mubr.f32.gmra.mrb[0].mxu0 %v2389
      %v2469 = vpop.f32.mrb[0].mxu0
      %v2470 = vadd.f32 0.0, %v2469
      %v2471 = vpop.f32.mrb[0].mxu0
      %v2472 = vadd.f32 0.0, %v2471
      %2473 = vmatprep.mubr.f32.mxu0 0.0
      %2474 = vmatmul.mubr.f32.gmra.mrb[0].mxu0 %v2392
      %v2475 = vpop.f32.mrb[0].mxu0
      %v2476 = vadd.f32 0.0, %v2475
      %v2477 = vpop.f32.mrb[0].mxu0
      %v2478 = vadd.f32 0.0, %v2477
      %2479 = vmatprep.mubr.f32.mxu0 0.0
      %2480 = vmatmul.mubr.f32.gmra.mrb[0].mxu0 %v2395
      %v2481 = vpop.f32.mrb[0].mxu0
      %v2482 = vadd.f32 0.0, %v2481
      %v2483 = vpop.f32.mrb[0].mxu0
      %v2484 = vadd.f32 0.0, %v2483
      %2485 = vdwg.mxu0
      %v2486 = vadd.f32 %v2293, %v2464
      %v2487 = vadd.f32 %v2294, %v2466
      %v2488 = vadd.f32 %v2295, %v2470
      %v2489 = vadd.f32 %v2296, %v2472
      %v2490 = vadd.f32 %v2297, %v2476
      %v2491 = vadd.f32 %v2298, %v2478
      %v2492 = vadd.f32 %v2299, %v2482
      %v2493 = vadd.f32 %v2300, %v2484
      %v2494 = vmul.f32 %v2486, 0.5
      %v2495 = vmul.f32 %v2487, 0.5
      %v2496 = vmul.f32 %v2488, 0.5
      %v2497 = vmul.f32 %v2489, 0.5
      %v2498 = vmul.f32 %v2490, 0.5
      %v2499 = vmul.f32 %v2491, 0.5
      %v2500 = vmul.f32 %v2492, 0.5
      %v2501 = vmul.f32 %v2493, 0.5
      %v2502 = vmul.f32 %v2486, 0.70710677
      %v2503 = vmul.f32 %v2487, 0.70710677
      %v2504 = vmul.f32 %v2488, 0.70710677
      %v2505 = vmul.f32 %v2489, 0.70710677
      %v2506 = vmul.f32 %v2490, 0.70710677
      %v2507 = vmul.f32 %v2491, 0.70710677
      %v2508 = vmul.f32 %v2492, 0.70710677
      %v2509 = vmul.f32 %v2493, 0.70710677
      %v2510 = verf.f32.pop %v2502
      %v2511 = verf.f32.pop %v2503
      %v2512 = verf.f32.pop %v2504
      %v2513 = verf.f32.pop %v2505
      %v2514 = verf.f32.pop %v2506
      %v2515 = verf.f32.pop %v2507
      %v2516 = verf.f32.pop %v2508
      %v2517 = verf.f32.pop %v2509
      %v2518 = vadd.f32 %v2510, 1.0
      %v2519 = vadd.f32 %v2511, 1.0
      %v2520 = vadd.f32 %v2512, 1.0
      %v2521 = vadd.f32 %v2513, 1.0
      %v2522 = vadd.f32 %v2514, 1.0
      %v2523 = vadd.f32 %v2515, 1.0
      %v2524 = vadd.f32 %v2516, 1.0
      %v2525 = vadd.f32 %v2517, 1.0
      %v2526 = vmul.f32 %v2494, %v2518
      %v2527 = vmul.f32 %v2495, %v2519
      %v2528 = vmul.f32 %v2496, %v2520
      %v2529 = vmul.f32 %v2497, %v2521
      %v2530 = vmul.f32 %v2498, %v2522
      %v2531 = vmul.f32 %v2499, %v2523
      %v2532 = vmul.f32 %v2500, %v2524
      %v2533 = vmul.f32 %v2501, %v2525
      %v2534 = vpack.c.bf16 %v2528, %v2526
      %v2535 = vpack.c.bf16 %v2529, %v2527
      %v2536 = vpack.c.bf16 %v2532, %v2530
      %v2537 = vpack.c.bf16 %v2533, %v2531
      %v2538 = vld [vmem:[%s7] sm:$0xf]
      %v2539 = vld [vmem:[%s7 + $0x4] sm:$0xf]
      %v2540 = vld [vmem:[%s7 + $0x8] sm:$0xf]
      %v2541 = vld [vmem:[%s7 + $0xc] sm:$0xf]
      %v2542 = vld [vmem:[%s7 + $0x10] sm:$0xf]
      %v2543 = vld [vmem:[%s7 + $0x14] sm:$0xf]
      %v2544 = vld [vmem:[%s7 + $0x18] sm:$0xf]
      %v2545 = vld [vmem:[%s7 + $0x1c] sm:$0xf]
      %v2546 = vld [vmem:[%s7 + $0x20] sm:$0xf]
      %v2547 = vld [vmem:[%s7 + $0x24] sm:$0xf]
      %v2548 = vld [vmem:[%s7 + $0x28] sm:$0xf]
      %v2549 = vld [vmem:[%s7 + $0x2c] sm:$0xf]
      %v2550 = vld [vmem:[%s7 + $0x30] sm:$0xf]
      %v2551 = vld [vmem:[%s7 + $0x34] sm:$0xf]
      %v2552 = vld [vmem:[%s7 + $0x38] sm:$0xf]
      %v2553 = vld [vmem:[%s7 + $0x3c] sm:$0xf]
      %v2554 = vld [vmem:[%s7 + $0x40] sm:$0xf]
      %v2555 = vld [vmem:[%s7 + $0x44] sm:$0xf]
      %v2556 = vld [vmem:[%s7 + $0x48] sm:$0xf]
      %v2557 = vld [vmem:[%s7 + $0x4c] sm:$0xf]
      %v2558 = vld [vmem:[%s7 + $0x50] sm:$0xf]
      %v2559 = vld [vmem:[%s7 + $0x54] sm:$0xf]
      %v2560 = vld [vmem:[%s7 + $0x58] sm:$0xf]
      %v2561 = vld [vmem:[%s7 + $0x5c] sm:$0xf]
      %v2562 = vld [vmem:[%s7 + $0x60] sm:$0xf]
      %v2563 = vld [vmem:[%s7 + $0x64] sm:$0xf]
      %v2564 = vld [vmem:[%s7 + $0x68] sm:$0xf]
      %v2565 = vld [vmem:[%s7 + $0x6c] sm:$0xf]
      %v2566 = vld [vmem:[%s7 + $0x70] sm:$0xf]
      %v2567 = vld [vmem:[%s7 + $0x74] sm:$0xf]
      %v2568 = vld [vmem:[%s7 + $0x78] sm:$0xf]
      %v2569 = vld [vmem:[%s7 + $0x7c] sm:$0xf]
      %v2602 = vunpack.c.l.b16 %v2538
      %v2603 = vunpack.c.l.b16 %v2539
      %v2604 = vunpack.c.l.b16 %v2540
      %v2605 = vunpack.c.l.b16 %v2541
      %v2606 = vunpack.c.l.b16 %v2542
      %v2607 = vunpack.c.l.b16 %v2543
      %v2608 = vunpack.c.l.b16 %v2544
      %v2609 = vunpack.c.l.b16 %v2545
      %v2610 = vunpack.c.l.b16 %v2546
      %v2611 = vunpack.c.l.b16 %v2547
      %v2612 = vunpack.c.l.b16 %v2548
      %v2613 = vunpack.c.l.b16 %v2549
      %v2614 = vunpack.c.l.b16 %v2550
      %v2615 = vunpack.c.l.b16 %v2551
      %v2616 = vunpack.c.l.b16 %v2552
      %v2617 = vunpack.c.l.b16 %v2553
      %v2618 = vunpack.c.l.b16 %v2554
      %v2619 = vunpack.c.l.b16 %v2555
      %v2620 = vunpack.c.l.b16 %v2556
      %v2621 = vunpack.c.l.b16 %v2557
      %v2622 = vunpack.c.l.b16 %v2558
      %v2623 = vunpack.c.l.b16 %v2559
      %v2624 = vunpack.c.l.b16 %v2560
      %v2625 = vunpack.c.l.b16 %v2561
      %v2626 = vunpack.c.l.b16 %v2562
      %v2627 = vunpack.c.l.b16 %v2563
      %v2628 = vunpack.c.l.b16 %v2564
      %v2629 = vunpack.c.l.b16 %v2565
      %v2630 = vunpack.c.l.b16 %v2566
      %v2631 = vunpack.c.l.b16 %v2567
      %v2632 = vunpack.c.l.b16 %v2568
      %v2633 = vunpack.c.l.b16 %v2569
      %v2634 = vpack.c.b16 %v2603, %v2602
      %v2635 = vpack.c.b16 %v2605, %v2604
      %v2636 = vpack.c.b16 %v2607, %v2606
      %v2637 = vpack.c.b16 %v2609, %v2608
      %v2638 = vpack.c.b16 %v2611, %v2610
      %v2639 = vpack.c.b16 %v2613, %v2612
      %v2640 = vpack.c.b16 %v2615, %v2614
      %v2641 = vpack.c.b16 %v2617, %v2616
      %v2642 = vpack.c.b16 %v2619, %v2618
      %v2643 = vpack.c.b16 %v2621, %v2620
      %v2644 = vpack.c.b16 %v2623, %v2622
      %v2645 = vpack.c.b16 %v2625, %v2624
      %v2646 = vpack.c.b16 %v2627, %v2626
      %v2647 = vpack.c.b16 %v2629, %v2628
      %v2648 = vpack.c.b16 %v2631, %v2630
      %v2649 = vpack.c.b16 %v2633, %v2632
      %2666 = vmatprep.subr.bf16.mxu0 0
      %2667 = vmatpush1.bf16.msra.mxu0 %v2634
      %2668 = vmatprep.subr.bf16.mxu0 0
      %2669 = vmatpush1.bf16.msra.mxu0 %v2635
      %2670 = vmatprep.subr.bf16.mxu0 0
      %2671 = vmatpush1.bf16.msra.mxu0 %v2636
      %2672 = vmatprep.subr.bf16.mxu0 0
      %2673 = vmatpush1.bf16.msra.mxu0 %v2637
      %2674 = vmatprep.subr.bf16.mxu0 0
      %2675 = vmatpush1.bf16.msra.mxu0 %v2638
      %2676 = vmatprep.subr.bf16.mxu0 0
      %2677 = vmatpush1.bf16.msra.mxu0 %v2639
      %2678 = vmatprep.subr.bf16.mxu0 0
      %2679 = vmatpush1.bf16.msra.mxu0 %v2640
      %2680 = vmatprep.subr.bf16.mxu0 0
      %2681 = vmatpush1.bf16.msra.mxu0 %v2641
      %2682 = vmatprep.subr.bf16.mxu0 0
      %2683 = vmatpush1.bf16.msra.mxu0 %v2642
      %2684 = vmatprep.subr.bf16.mxu0 0
      %2685 = vmatpush1.bf16.msra.mxu0 %v2643
      %2686 = vmatprep.subr.bf16.mxu0 0
      %2687 = vmatpush1.bf16.msra.mxu0 %v2644
      %2688 = vmatprep.subr.bf16.mxu0 0
      %2689 = vmatpush1.bf16.msra.mxu0 %v2645
      %2690 = vmatprep.subr.bf16.mxu0 0
      %2691 = vmatpush1.bf16.msra.mxu0 %v2646
      %2692 = vmatprep.subr.bf16.mxu0 0
      %2693 = vmatpush1.bf16.msra.mxu0 %v2647
      %2694 = vmatprep.subr.bf16.mxu0 0
      %2695 = vmatpush1.bf16.msra.mxu0 %v2648
      %2696 = vmatprep.subr.bf16.mxu0 0
      %2697 = vmatpush1.bf16.msra.mxu0 %v2649
      %2698 = vmatprep.mubr.bf16.mxu0 %v2535
      %2699 = vmatmul.mubr.bf16.gmra.mrb[0].mxu0 %v2534
      %v2700 = vpop.f32.mrb[0].mxu0
      %v2701 = vadd.f32 0.0, %v2700
      %v2702 = vpop.f32.mrb[0].mxu0
      %v2703 = vpop.f32.mrb[0].mxu0
      %v2704 = vadd.f32 0.0, %v2703
      %v2705 = vpop.f32.mrb[0].mxu0
      %2706 = vmatprep.mubr.bf16.mxu0 %v2537
      %2707 = vmatmul.mubr.bf16.gmra.mrb[0].mxu0 %v2536
      %v2708 = vpop.f32.mrb[0].mxu0
      %v2709 = vadd.f32 0.0, %v2708
      %v2710 = vpop.f32.mrb[0].mxu0
      %v2711 = vpop.f32.mrb[0].mxu0
      %v2712 = vadd.f32 0.0, %v2711
      %v2713 = vpop.f32.mrb[0].mxu0
      %2714 = vdwg.mxu0
      %2715 = vst.msk [vmem:[%s305] sm:$0xff] %vm319, %v2701
      %2716 = vst.msk [vmem:[%s305 + $0x8] sm:$0xff] %vm319, %v2704
      %2717 = vst.msk [vmem:[%s305 + $0x10] sm:$0xff] %vm319, %v2709
      %2718 = vst.msk [vmem:[%s305 + $0x18] sm:$0xff] %vm319, %v2712
      %p2719 = scmp.lt.s32.totalorder %s19, 1
      %s2720 = scalar_select %p2719, %s19, 1
      %s2721 = smul.addr %s2720, 4
      %s2722 = smul.addr %s2721, 8
      %s2723 = scalar_lea.vmem %s8, %s2722
      // Predicated region
      $region53: #{prenorm_feedforward_pallas.1} parent=51 // pred_check
        %p2724 = pneg %p210
      $region54: #{prenorm_feedforward_pallas.1} parent=51 // pred_check_branch
        %2726 = sbr.rel (%p2724) target = $region56
      $region55: #{prenorm_feedforward_pallas.1} parent=51 // pred_region
        _
      $region56: #{prenorm_feedforward_pallas.1} parent=51 // pred_fallthru
        _
    $region52: #{prenorm_feedforward_pallas.1} parent=5 // pred_fallthru
      _
    %p2727 = scmp.le.s32.totalorder 2, %s14
    // Predicated region
    $region57: #{prenorm_feedforward_pallas.1} parent=5 // pred_check
      %p2728 = pneg %p2727
    $region58: #{prenorm_feedforward_pallas.1} parent=5 // pred_check_branch
      %2730 = sbr.rel (%p2728) target = $region60
    $region59: #{prenorm_feedforward_pallas.1} parent=5 // pred_region
      %s2731 = ssub.s32 %s14, 2
      // Predicated region
      $region61: #{prenorm_feedforward_pallas.1} parent=59 // pred_check
        %p2732 = pneg %p216
      $region62: #{prenorm_feedforward_pallas.1} parent=59 // pred_check_branch
        %2734 = sbr.rel (%p2732) target = $region64
      $region63: #{prenorm_feedforward_pallas.1} parent=59 // pred_region
        %p2735 = scmp.lt.s32.totalorder %s20, 1
        %s2736 = scalar_select %p2735, %s20, 1
        %s2737 = smul.addr %s2736, 4
        %s2738 = smul.addr %s2737, 8
        %s2739 = scalar_lea.vmem %s8, %s2738
      $region64: #{prenorm_feedforward_pallas.1} parent=59 // pred_fallthru
        _
    $region60: #{prenorm_feedforward_pallas.1} parent=5 // pred_fallthru
      _
  $region6: #{prenorm_feedforward_pallas.1} parent=0 // loop_footer
    %s18 = sadd.s32 1, %s14
  $region7: #{prenorm_feedforward_pallas.1} parent=0 // loop_footer_branch
    %13 = sbr.rel target = $region3
  $region8: #{prenorm_feedforward_pallas.1} parent=0 // loop_exit
    _

</llo_original>
